<compile_context>
chip_gen: v7x
topology: tpu7x:2x2x1
jax: 0.10.0
libtpu: 0.0.40
codegen_flags: <defaults>
</compile_context>

<pallas_src>
import functools

import jax
import jax.numpy as jnp
from jax.experimental import pallas as pl
from jax.experimental.pallas import tpu as pltpu


def _cnn_gru_kernel(
    x_ref,      # (TB, T, D)
    wc_ref,     # (K, D, C)     conv weight per tap: wc[k, d, c] = Wc[c, d, k]
    bc_ref,     # (1, C)
    wih_ref,    # (3, C, H)     GRU input->gate weights, [r, z, n], transposed
    bih_ref,    # (3, 1, H)     [b_ir+b_hr, b_iz+b_hz, b_in]  (folded on host)
    whh_ref,    # (3, H, H)     GRU hidden->gate weights, [r, z, n], transposed
    bhhn_ref,   # (1, H)        b_hn (cannot be folded: sits inside r * (...))
    wfc_ref,    # (H, O)        fc weight, transposed
    bfc_ref,    # (1, O)
    out_ref,    # (TB, 1, O)
    *, TB, T, D, K, C, H, O,
):
    L = T - K + 1          # conv output length (valid padding, stride 1)
    M = TB * L             # single MXU M dimension for all pre-recurrence matmuls

    # ---- Conv1d (valid, stride 1) as a sum over K taps + ReLU ---------------
    conv = jnp.dot(
        x_ref[:, 0:L, :].reshape(M, D), wc_ref[0],
        preferred_element_type=jnp.float32,
    )
    for k in range(1, K):
        conv = conv + jnp.dot(
            x_ref[:, k:k + L, :].reshape(M, D), wc_ref[k],
            preferred_element_type=jnp.float32,
        )
    conv = jnp.maximum(conv + bc_ref[...], 0.0)            # (M, C)

    # ---- Input-side GRU gate pre-activations, split per gate ----------------
    # r/z gates already carry the hidden bias (folded on host).
    gx_r = (jnp.dot(conv, wih_ref[0], preferred_element_type=jnp.float32)
            + bih_ref[0]).reshape(TB, L, H)
    gx_z = (jnp.dot(conv, wih_ref[1], preferred_element_type=jnp.float32)
            + bih_ref[1]).reshape(TB, L, H)
    gx_n = (jnp.dot(conv, wih_ref[2], preferred_element_type=jnp.float32)
            + bih_ref[2]).reshape(TB, L, H)

    # Hoist hidden-side weights/bias out of the recurrence.
    whh_r, whh_z, whh_n = whh_ref[0], whh_ref[1], whh_ref[2]
    bhh_n = bhhn_ref[...]

    # ---- GRU recurrence (PyTorch gate order r, z, n), fully unrolled --------
    h = jnp.zeros((TB, H), jnp.float32)
    for t in range(L):
        gh_r = jnp.dot(h, whh_r, preferred_element_type=jnp.float32)
        gh_z = jnp.dot(h, whh_z, preferred_element_type=jnp.float32)
        gh_n = jnp.dot(h, whh_n, preferred_element_type=jnp.float32) + bhh_n
        r = jax.nn.sigmoid(gx_r[:, t, :] + gh_r)
        z = jax.nn.sigmoid(gx_z[:, t, :] + gh_z)
        n = jnp.tanh(gx_n[:, t, :] + r * gh_n)
        h = n + z * (h - n)          # == (1-z)*n + z*h, one fewer VPU op

    # Dropout is identity at inference (eval mode) -> no-op here.
    # ---- Final Linear + Sigmoid ----------------------------------------------
    logits = jnp.dot(h, wfc_ref[...], preferred_element_type=jnp.float32) + bfc_ref[...]
    out_ref[...] = jax.nn.sigmoid(logits).reshape(TB, 1, O)


def cnn_gru_forward(x, params, *, batch_tile=None):
    """x: (B, T, D) float32.  params: dict of PyTorch-shaped weights.

    batch_tile=None -> whole batch in a single grid step (best for small B);
    otherwise the batch is tiled with blocks of `batch_tile` rows ("parallel"
    grid axis, megacore-shardable, bounded VMEM).
    """
    B, T, D = x.shape
    Wc, bc = params["conv_w"], params["conv_b"]          # (C, D, K), (C,)
    Wih, bih = params["gru_w_ih"], params["gru_b_ih"]    # (3H, C), (3H,)
    Whh, bhh = params["gru_w_hh"], params["gru_b_hh"]    # (3H, H), (3H,)
    Wfc, bfc = params["fc_w"], params["fc_b"]            # (O, H), (O,)

    C, _, K = Wc.shape
    H = Whh.shape[1]
    O = Wfc.shape[0]
    L = T - K + 1
    if L <= 0:
        raise ValueError(f"seq_len={T} must be >= conv kernel_size={K}")
    TB = B if batch_tile is None else batch_tile
    if B % TB != 0:
        raise ValueError(f"batch={B} must be divisible by batch_tile={TB}")

    f32 = jnp.float32
    # Re-layout parameters for channels-last matmuls inside the kernel.
    wc = jnp.transpose(Wc, (2, 1, 0)).astype(f32)                        # (K, D, C)
    bc2 = bc.reshape(1, C).astype(f32)
    wih = jnp.transpose(Wih.reshape(3, H, C), (0, 2, 1)).astype(f32)     # (3, C, H)
    whh = jnp.transpose(Whh.reshape(3, H, H), (0, 2, 1)).astype(f32)     # (3, H, H)
    bih3 = bih.reshape(3, 1, H).astype(f32)
    bhh3 = bhh.reshape(3, 1, H).astype(f32)
    # Fold hidden biases of r and z gates into the input biases (exact for the
    # PyTorch GRU formulation); b_hn stays separate (inside r * (...)).
    bih_f = jnp.concatenate(
        [bih3[0:1] + bhh3[0:1], bih3[1:2] + bhh3[1:2], bih3[2:3]], axis=0)  # (3,1,H)
    bhhn = bhh3[2]                                                       # (1, H)
    wfc = Wfc.T.astype(f32)                                              # (H, O)
    bfc2 = bfc.reshape(1, O).astype(f32)

    kernel = functools.partial(
        _cnn_gru_kernel, TB=TB, T=T, D=D, K=K, C=C, H=H, O=O)

    def const_map(ndim):
        return lambda b: (0,) * ndim   # weights: same block every grid step -> no re-DMA

    in_specs = [
        pl.BlockSpec((TB, T, D), lambda b: (b, 0, 0)),   # x: tiled over batch
        pl.BlockSpec(wc.shape, const_map(3)),
        pl.BlockSpec(bc2.shape, const_map(2)),
        pl.BlockSpec(wih.shape, const_map(3)),
        pl.BlockSpec(bih_f.shape, const_map(3)),
        pl.BlockSpec(whh.shape, const_map(3)),
        pl.BlockSpec(bhhn.shape, const_map(2)),
        pl.BlockSpec(wfc.shape, const_map(2)),
        pl.BlockSpec(bfc2.shape, const_map(2)),
    ]
    out_spec = pl.BlockSpec((TB, 1, O), lambda b: (b, 0, 0))

    flops = 2 * B * (L * K * D * C + L * C * 3 * H + L * 3 * H * H + H * O)
    transcendentals = B * (L * 3 * H + O)
    bytes_accessed = 4 * (x.size + wc.size + bc2.size + wih.size + bih_f.size
                          + whh.size + bhhn.size + wfc.size + bfc2.size + B * O)

    out = pl.pallas_call(
        kernel,
        out_shape=jax.ShapeDtypeStruct((B, 1, O), f32),
        grid=(B // TB,),
        in_specs=in_specs,
        out_specs=out_spec,
        compiler_params=pltpu.CompilerParams(
            dimension_semantics=("parallel",)),
        cost_estimate=pl.CostEstimate(
            flops=flops,
            transcendentals=transcendentals,
            bytes_accessed=bytes_accessed),
    )(x.astype(f32), wc, bc2, wih, bih_f, whh, bhhn, wfc, bfc2)
    return out.reshape(B, O)


def cnn_gru_forward_ref(x, params):
    """Pure-JAX reference mirroring the PyTorch forward (eval mode)."""
    Wc, bc = params["conv_w"], params["conv_b"]
    Wih, bih = params["gru_w_ih"], params["gru_b_ih"]
    Whh, bhh = params["gru_w_hh"], params["gru_b_hh"]
    Wfc, bfc = params["fc_w"], params["fc_b"]
    B, T, D = x.shape
    C, _, K = Wc.shape
    H = Whh.shape[1]
    L = T - K + 1

    out_t = []
    for t in range(L):
        win = x[:, t:t + K, :]                        # (B, K, D)
        y = jnp.einsum("bkd,cdk->bc", win, Wc) + bc   # (B, C)
        out_t.append(y)
    conv = jax.nn.relu(jnp.stack(out_t, axis=1))      # (B, L, C)

    h = jnp.zeros((B, H), jnp.float32)
    for t in range(L):
        xt = conv[:, t, :]
        gx = xt @ Wih.T + bih
        gh = h @ Whh.T + bhh
        r = jax.nn.sigmoid(gx[:, :H] + gh[:, :H])
        z = jax.nn.sigmoid(gx[:, H:2 * H] + gh[:, H:2 * H])
        n = jnp.tanh(gx[:, 2 * H:] + r * gh[:, 2 * H:])
        h = (1.0 - z) * n + z * h
    return jax.nn.sigmoid(h @ Wfc.T + bfc)


if __name__ == "__main__":
    # Model hyperparameters (small, consistent with the module's __init__).
    input_dim = 8          # D
    cnn_out_channels = 16  # C
    cnn_kernel_size = 3    # K
    gru_hidden_dim = 32    # H
    output_dim = 4         # O
    batch, seq_len = 2, 10

    key = jax.random.PRNGKey(0)
    ks = jax.random.split(key, 10)

    def init(k, shape, scale=0.1):
        return (scale * jax.random.normal(k, shape)).astype(jnp.float32)

    params = {
        "conv_w": init(ks[0], (cnn_out_channels, input_dim, cnn_kernel_size)),
        "conv_b": init(ks[1], (cnn_out_channels,)),
        "gru_w_ih": init(ks[2], (3 * gru_hidden_dim, cnn_out_channels)),
        "gru_w_hh": init(ks[3], (3 * gru_hidden_dim, gru_hidden_dim)),
        "gru_b_ih": init(ks[4], (3 * gru_hidden_dim,)),
        "gru_b_hh": init(ks[5], (3 * gru_hidden_dim,)),
        "fc_w": init(ks[6], (output_dim, gru_hidden_dim)),
        "fc_b": init(ks[7], (output_dim,)),
    }

    x = jax.random.normal(ks[8], (batch, seq_len, input_dim), dtype=jnp.float32)

    # Whole batch in a single grid step (default).
    out = cnn_gru_forward(x, params)
    out = jax.block_until_ready(out)
    ref = cnn_gru_forward_ref(x, params)
    assert out.shape == (batch, output_dim)
    assert jnp.allclose(out, ref, atol=2e-3, rtol=2e-3), (out, ref)

    # Also exercise the batch-tiled grid path.
    x4 = jax.random.normal(ks[9], (4, seq_len, input_dim), dtype=jnp.float32)
    out4 = jax.block_until_ready(cnn_gru_forward(x4, params, batch_tile=2))
    ref4 = cnn_gru_forward_ref(x4, params)
    assert jnp.allclose(out4, ref4, atol=2e-3, rtol=2e-3), (out4, ref4)

    print("KERNEL_OK")
</pallas_src>

<mosaic_0001>
module attributes {stable_mosaic.version = 11 : i64} {
  func.func @_cnn_gru_kernel(%arg0: i32, %arg1: memref<2x10x8xf32, #tpu.memory_space<vmem>>, %arg2: memref<3x8x16xf32, #tpu.memory_space<vmem>>, %arg3: memref<1x16xf32, #tpu.memory_space<vmem>>, %arg4: memref<3x16x32xf32, #tpu.memory_space<vmem>>, %arg5: memref<3x1x32xf32, #tpu.memory_space<vmem>>, %arg6: memref<3x32x32xf32, #tpu.memory_space<vmem>>, %arg7: memref<1x32xf32, #tpu.memory_space<vmem>>, %arg8: memref<32x4xf32, #tpu.memory_space<vmem>>, %arg9: memref<1x4xf32, #tpu.memory_space<vmem>>, %arg10: memref<2x1x4xf32, #tpu.memory_space<vmem>>) attributes {dimension_semantics = [#tpu.dimension_semantics<parallel>], iteration_bounds = array<i64: 1>, scalar_prefetch = 0 : i64, scratch_operands = 0 : i64, tpu.core_type = #tpu.core_type<tc>, window_params = [{transform_indices = @transform_0, window_bounds = array<i64: 2, 10, 8>}, {pipeline_mode = #tpu.pipeline_mode<synchronous>, transform_indices = @transform_1, window_bounds = array<i64: 3, 8, 16>}, {pipeline_mode = #tpu.pipeline_mode<synchronous>, transform_indices = @transform_2, window_bounds = array<i64: 1, 16>}, {pipeline_mode = #tpu.pipeline_mode<synchronous>, transform_indices = @transform_3, window_bounds = array<i64: 3, 16, 32>}, {pipeline_mode = #tpu.pipeline_mode<synchronous>, transform_indices = @transform_4, window_bounds = array<i64: 3, 1, 32>}, {pipeline_mode = #tpu.pipeline_mode<synchronous>, transform_indices = @transform_5, window_bounds = array<i64: 3, 32, 32>}, {pipeline_mode = #tpu.pipeline_mode<synchronous>, transform_indices = @transform_6, window_bounds = array<i64: 1, 32>}, {pipeline_mode = #tpu.pipeline_mode<synchronous>, transform_indices = @transform_7, window_bounds = array<i64: 32, 4>}, {pipeline_mode = #tpu.pipeline_mode<synchronous>, transform_indices = @transform_8, window_bounds = array<i64: 1, 4>}, {transform_indices = @transform_9, window_bounds = array<i64: 2, 1, 4>}]} {
    %c0 = arith.constant 0 : index
    %c0_0 = arith.constant 0 : index
    %c0_1 = arith.constant 0 : index
    %0 = vector.load %arg1[%c0, %c0_0, %c0_1] : memref<2x10x8xf32, #tpu.memory_space<vmem>>, vector<2x8x8xf32>
    %1 = vector.shape_cast %0 : vector<2x8x8xf32> to vector<16x8xf32>
    %c0_2 = arith.constant 0 : index
    %c0_3 = arith.constant 0 : index
    %c0_4 = arith.constant 0 : index
    %2 = vector.load %arg2[%c0_2, %c0_3, %c0_4] : memref<3x8x16xf32, #tpu.memory_space<vmem>>, vector<1x8x16xf32>
    %3 = vector.shape_cast %2 : vector<1x8x16xf32> to vector<8x16xf32>
    %cst = arith.constant dense<0.000000e+00> : vector<16x16xf32>
    %4 = tpu.matmul %1, %3, %cst {dimension_numbers = #tpu.dot_dimension_numbers<[1], [0], [0], [1], [0, 0, 1, 1], [], []>} : vector<16x8xf32>, vector<8x16xf32>, vector<16x16xf32> -> vector<16x16xf32>
    %c0_5 = arith.constant 0 : index
    %c1 = arith.constant 1 : index
    %c0_6 = arith.constant 0 : index
    %5 = vector.load %arg1[%c0_5, %c1, %c0_6] : memref<2x10x8xf32, #tpu.memory_space<vmem>>, vector<2x8x8xf32>
    %6 = vector.shape_cast %5 : vector<2x8x8xf32> to vector<16x8xf32>
    %c1_7 = arith.constant 1 : index
    %c0_8 = arith.constant 0 : index
    %c0_9 = arith.constant 0 : index
    %7 = vector.load %arg2[%c1_7, %c0_8, %c0_9] : memref<3x8x16xf32, #tpu.memory_space<vmem>>, vector<1x8x16xf32>
    %8 = vector.shape_cast %7 : vector<1x8x16xf32> to vector<8x16xf32>
    %cst_10 = arith.constant dense<0.000000e+00> : vector<16x16xf32>
    %9 = tpu.matmul %6, %8, %cst_10 {dimension_numbers = #tpu.dot_dimension_numbers<[1], [0], [0], [1], [0, 0, 1, 1], [], []>} : vector<16x8xf32>, vector<8x16xf32>, vector<16x16xf32> -> vector<16x16xf32>
    %10 = arith.addf %4, %9 : vector<16x16xf32>
    %c0_11 = arith.constant 0 : index
    %c2 = arith.constant 2 : index
    %c0_12 = arith.constant 0 : index
    %11 = vector.load %arg1[%c0_11, %c2, %c0_12] : memref<2x10x8xf32, #tpu.memory_space<vmem>>, vector<2x8x8xf32>
    %12 = vector.shape_cast %11 : vector<2x8x8xf32> to vector<16x8xf32>
    %c2_13 = arith.constant 2 : index
    %c0_14 = arith.constant 0 : index
    %c0_15 = arith.constant 0 : index
    %13 = vector.load %arg2[%c2_13, %c0_14, %c0_15] : memref<3x8x16xf32, #tpu.memory_space<vmem>>, vector<1x8x16xf32>
    %14 = vector.shape_cast %13 : vector<1x8x16xf32> to vector<8x16xf32>
    %cst_16 = arith.constant dense<0.000000e+00> : vector<16x16xf32>
    %15 = tpu.matmul %12, %14, %cst_16 {dimension_numbers = #tpu.dot_dimension_numbers<[1], [0], [0], [1], [0, 0, 1, 1], [], []>} : vector<16x8xf32>, vector<8x16xf32>, vector<16x16xf32> -> vector<16x16xf32>
    %16 = arith.addf %10, %15 : vector<16x16xf32>
    %c0_17 = arith.constant 0 : index
    %c0_18 = arith.constant 0 : index
    %17 = vector.load %arg3[%c0_17, %c0_18] : memref<1x16xf32, #tpu.memory_space<vmem>>, vector<1x16xf32>
    %18 = vector.broadcast %17 : vector<1x16xf32> to vector<16x16xf32>
    %19 = arith.addf %16, %18 : vector<16x16xf32>
    %cst_19 = arith.constant 0.000000e+00 : f32
    %20 = vector.broadcast %cst_19 : f32 to vector<16x16xf32>
    %21 = arith.maximumf %19, %20 : vector<16x16xf32>
    %c0_20 = arith.constant 0 : index
    %c0_21 = arith.constant 0 : index
    %c0_22 = arith.constant 0 : index
    %22 = vector.load %arg4[%c0_20, %c0_21, %c0_22] : memref<3x16x32xf32, #tpu.memory_space<vmem>>, vector<1x16x32xf32>
    %23 = vector.shape_cast %22 : vector<1x16x32xf32> to vector<16x32xf32>
    %cst_23 = arith.constant dense<0.000000e+00> : vector<16x32xf32>
    %24 = tpu.matmul %21, %23, %cst_23 {dimension_numbers = #tpu.dot_dimension_numbers<[1], [0], [0], [1], [0, 0, 1, 1], [], []>} : vector<16x16xf32>, vector<16x32xf32>, vector<16x32xf32> -> vector<16x32xf32>
    %c0_24 = arith.constant 0 : index
    %c0_25 = arith.constant 0 : index
    %c0_26 = arith.constant 0 : index
    %25 = vector.load %arg5[%c0_24, %c0_25, %c0_26] : memref<3x1x32xf32, #tpu.memory_space<vmem>>, vector<1x1x32xf32>
    %26 = vector.shape_cast %25 : vector<1x1x32xf32> to vector<1x32xf32>
    %27 = vector.broadcast %26 : vector<1x32xf32> to vector<16x32xf32>
    %28 = arith.addf %24, %27 : vector<16x32xf32>
    %29 = vector.shape_cast %28 : vector<16x32xf32> to vector<2x8x32xf32>
    %c1_27 = arith.constant 1 : index
    %c0_28 = arith.constant 0 : index
    %c0_29 = arith.constant 0 : index
    %30 = vector.load %arg4[%c1_27, %c0_28, %c0_29] : memref<3x16x32xf32, #tpu.memory_space<vmem>>, vector<1x16x32xf32>
    %31 = vector.shape_cast %30 : vector<1x16x32xf32> to vector<16x32xf32>
    %cst_30 = arith.constant dense<0.000000e+00> : vector<16x32xf32>
    %32 = tpu.matmul %21, %31, %cst_30 {dimension_numbers = #tpu.dot_dimension_numbers<[1], [0], [0], [1], [0, 0, 1, 1], [], []>} : vector<16x16xf32>, vector<16x32xf32>, vector<16x32xf32> -> vector<16x32xf32>
    %c1_31 = arith.constant 1 : index
    %c0_32 = arith.constant 0 : index
    %c0_33 = arith.constant 0 : index
    %33 = vector.load %arg5[%c1_31, %c0_32, %c0_33] : memref<3x1x32xf32, #tpu.memory_space<vmem>>, vector<1x1x32xf32>
    %34 = vector.shape_cast %33 : vector<1x1x32xf32> to vector<1x32xf32>
    %35 = vector.broadcast %34 : vector<1x32xf32> to vector<16x32xf32>
    %36 = arith.addf %32, %35 : vector<16x32xf32>
    %37 = vector.shape_cast %36 : vector<16x32xf32> to vector<2x8x32xf32>
    %c2_34 = arith.constant 2 : index
    %c0_35 = arith.constant 0 : index
    %c0_36 = arith.constant 0 : index
    %38 = vector.load %arg4[%c2_34, %c0_35, %c0_36] : memref<3x16x32xf32, #tpu.memory_space<vmem>>, vector<1x16x32xf32>
    %39 = vector.shape_cast %38 : vector<1x16x32xf32> to vector<16x32xf32>
    %cst_37 = arith.constant dense<0.000000e+00> : vector<16x32xf32>
    %40 = tpu.matmul %21, %39, %cst_37 {dimension_numbers = #tpu.dot_dimension_numbers<[1], [0], [0], [1], [0, 0, 1, 1], [], []>} : vector<16x16xf32>, vector<16x32xf32>, vector<16x32xf32> -> vector<16x32xf32>
    %c2_38 = arith.constant 2 : index
    %c0_39 = arith.constant 0 : index
    %c0_40 = arith.constant 0 : index
    %41 = vector.load %arg5[%c2_38, %c0_39, %c0_40] : memref<3x1x32xf32, #tpu.memory_space<vmem>>, vector<1x1x32xf32>
    %42 = vector.shape_cast %41 : vector<1x1x32xf32> to vector<1x32xf32>
    %43 = vector.broadcast %42 : vector<1x32xf32> to vector<16x32xf32>
    %44 = arith.addf %40, %43 : vector<16x32xf32>
    %45 = vector.shape_cast %44 : vector<16x32xf32> to vector<2x8x32xf32>
    %c0_41 = arith.constant 0 : index
    %c0_42 = arith.constant 0 : index
    %c0_43 = arith.constant 0 : index
    %46 = vector.load %arg6[%c0_41, %c0_42, %c0_43] : memref<3x32x32xf32, #tpu.memory_space<vmem>>, vector<1x32x32xf32>
    %47 = vector.shape_cast %46 : vector<1x32x32xf32> to vector<32x32xf32>
    %c1_44 = arith.constant 1 : index
    %c0_45 = arith.constant 0 : index
    %c0_46 = arith.constant 0 : index
    %48 = vector.load %arg6[%c1_44, %c0_45, %c0_46] : memref<3x32x32xf32, #tpu.memory_space<vmem>>, vector<1x32x32xf32>
    %49 = vector.shape_cast %48 : vector<1x32x32xf32> to vector<32x32xf32>
    %c2_47 = arith.constant 2 : index
    %c0_48 = arith.constant 0 : index
    %c0_49 = arith.constant 0 : index
    %50 = vector.load %arg6[%c2_47, %c0_48, %c0_49] : memref<3x32x32xf32, #tpu.memory_space<vmem>>, vector<1x32x32xf32>
    %51 = vector.shape_cast %50 : vector<1x32x32xf32> to vector<32x32xf32>
    %c0_50 = arith.constant 0 : index
    %c0_51 = arith.constant 0 : index
    %52 = vector.load %arg7[%c0_50, %c0_51] : memref<1x32xf32, #tpu.memory_space<vmem>>, vector<1x32xf32>
    %cst_52 = arith.constant 0.000000e+00 : f32
    %53 = vector.broadcast %cst_52 : f32 to vector<2x32xf32>
    %cst_53 = arith.constant dense<0.000000e+00> : vector<2x32xf32>
    %54 = tpu.matmul %53, %47, %cst_53 {dimension_numbers = #tpu.dot_dimension_numbers<[1], [0], [0], [1], [0, 0, 1, 1], [], []>} : vector<2x32xf32>, vector<32x32xf32>, vector<2x32xf32> -> vector<2x32xf32>
    %cst_54 = arith.constant dense<0.000000e+00> : vector<2x32xf32>
    %55 = tpu.matmul %53, %49, %cst_54 {dimension_numbers = #tpu.dot_dimension_numbers<[1], [0], [0], [1], [0, 0, 1, 1], [], []>} : vector<2x32xf32>, vector<32x32xf32>, vector<2x32xf32> -> vector<2x32xf32>
    %cst_55 = arith.constant dense<0.000000e+00> : vector<2x32xf32>
    %56 = tpu.matmul %53, %51, %cst_55 {dimension_numbers = #tpu.dot_dimension_numbers<[1], [0], [0], [1], [0, 0, 1, 1], [], []>} : vector<2x32xf32>, vector<32x32xf32>, vector<2x32xf32> -> vector<2x32xf32>
    %57 = vector.broadcast %52 : vector<1x32xf32> to vector<2x32xf32>
    %58 = arith.addf %56, %57 : vector<2x32xf32>
    %59 = vector.extract_strided_slice %29 {offsets = [0, 0, 0], sizes = [2, 1, 32], strides = [1, 1, 1]} : vector<2x8x32xf32> to vector<2x1x32xf32>
    %60 = vector.shape_cast %59 : vector<2x1x32xf32> to vector<2x32xf32>
    %61 = arith.addf %60, %54 : vector<2x32xf32>
    %62 = arith.negf %61 : vector<2x32xf32>
    %63 = math.exp %62 : vector<2x32xf32>
    %cst_56 = arith.constant 1.000000e+00 : f32
    %64 = vector.broadcast %cst_56 : f32 to vector<2x32xf32>
    %65 = arith.addf %64, %63 : vector<2x32xf32>
    %66 = arith.divf %64, %65 : vector<2x32xf32>
    %67 = vector.extract_strided_slice %37 {offsets = [0, 0, 0], sizes = [2, 1, 32], strides = [1, 1, 1]} : vector<2x8x32xf32> to vector<2x1x32xf32>
    %68 = vector.shape_cast %67 : vector<2x1x32xf32> to vector<2x32xf32>
    %69 = arith.addf %68, %55 : vector<2x32xf32>
    %70 = arith.negf %69 : vector<2x32xf32>
    %71 = math.exp %70 : vector<2x32xf32>
    %cst_57 = arith.constant 1.000000e+00 : f32
    %72 = vector.broadcast %cst_57 : f32 to vector<2x32xf32>
    %73 = arith.addf %72, %71 : vector<2x32xf32>
    %74 = arith.divf %72, %73 : vector<2x32xf32>
    %75 = vector.extract_strided_slice %45 {offsets = [0, 0, 0], sizes = [2, 1, 32], strides = [1, 1, 1]} : vector<2x8x32xf32> to vector<2x1x32xf32>
    %76 = vector.shape_cast %75 : vector<2x1x32xf32> to vector<2x32xf32>
    %77 = arith.mulf %66, %58 : vector<2x32xf32>
    %78 = arith.addf %76, %77 : vector<2x32xf32>
    %79 = math.tanh %78 : vector<2x32xf32>
    %80 = arith.subf %53, %79 : vector<2x32xf32>
    %81 = arith.mulf %74, %80 : vector<2x32xf32>
    %82 = arith.addf %79, %81 : vector<2x32xf32>
    %cst_58 = arith.constant dense<0.000000e+00> : vector<2x32xf32>
    %83 = tpu.matmul %82, %47, %cst_58 {dimension_numbers = #tpu.dot_dimension_numbers<[1], [0], [0], [1], [0, 0, 1, 1], [], []>} : vector<2x32xf32>, vector<32x32xf32>, vector<2x32xf32> -> vector<2x32xf32>
    %cst_59 = arith.constant dense<0.000000e+00> : vector<2x32xf32>
    %84 = tpu.matmul %82, %49, %cst_59 {dimension_numbers = #tpu.dot_dimension_numbers<[1], [0], [0], [1], [0, 0, 1, 1], [], []>} : vector<2x32xf32>, vector<32x32xf32>, vector<2x32xf32> -> vector<2x32xf32>
    %cst_60 = arith.constant dense<0.000000e+00> : vector<2x32xf32>
    %85 = tpu.matmul %82, %51, %cst_60 {dimension_numbers = #tpu.dot_dimension_numbers<[1], [0], [0], [1], [0, 0, 1, 1], [], []>} : vector<2x32xf32>, vector<32x32xf32>, vector<2x32xf32> -> vector<2x32xf32>
    %86 = vector.broadcast %52 : vector<1x32xf32> to vector<2x32xf32>
    %87 = arith.addf %85, %86 : vector<2x32xf32>
    %88 = vector.extract_strided_slice %29 {offsets = [0, 1, 0], sizes = [2, 1, 32], strides = [1, 1, 1]} : vector<2x8x32xf32> to vector<2x1x32xf32>
    %89 = vector.shape_cast %88 : vector<2x1x32xf32> to vector<2x32xf32>
    %90 = arith.addf %89, %83 : vector<2x32xf32>
    %91 = arith.negf %90 : vector<2x32xf32>
    %92 = math.exp %91 : vector<2x32xf32>
    %cst_61 = arith.constant 1.000000e+00 : f32
    %93 = vector.broadcast %cst_61 : f32 to vector<2x32xf32>
    %94 = arith.addf %93, %92 : vector<2x32xf32>
    %95 = arith.divf %93, %94 : vector<2x32xf32>
    %96 = vector.extract_strided_slice %37 {offsets = [0, 1, 0], sizes = [2, 1, 32], strides = [1, 1, 1]} : vector<2x8x32xf32> to vector<2x1x32xf32>
    %97 = vector.shape_cast %96 : vector<2x1x32xf32> to vector<2x32xf32>
    %98 = arith.addf %97, %84 : vector<2x32xf32>
    %99 = arith.negf %98 : vector<2x32xf32>
    %100 = math.exp %99 : vector<2x32xf32>
    %cst_62 = arith.constant 1.000000e+00 : f32
    %101 = vector.broadcast %cst_62 : f32 to vector<2x32xf32>
    %102 = arith.addf %101, %100 : vector<2x32xf32>
    %103 = arith.divf %101, %102 : vector<2x32xf32>
    %104 = vector.extract_strided_slice %45 {offsets = [0, 1, 0], sizes = [2, 1, 32], strides = [1, 1, 1]} : vector<2x8x32xf32> to vector<2x1x32xf32>
    %105 = vector.shape_cast %104 : vector<2x1x32xf32> to vector<2x32xf32>
    %106 = arith.mulf %95, %87 : vector<2x32xf32>
    %107 = arith.addf %105, %106 : vector<2x32xf32>
    %108 = math.tanh %107 : vector<2x32xf32>
    %109 = arith.subf %82, %108 : vector<2x32xf32>
    %110 = arith.mulf %103, %109 : vector<2x32xf32>
    %111 = arith.addf %108, %110 : vector<2x32xf32>
    %cst_63 = arith.constant dense<0.000000e+00> : vector<2x32xf32>
    %112 = tpu.matmul %111, %47, %cst_63 {dimension_numbers = #tpu.dot_dimension_numbers<[1], [0], [0], [1], [0, 0, 1, 1], [], []>} : vector<2x32xf32>, vector<32x32xf32>, vector<2x32xf32> -> vector<2x32xf32>
    %cst_64 = arith.constant dense<0.000000e+00> : vector<2x32xf32>
    %113 = tpu.matmul %111, %49, %cst_64 {dimension_numbers = #tpu.dot_dimension_numbers<[1], [0], [0], [1], [0, 0, 1, 1], [], []>} : vector<2x32xf32>, vector<32x32xf32>, vector<2x32xf32> -> vector<2x32xf32>
    %cst_65 = arith.constant dense<0.000000e+00> : vector<2x32xf32>
    %114 = tpu.matmul %111, %51, %cst_65 {dimension_numbers = #tpu.dot_dimension_numbers<[1], [0], [0], [1], [0, 0, 1, 1], [], []>} : vector<2x32xf32>, vector<32x32xf32>, vector<2x32xf32> -> vector<2x32xf32>
    %115 = vector.broadcast %52 : vector<1x32xf32> to vector<2x32xf32>
    %116 = arith.addf %114, %115 : vector<2x32xf32>
    %117 = vector.extract_strided_slice %29 {offsets = [0, 2, 0], sizes = [2, 1, 32], strides = [1, 1, 1]} : vector<2x8x32xf32> to vector<2x1x32xf32>
    %118 = vector.shape_cast %117 : vector<2x1x32xf32> to vector<2x32xf32>
    %119 = arith.addf %118, %112 : vector<2x32xf32>
    %120 = arith.negf %119 : vector<2x32xf32>
    %121 = math.exp %120 : vector<2x32xf32>
    %cst_66 = arith.constant 1.000000e+00 : f32
    %122 = vector.broadcast %cst_66 : f32 to vector<2x32xf32>
    %123 = arith.addf %122, %121 : vector<2x32xf32>
    %124 = arith.divf %122, %123 : vector<2x32xf32>
    %125 = vector.extract_strided_slice %37 {offsets = [0, 2, 0], sizes = [2, 1, 32], strides = [1, 1, 1]} : vector<2x8x32xf32> to vector<2x1x32xf32>
    %126 = vector.shape_cast %125 : vector<2x1x32xf32> to vector<2x32xf32>
    %127 = arith.addf %126, %113 : vector<2x32xf32>
    %128 = arith.negf %127 : vector<2x32xf32>
    %129 = math.exp %128 : vector<2x32xf32>
    %cst_67 = arith.constant 1.000000e+00 : f32
    %130 = vector.broadcast %cst_67 : f32 to vector<2x32xf32>
    %131 = arith.addf %130, %129 : vector<2x32xf32>
    %132 = arith.divf %130, %131 : vector<2x32xf32>
    %133 = vector.extract_strided_slice %45 {offsets = [0, 2, 0], sizes = [2, 1, 32], strides = [1, 1, 1]} : vector<2x8x32xf32> to vector<2x1x32xf32>
    %134 = vector.shape_cast %133 : vector<2x1x32xf32> to vector<2x32xf32>
    %135 = arith.mulf %124, %116 : vector<2x32xf32>
    %136 = arith.addf %134, %135 : vector<2x32xf32>
    %137 = math.tanh %136 : vector<2x32xf32>
    %138 = arith.subf %111, %137 : vector<2x32xf32>
    %139 = arith.mulf %132, %138 : vector<2x32xf32>
    %140 = arith.addf %137, %139 : vector<2x32xf32>
    %cst_68 = arith.constant dense<0.000000e+00> : vector<2x32xf32>
    %141 = tpu.matmul %140, %47, %cst_68 {dimension_numbers = #tpu.dot_dimension_numbers<[1], [0], [0], [1], [0, 0, 1, 1], [], []>} : vector<2x32xf32>, vector<32x32xf32>, vector<2x32xf32> -> vector<2x32xf32>
    %cst_69 = arith.constant dense<0.000000e+00> : vector<2x32xf32>
    %142 = tpu.matmul %140, %49, %cst_69 {dimension_numbers = #tpu.dot_dimension_numbers<[1], [0], [0], [1], [0, 0, 1, 1], [], []>} : vector<2x32xf32>, vector<32x32xf32>, vector<2x32xf32> -> vector<2x32xf32>
    %cst_70 = arith.constant dense<0.000000e+00> : vector<2x32xf32>
    %143 = tpu.matmul %140, %51, %cst_70 {dimension_numbers = #tpu.dot_dimension_numbers<[1], [0], [0], [1], [0, 0, 1, 1], [], []>} : vector<2x32xf32>, vector<32x32xf32>, vector<2x32xf32> -> vector<2x32xf32>
    %144 = vector.broadcast %52 : vector<1x32xf32> to vector<2x32xf32>
    %145 = arith.addf %143, %144 : vector<2x32xf32>
    %146 = vector.extract_strided_slice %29 {offsets = [0, 3, 0], sizes = [2, 1, 32], strides = [1, 1, 1]} : vector<2x8x32xf32> to vector<2x1x32xf32>
    %147 = vector.shape_cast %146 : vector<2x1x32xf32> to vector<2x32xf32>
    %148 = arith.addf %147, %141 : vector<2x32xf32>
    %149 = arith.negf %148 : vector<2x32xf32>
    %150 = math.exp %149 : vector<2x32xf32>
    %cst_71 = arith.constant 1.000000e+00 : f32
    %151 = vector.broadcast %cst_71 : f32 to vector<2x32xf32>
    %152 = arith.addf %151, %150 : vector<2x32xf32>
    %153 = arith.divf %151, %152 : vector<2x32xf32>
    %154 = vector.extract_strided_slice %37 {offsets = [0, 3, 0], sizes = [2, 1, 32], strides = [1, 1, 1]} : vector<2x8x32xf32> to vector<2x1x32xf32>
    %155 = vector.shape_cast %154 : vector<2x1x32xf32> to vector<2x32xf32>
    %156 = arith.addf %155, %142 : vector<2x32xf32>
    %157 = arith.negf %156 : vector<2x32xf32>
    %158 = math.exp %157 : vector<2x32xf32>
    %cst_72 = arith.constant 1.000000e+00 : f32
    %159 = vector.broadcast %cst_72 : f32 to vector<2x32xf32>
    %160 = arith.addf %159, %158 : vector<2x32xf32>
    %161 = arith.divf %159, %160 : vector<2x32xf32>
    %162 = vector.extract_strided_slice %45 {offsets = [0, 3, 0], sizes = [2, 1, 32], strides = [1, 1, 1]} : vector<2x8x32xf32> to vector<2x1x32xf32>
    %163 = vector.shape_cast %162 : vector<2x1x32xf32> to vector<2x32xf32>
    %164 = arith.mulf %153, %145 : vector<2x32xf32>
    %165 = arith.addf %163, %164 : vector<2x32xf32>
    %166 = math.tanh %165 : vector<2x32xf32>
    %167 = arith.subf %140, %166 : vector<2x32xf32>
    %168 = arith.mulf %161, %167 : vector<2x32xf32>
    %169 = arith.addf %166, %168 : vector<2x32xf32>
    %cst_73 = arith.constant dense<0.000000e+00> : vector<2x32xf32>
    %170 = tpu.matmul %169, %47, %cst_73 {dimension_numbers = #tpu.dot_dimension_numbers<[1], [0], [0], [1], [0, 0, 1, 1], [], []>} : vector<2x32xf32>, vector<32x32xf32>, vector<2x32xf32> -> vector<2x32xf32>
    %cst_74 = arith.constant dense<0.000000e+00> : vector<2x32xf32>
    %171 = tpu.matmul %169, %49, %cst_74 {dimension_numbers = #tpu.dot_dimension_numbers<[1], [0], [0], [1], [0, 0, 1, 1], [], []>} : vector<2x32xf32>, vector<32x32xf32>, vector<2x32xf32> -> vector<2x32xf32>
    %cst_75 = arith.constant dense<0.000000e+00> : vector<2x32xf32>
    %172 = tpu.matmul %169, %51, %cst_75 {dimension_numbers = #tpu.dot_dimension_numbers<[1], [0], [0], [1], [0, 0, 1, 1], [], []>} : vector<2x32xf32>, vector<32x32xf32>, vector<2x32xf32> -> vector<2x32xf32>
    %173 = vector.broadcast %52 : vector<1x32xf32> to vector<2x32xf32>
    %174 = arith.addf %172, %173 : vector<2x32xf32>
    %175 = vector.extract_strided_slice %29 {offsets = [0, 4, 0], sizes = [2, 1, 32], strides = [1, 1, 1]} : vector<2x8x32xf32> to vector<2x1x32xf32>
    %176 = vector.shape_cast %175 : vector<2x1x32xf32> to vector<2x32xf32>
    %177 = arith.addf %176, %170 : vector<2x32xf32>
    %178 = arith.negf %177 : vector<2x32xf32>
    %179 = math.exp %178 : vector<2x32xf32>
    %cst_76 = arith.constant 1.000000e+00 : f32
    %180 = vector.broadcast %cst_76 : f32 to vector<2x32xf32>
    %181 = arith.addf %180, %179 : vector<2x32xf32>
    %182 = arith.divf %180, %181 : vector<2x32xf32>
    %183 = vector.extract_strided_slice %37 {offsets = [0, 4, 0], sizes = [2, 1, 32], strides = [1, 1, 1]} : vector<2x8x32xf32> to vector<2x1x32xf32>
    %184 = vector.shape_cast %183 : vector<2x1x32xf32> to vector<2x32xf32>
    %185 = arith.addf %184, %171 : vector<2x32xf32>
    %186 = arith.negf %185 : vector<2x32xf32>
    %187 = math.exp %186 : vector<2x32xf32>
    %cst_77 = arith.constant 1.000000e+00 : f32
    %188 = vector.broadcast %cst_77 : f32 to vector<2x32xf32>
    %189 = arith.addf %188, %187 : vector<2x32xf32>
    %190 = arith.divf %188, %189 : vector<2x32xf32>
    %191 = vector.extract_strided_slice %45 {offsets = [0, 4, 0], sizes = [2, 1, 32], strides = [1, 1, 1]} : vector<2x8x32xf32> to vector<2x1x32xf32>
    %192 = vector.shape_cast %191 : vector<2x1x32xf32> to vector<2x32xf32>
    %193 = arith.mulf %182, %174 : vector<2x32xf32>
    %194 = arith.addf %192, %193 : vector<2x32xf32>
    %195 = math.tanh %194 : vector<2x32xf32>
    %196 = arith.subf %169, %195 : vector<2x32xf32>
    %197 = arith.mulf %190, %196 : vector<2x32xf32>
    %198 = arith.addf %195, %197 : vector<2x32xf32>
    %cst_78 = arith.constant dense<0.000000e+00> : vector<2x32xf32>
    %199 = tpu.matmul %198, %47, %cst_78 {dimension_numbers = #tpu.dot_dimension_numbers<[1], [0], [0], [1], [0, 0, 1, 1], [], []>} : vector<2x32xf32>, vector<32x32xf32>, vector<2x32xf32> -> vector<2x32xf32>
    %cst_79 = arith.constant dense<0.000000e+00> : vector<2x32xf32>
    %200 = tpu.matmul %198, %49, %cst_79 {dimension_numbers = #tpu.dot_dimension_numbers<[1], [0], [0], [1], [0, 0, 1, 1], [], []>} : vector<2x32xf32>, vector<32x32xf32>, vector<2x32xf32> -> vector<2x32xf32>
    %cst_80 = arith.constant dense<0.000000e+00> : vector<2x32xf32>
    %201 = tpu.matmul %198, %51, %cst_80 {dimension_numbers = #tpu.dot_dimension_numbers<[1], [0], [0], [1], [0, 0, 1, 1], [], []>} : vector<2x32xf32>, vector<32x32xf32>, vector<2x32xf32> -> vector<2x32xf32>
    %202 = vector.broadcast %52 : vector<1x32xf32> to vector<2x32xf32>
    %203 = arith.addf %201, %202 : vector<2x32xf32>
    %204 = vector.extract_strided_slice %29 {offsets = [0, 5, 0], sizes = [2, 1, 32], strides = [1, 1, 1]} : vector<2x8x32xf32> to vector<2x1x32xf32>
    %205 = vector.shape_cast %204 : vector<2x1x32xf32> to vector<2x32xf32>
    %206 = arith.addf %205, %199 : vector<2x32xf32>
    %207 = arith.negf %206 : vector<2x32xf32>
    %208 = math.exp %207 : vector<2x32xf32>
    %cst_81 = arith.constant 1.000000e+00 : f32
    %209 = vector.broadcast %cst_81 : f32 to vector<2x32xf32>
    %210 = arith.addf %209, %208 : vector<2x32xf32>
    %211 = arith.divf %209, %210 : vector<2x32xf32>
    %212 = vector.extract_strided_slice %37 {offsets = [0, 5, 0], sizes = [2, 1, 32], strides = [1, 1, 1]} : vector<2x8x32xf32> to vector<2x1x32xf32>
    %213 = vector.shape_cast %212 : vector<2x1x32xf32> to vector<2x32xf32>
    %214 = arith.addf %213, %200 : vector<2x32xf32>
    %215 = arith.negf %214 : vector<2x32xf32>
    %216 = math.exp %215 : vector<2x32xf32>
    %cst_82 = arith.constant 1.000000e+00 : f32
    %217 = vector.broadcast %cst_82 : f32 to vector<2x32xf32>
    %218 = arith.addf %217, %216 : vector<2x32xf32>
    %219 = arith.divf %217, %218 : vector<2x32xf32>
    %220 = vector.extract_strided_slice %45 {offsets = [0, 5, 0], sizes = [2, 1, 32], strides = [1, 1, 1]} : vector<2x8x32xf32> to vector<2x1x32xf32>
    %221 = vector.shape_cast %220 : vector<2x1x32xf32> to vector<2x32xf32>
    %222 = arith.mulf %211, %203 : vector<2x32xf32>
    %223 = arith.addf %221, %222 : vector<2x32xf32>
    %224 = math.tanh %223 : vector<2x32xf32>
    %225 = arith.subf %198, %224 : vector<2x32xf32>
    %226 = arith.mulf %219, %225 : vector<2x32xf32>
    %227 = arith.addf %224, %226 : vector<2x32xf32>
    %cst_83 = arith.constant dense<0.000000e+00> : vector<2x32xf32>
    %228 = tpu.matmul %227, %47, %cst_83 {dimension_numbers = #tpu.dot_dimension_numbers<[1], [0], [0], [1], [0, 0, 1, 1], [], []>} : vector<2x32xf32>, vector<32x32xf32>, vector<2x32xf32> -> vector<2x32xf32>
    %cst_84 = arith.constant dense<0.000000e+00> : vector<2x32xf32>
    %229 = tpu.matmul %227, %49, %cst_84 {dimension_numbers = #tpu.dot_dimension_numbers<[1], [0], [0], [1], [0, 0, 1, 1], [], []>} : vector<2x32xf32>, vector<32x32xf32>, vector<2x32xf32> -> vector<2x32xf32>
    %cst_85 = arith.constant dense<0.000000e+00> : vector<2x32xf32>
    %230 = tpu.matmul %227, %51, %cst_85 {dimension_numbers = #tpu.dot_dimension_numbers<[1], [0], [0], [1], [0, 0, 1, 1], [], []>} : vector<2x32xf32>, vector<32x32xf32>, vector<2x32xf32> -> vector<2x32xf32>
    %231 = vector.broadcast %52 : vector<1x32xf32> to vector<2x32xf32>
    %232 = arith.addf %230, %231 : vector<2x32xf32>
    %233 = vector.extract_strided_slice %29 {offsets = [0, 6, 0], sizes = [2, 1, 32], strides = [1, 1, 1]} : vector<2x8x32xf32> to vector<2x1x32xf32>
    %234 = vector.shape_cast %233 : vector<2x1x32xf32> to vector<2x32xf32>
    %235 = arith.addf %234, %228 : vector<2x32xf32>
    %236 = arith.negf %235 : vector<2x32xf32>
    %237 = math.exp %236 : vector<2x32xf32>
    %cst_86 = arith.constant 1.000000e+00 : f32
    %238 = vector.broadcast %cst_86 : f32 to vector<2x32xf32>
    %239 = arith.addf %238, %237 : vector<2x32xf32>
    %240 = arith.divf %238, %239 : vector<2x32xf32>
    %241 = vector.extract_strided_slice %37 {offsets = [0, 6, 0], sizes = [2, 1, 32], strides = [1, 1, 1]} : vector<2x8x32xf32> to vector<2x1x32xf32>
    %242 = vector.shape_cast %241 : vector<2x1x32xf32> to vector<2x32xf32>
    %243 = arith.addf %242, %229 : vector<2x32xf32>
    %244 = arith.negf %243 : vector<2x32xf32>
    %245 = math.exp %244 : vector<2x32xf32>
    %cst_87 = arith.constant 1.000000e+00 : f32
    %246 = vector.broadcast %cst_87 : f32 to vector<2x32xf32>
    %247 = arith.addf %246, %245 : vector<2x32xf32>
    %248 = arith.divf %246, %247 : vector<2x32xf32>
    %249 = vector.extract_strided_slice %45 {offsets = [0, 6, 0], sizes = [2, 1, 32], strides = [1, 1, 1]} : vector<2x8x32xf32> to vector<2x1x32xf32>
    %250 = vector.shape_cast %249 : vector<2x1x32xf32> to vector<2x32xf32>
    %251 = arith.mulf %240, %232 : vector<2x32xf32>
    %252 = arith.addf %250, %251 : vector<2x32xf32>
    %253 = math.tanh %252 : vector<2x32xf32>
    %254 = arith.subf %227, %253 : vector<2x32xf32>
    %255 = arith.mulf %248, %254 : vector<2x32xf32>
    %256 = arith.addf %253, %255 : vector<2x32xf32>
    %cst_88 = arith.constant dense<0.000000e+00> : vector<2x32xf32>
    %257 = tpu.matmul %256, %47, %cst_88 {dimension_numbers = #tpu.dot_dimension_numbers<[1], [0], [0], [1], [0, 0, 1, 1], [], []>} : vector<2x32xf32>, vector<32x32xf32>, vector<2x32xf32> -> vector<2x32xf32>
    %cst_89 = arith.constant dense<0.000000e+00> : vector<2x32xf32>
    %258 = tpu.matmul %256, %49, %cst_89 {dimension_numbers = #tpu.dot_dimension_numbers<[1], [0], [0], [1], [0, 0, 1, 1], [], []>} : vector<2x32xf32>, vector<32x32xf32>, vector<2x32xf32> -> vector<2x32xf32>
    %cst_90 = arith.constant dense<0.000000e+00> : vector<2x32xf32>
    %259 = tpu.matmul %256, %51, %cst_90 {dimension_numbers = #tpu.dot_dimension_numbers<[1], [0], [0], [1], [0, 0, 1, 1], [], []>} : vector<2x32xf32>, vector<32x32xf32>, vector<2x32xf32> -> vector<2x32xf32>
    %260 = vector.broadcast %52 : vector<1x32xf32> to vector<2x32xf32>
    %261 = arith.addf %259, %260 : vector<2x32xf32>
    %262 = vector.extract_strided_slice %29 {offsets = [0, 7, 0], sizes = [2, 1, 32], strides = [1, 1, 1]} : vector<2x8x32xf32> to vector<2x1x32xf32>
    %263 = vector.shape_cast %262 : vector<2x1x32xf32> to vector<2x32xf32>
    %264 = arith.addf %263, %257 : vector<2x32xf32>
    %265 = arith.negf %264 : vector<2x32xf32>
    %266 = math.exp %265 : vector<2x32xf32>
    %cst_91 = arith.constant 1.000000e+00 : f32
    %267 = vector.broadcast %cst_91 : f32 to vector<2x32xf32>
    %268 = arith.addf %267, %266 : vector<2x32xf32>
    %269 = arith.divf %267, %268 : vector<2x32xf32>
    %270 = vector.extract_strided_slice %37 {offsets = [0, 7, 0], sizes = [2, 1, 32], strides = [1, 1, 1]} : vector<2x8x32xf32> to vector<2x1x32xf32>
    %271 = vector.shape_cast %270 : vector<2x1x32xf32> to vector<2x32xf32>
    %272 = arith.addf %271, %258 : vector<2x32xf32>
    %273 = arith.negf %272 : vector<2x32xf32>
    %274 = math.exp %273 : vector<2x32xf32>
    %cst_92 = arith.constant 1.000000e+00 : f32
    %275 = vector.broadcast %cst_92 : f32 to vector<2x32xf32>
    %276 = arith.addf %275, %274 : vector<2x32xf32>
    %277 = arith.divf %275, %276 : vector<2x32xf32>
    %278 = vector.extract_strided_slice %45 {offsets = [0, 7, 0], sizes = [2, 1, 32], strides = [1, 1, 1]} : vector<2x8x32xf32> to vector<2x1x32xf32>
    %279 = vector.shape_cast %278 : vector<2x1x32xf32> to vector<2x32xf32>
    %280 = arith.mulf %269, %261 : vector<2x32xf32>
    %281 = arith.addf %279, %280 : vector<2x32xf32>
    %282 = math.tanh %281 : vector<2x32xf32>
    %283 = arith.subf %256, %282 : vector<2x32xf32>
    %284 = arith.mulf %277, %283 : vector<2x32xf32>
    %285 = arith.addf %282, %284 : vector<2x32xf32>
    %c0_93 = arith.constant 0 : index
    %c0_94 = arith.constant 0 : index
    %286 = vector.load %arg8[%c0_93, %c0_94] : memref<32x4xf32, #tpu.memory_space<vmem>>, vector<32x4xf32>
    %cst_95 = arith.constant dense<0.000000e+00> : vector<2x4xf32>
    %287 = tpu.matmul %285, %286, %cst_95 {dimension_numbers = #tpu.dot_dimension_numbers<[1], [0], [0], [1], [0, 0, 1, 1], [], []>} : vector<2x32xf32>, vector<32x4xf32>, vector<2x4xf32> -> vector<2x4xf32>
    %c0_96 = arith.constant 0 : index
    %c0_97 = arith.constant 0 : index
    %288 = vector.load %arg9[%c0_96, %c0_97] : memref<1x4xf32, #tpu.memory_space<vmem>>, vector<1x4xf32>
    %289 = vector.broadcast %288 : vector<1x4xf32> to vector<2x4xf32>
    %290 = arith.addf %287, %289 : vector<2x4xf32>
    %291 = arith.negf %290 : vector<2x4xf32>
    %292 = math.exp %291 : vector<2x4xf32>
    %cst_98 = arith.constant 1.000000e+00 : f32
    %293 = vector.broadcast %cst_98 : f32 to vector<2x4xf32>
    %294 = arith.addf %293, %292 : vector<2x4xf32>
    %295 = arith.divf %293, %294 : vector<2x4xf32>
    %296 = vector.shape_cast %295 : vector<2x4xf32> to vector<2x1x4xf32>
    %c0_99 = arith.constant 0 : index
    %c0_100 = arith.constant 0 : index
    %c0_101 = arith.constant 0 : index
    %297 = vector.load %arg10[%c0_99, %c0_100, %c0_101] : memref<2x1x4xf32, #tpu.memory_space<vmem>>, vector<2x1x4xf32>
    tpu.vector_store %arg10[%c0_99, %c0_100, %c0_101], %296 {strides = array<i32>} : memref<2x1x4xf32, #tpu.memory_space<vmem>>, vector<2x1x4xf32>,
    return
  }
  func.func @transform_0(%arg0: i32) -> (i32, i32, i32) {
    %c0_i32 = arith.constant 0 : i32
    %c0_i32_0 = arith.constant 0 : i32
    %c0_i32_1 = arith.constant 0 : i32
    return %arg0, %c0_i32, %c0_i32_0 : i32, i32, i32
  }
  func.func @transform_1(%arg0: i32) -> (i32, i32, i32) {
    %c0_i32 = arith.constant 0 : i32
    %c0_i32_0 = arith.constant 0 : i32
    %c0_i32_1 = arith.constant 0 : i32
    %c0_i32_2 = arith.constant 0 : i32
    return %c0_i32, %c0_i32_0, %c0_i32_1 : i32, i32, i32
  }
  func.func @transform_2(%arg0: i32) -> (i32, i32) {
    %c0_i32 = arith.constant 0 : i32
    %c0_i32_0 = arith.constant 0 : i32
    %c0_i32_1 = arith.constant 0 : i32
    return %c0_i32, %c0_i32_0 : i32, i32
  }
  func.func @transform_3(%arg0: i32) -> (i32, i32, i32) {
    %c0_i32 = arith.constant 0 : i32
    %c0_i32_0 = arith.constant 0 : i32
    %c0_i32_1 = arith.constant 0 : i32
    %c0_i32_2 = arith.constant 0 : i32
    return %c0_i32, %c0_i32_0, %c0_i32_1 : i32, i32, i32
  }
  func.func @transform_4(%arg0: i32) -> (i32, i32, i32) {
    %c0_i32 = arith.constant 0 : i32
    %c0_i32_0 = arith.constant 0 : i32
    %c0_i32_1 = arith.constant 0 : i32
    %c0_i32_2 = arith.constant 0 : i32
    return %c0_i32, %c0_i32_0, %c0_i32_1 : i32, i32, i32
  }
  func.func @transform_5(%arg0: i32) -> (i32, i32, i32) {
    %c0_i32 = arith.constant 0 : i32
    %c0_i32_0 = arith.constant 0 : i32
    %c0_i32_1 = arith.constant 0 : i32
    %c0_i32_2 = arith.constant 0 : i32
    return %c0_i32, %c0_i32_0, %c0_i32_1 : i32, i32, i32
  }
  func.func @transform_6(%arg0: i32) -> (i32, i32) {
    %c0_i32 = arith.constant 0 : i32
    %c0_i32_0 = arith.constant 0 : i32
    %c0_i32_1 = arith.constant 0 : i32
    return %c0_i32, %c0_i32_0 : i32, i32
  }
  func.func @transform_7(%arg0: i32) -> (i32, i32) {
    %c0_i32 = arith.constant 0 : i32
    %c0_i32_0 = arith.constant 0 : i32
    %c0_i32_1 = arith.constant 0 : i32
    return %c0_i32, %c0_i32_0 : i32, i32
  }
  func.func @transform_8(%arg0: i32) -> (i32, i32) {
    %c0_i32 = arith.constant 0 : i32
    %c0_i32_0 = arith.constant 0 : i32
    %c0_i32_1 = arith.constant 0 : i32
    return %c0_i32, %c0_i32_0 : i32, i32
  }
  func.func @transform_9(%arg0: i32) -> (i32, i32, i32) {
    %c0_i32 = arith.constant 0 : i32
    %c0_i32_0 = arith.constant 0 : i32
    %c0_i32_1 = arith.constant 0 : i32
    return %arg0, %c0_i32, %c0_i32_0 : i32, i32, i32
  }
}

</mosaic_0001>

<llo_original>
// kernel: tpu_custom_call.1
$region0: #{tpu_custom_call.1}
  #allocation0 [shape = 'u32[]', space=smem, size = 0x4, offset = 0x4, fixed_abs, tag = 'smem constant byte address 0x4 - core index']
  #allocation1 [shape = 'u32[144,128]{1,0:T(1,128)}', space=vmem, size = 0x12000, scoped, tag = 'internal scratch']
  %s0 = inlined_call_operand.vmem [shape: f32[2,10,8], index: 0, kind: input, shape index: {}]
  %s1 = inlined_call_operand.hbm [shape: f32[3,8,16], index: 1, kind: input, shape index: {}]
  %s2 = inlined_call_operand.vmem [shape: f32[1,16], index: 2, kind: input, shape index: {}]
  %s3 = inlined_call_operand.hbm [shape: f32[3,16,32], index: 3, kind: input, shape index: {}]
  %s4 = inlined_call_operand.vmem [shape: f32[3,1,32], index: 4, kind: input, shape index: {}]
  %s5 = inlined_call_operand.vmem [shape: f32[3,32,32], index: 5, kind: input, shape index: {}]
  %s6 = inlined_call_operand.vmem [shape: f32[1,32], index: 6, kind: input, shape index: {}]
  %s7 = inlined_call_operand.vmem [shape: f32[32,4], index: 7, kind: input, shape index: {}]
  %s8 = inlined_call_operand.vmem [shape: f32[1,4], index: 8, kind: input, shape index: {}]
  %s9 = inlined_call_operand.hbm [shape: f32[2,1,4], index: 9, kind: output, shape index: {}]
  %s10 = sld [smem:[#allocation0]]
  $region54: #{tpu_custom_call.1} parent=0
    _
  %s12 = ssub.s32 1, %s10
  %s13 = scalar_select 0, %s12, %s10
  $region1: #{tpu_custom_call.1} parent=0
    #allocation2 [shape = 'u8[12288]{0}', space=vmem, size = 0x3000, scoped, tag = 'input window, operand 1, single buffered']
    #allocation3 [shape = 's32[1]{0}', space=sflag, size = 0x4, scoped, tag = 'scoped memory for tpu_custom_call.1']
    #allocation4 [shape = 's32[1]{0}', space=sflag, size = 0x4, scoped, tag = 'scoped memory for tpu_custom_call.1']
    #allocation5 [shape = 'u8[24576]{0}', space=vmem, size = 0x6000, scoped, tag = 'input window, operand 3, single buffered']
    #allocation6 [shape = 's32[1]{0}', space=sflag, size = 0x4, scoped, tag = 'scoped memory for tpu_custom_call.1']
    #allocation7 [shape = 'u8[1024]{0}', space=vmem, size = 0x400, scoped, tag = 'output window, operand 0, single buffered']
    %14 = vsyncpa [#allocation3], 0
    %15 = vsyncpa [#allocation6], 0
    %16 = vsyncpa [#allocation4], 0
    // Predicated region
    $region2: #{tpu_custom_call.1} parent=1 // pred_check
      _
    $region3: #{tpu_custom_call.1} parent=1 // pred_check_branch
      %18 = sbr.rel (0) target = $region5
    $region4: #{tpu_custom_call.1} parent=1 // pred_region
      _
    $region5: #{tpu_custom_call.1} parent=1 // pred_fallthru
      _
    // Predicated region
    $region6: #{tpu_custom_call.1} parent=1 // pred_check
      _
    $region7: #{tpu_custom_call.1} parent=1 // pred_check_branch
      %20 = sbr.rel (0) target = $region9
    $region8: #{tpu_custom_call.1} parent=1 // pred_region
      %s22 = ssub.s32 384, 384
      %23 = vsyncadd [#allocation3], %s22
      %s24 = sshll.u32 [#allocation2], 4
      %s25 = int_to_ptr.vmem [resolvable:$true] %s24
      %30 = dma.hbm_to_vmem [thread:$0]  %s1, 384, %s25, [#allocation3], 128, 128, 8
    $region9: #{tpu_custom_call.1} parent=1 // pred_fallthru
      _
    // Predicated region
    $region10: #{tpu_custom_call.1} parent=1 // pred_check
      _
    $region11: #{tpu_custom_call.1} parent=1 // pred_check_branch
      %32 = sbr.rel (0) target = $region13
    $region12: #{tpu_custom_call.1} parent=1 // pred_region
      _
    $region13: #{tpu_custom_call.1} parent=1 // pred_fallthru
      _
    // Predicated region
    $region14: #{tpu_custom_call.1} parent=1 // pred_check
      _
    $region15: #{tpu_custom_call.1} parent=1 // pred_check_branch
      %34 = sbr.rel (0) target = $region17
    $region16: #{tpu_custom_call.1} parent=1 // pred_region
      %s36 = ssub.s32 768, 768
      %37 = vsyncadd [#allocation6], %s36
      %s38 = sshll.u32 [#allocation5], 4
      %s39 = int_to_ptr.vmem [resolvable:$true] %s38
      %44 = dma.hbm_to_vmem [thread:$0]  %s3, 768, %s39, [#allocation6], 128, 128, 8
    $region17: #{tpu_custom_call.1} parent=1 // pred_fallthru
      _
    // Predicated region
    $region18: #{tpu_custom_call.1} parent=1 // pred_check
      _
    $region19: #{tpu_custom_call.1} parent=1 // pred_check_branch
      %46 = sbr.rel (0) target = $region21
    $region20: #{tpu_custom_call.1} parent=1 // pred_region
      _
    $region21: #{tpu_custom_call.1} parent=1 // pred_fallthru
      _
    // Predicated region
    $region22: #{tpu_custom_call.1} parent=1 // pred_check
      _
    $region23: #{tpu_custom_call.1} parent=1 // pred_check_branch
      %48 = sbr.rel (0) target = $region25
    $region24: #{tpu_custom_call.1} parent=1 // pred_region
      _
    $region25: #{tpu_custom_call.1} parent=1 // pred_fallthru
      _
    // Predicated region
    $region26: #{tpu_custom_call.1} parent=1 // pred_check
      _
    $region27: #{tpu_custom_call.1} parent=1 // pred_check_branch
      %50 = sbr.rel (0) target = $region29
    $region28: #{tpu_custom_call.1} parent=1 // pred_region
      _
    $region29: #{tpu_custom_call.1} parent=1 // pred_fallthru
      _
    // Predicated region
    $region30: #{tpu_custom_call.1} parent=1 // pred_check
      _
    $region31: #{tpu_custom_call.1} parent=1 // pred_check_branch
      %52 = sbr.rel (0) target = $region33
    $region32: #{tpu_custom_call.1} parent=1 // pred_region
      _
    $region33: #{tpu_custom_call.1} parent=1 // pred_fallthru
      _
    // Predicated region
    $region34: #{tpu_custom_call.1} parent=1 // pred_check
      _
    $region35: #{tpu_custom_call.1} parent=1 // pred_check_branch
      %54 = sbr.rel (0) target = $region37
    $region36: #{tpu_custom_call.1} parent=1 // pred_region
      _
    $region37: #{tpu_custom_call.1} parent=1 // pred_fallthru
      _
    // Predicated region
    $region38: #{tpu_custom_call.1} parent=1 // pred_check
      _
    $region39: #{tpu_custom_call.1} parent=1 // pred_check_branch
      %56 = sbr.rel (0) target = $region41
    $region40: #{tpu_custom_call.1} parent=1 // pred_region
      %57 = dma.done [#allocation3], 384
    $region41: #{tpu_custom_call.1} parent=1 // pred_fallthru
      _
    // Predicated region
    $region42: #{tpu_custom_call.1} parent=1 // pred_check
      _
    $region43: #{tpu_custom_call.1} parent=1 // pred_check_branch
      %59 = sbr.rel (0) target = $region45
    $region44: #{tpu_custom_call.1} parent=1 // pred_region
      %60 = dma.done [#allocation6], 768
    $region45: #{tpu_custom_call.1} parent=1 // pred_fallthru
      _
    %v61 = vld [vmem:[%s0] sm:$0xff]
    %v62 = vld [vmem:[%s0 + $0x10] sm:$0xff]
    %v63 = vld [vmem:[#allocation2] sm:$0xff]
    %v64 = vld [vmem:[%s0 + $0x1] sm:$0xff]
    %v65 = vld [vmem:[%s0 + $0x11] sm:$0xff]
    %s66 = scalar_lea.vmem [#allocation2], 8
    %v67 = vld [vmem:[%s66] sm:$0xff]
    %vm68 = vcmask 64512
    %v70 = vsel %vm68, %v64, 0
    %v73 = vsel %vm68, %v65, 0
    %75 = vmatprep.subr.mxu0 0.0
    %76 = vmatpush1.msra.mxu0 %v67
    %77 = vmatprep.subr.mxu0 0.0
    %78 = vmatpush1.msra.mxu0 0.0
    %79 = vmatprep.subr.mxu0 0.0
    %80 = vmatpush1.msra.mxu0 0.0
    %81 = vmatprep.subr.mxu0 0.0
    %82 = vmatpush1.msra.mxu0 0.0
    %83 = vmatprep.subr.mxu0 0.0
    %84 = vmatpush1.msra.mxu0 0.0
    %85 = vmatprep.subr.mxu0 0.0
    %86 = vmatpush1.msra.mxu0 0.0
    %87 = vmatprep.subr.mxu0 0.0
    %88 = vmatpush1.msra.mxu0 0.0
    %89 = vmatprep.subr.mxu0 0.0
    %90 = vmatpush1.msra.mxu0 0.0
    %91 = vmatprep.subr.mxu0 0.0
    %92 = vmatpush1.msra.mxu0 0.0
    %93 = vmatprep.subr.mxu0 0.0
    %94 = vmatpush1.msra.mxu0 0.0
    %95 = vmatprep.subr.mxu0 0.0
    %96 = vmatpush1.msra.mxu0 0.0
    %97 = vmatprep.subr.mxu0 0.0
    %98 = vmatpush1.msra.mxu0 0.0
    %99 = vmatprep.subr.mxu0 0.0
    %100 = vmatpush1.msra.mxu0 0.0
    %101 = vmatprep.subr.mxu0 0.0
    %102 = vmatpush1.msra.mxu0 0.0
    %103 = vmatprep.subr.mxu0 0.0
    %104 = vmatpush1.msra.mxu0 0.0
    %105 = vmatprep.subr.mxu0 0.0
    %106 = vmatpush1.msra.mxu0 0.0
    %107 = vmatprep.subr.mxu0 0.0
    %108 = vmatpush1.msra.mxu0 0.0
    %109 = vmatprep.subr.mxu0 0.0
    %110 = vmatpush1.msra.mxu0 0.0
    %111 = vmatprep.subr.mxu0 0.0
    %112 = vmatpush1.msra.mxu0 0.0
    %113 = vmatprep.subr.mxu0 0.0
    %114 = vmatpush1.msra.mxu0 0.0
    %115 = vmatprep.subr.mxu0 0.0
    %116 = vmatpush1.msra.mxu0 0.0
    %117 = vmatprep.subr.mxu0 0.0
    %118 = vmatpush1.msra.mxu0 0.0
    %119 = vmatprep.subr.mxu0 0.0
    %120 = vmatpush1.msra.mxu0 0.0
    %121 = vmatprep.subr.mxu0 0.0
    %122 = vmatpush1.msra.mxu0 0.0
    %123 = vmatprep.subr.mxu0 0.0
    %124 = vmatpush1.msra.mxu0 0.0
    %125 = vmatprep.subr.mxu0 0.0
    %126 = vmatpush1.msra.mxu0 0.0
    %127 = vmatprep.subr.mxu0 0.0
    %128 = vmatpush1.msra.mxu0 0.0
    %129 = vmatprep.subr.mxu0 0.0
    %130 = vmatpush1.msra.mxu0 0.0
    %131 = vmatprep.subr.mxu0 0.0
    %132 = vmatpush1.msra.mxu0 0.0
    %133 = vmatprep.subr.mxu0 0.0
    %134 = vmatpush1.msra.mxu0 0.0
    %135 = vmatprep.subr.mxu0 0.0
    %136 = vmatpush1.msra.mxu0 0.0
    %137 = vmatprep.subr.mxu0 0.0
    %138 = vmatpush1.msra.mxu0 0.0
    %139 = vmatprep.mubr.f32.mxu0 0.0
    %140 = vmatmul.mubr.f32.gmra.mrb[0].mxu0 %v70
    %v141 = vpop.f32.mrb[0].mxu0
    %v142 = vadd.f32 0.0, %v141
    %v143 = vpop.f32.mrb[0].mxu0
    %144 = vmatprep.mubr.f32.mxu0 0.0
    %145 = vmatmul.mubr.f32.gmra.mrb[0].mxu0 %v73
    %v146 = vpop.f32.mrb[0].mxu0
    %v147 = vadd.f32 0.0, %v146
    %v148 = vpop.f32.mrb[0].mxu0
    %149 = vdwg.mxu0
    %v151 = vsel %vm68, %v61, 0
    %v154 = vsel %vm68, %v62, 0
    %156 = vmatprep.subr.mxu0 0.0
    %157 = vmatpush1.msra.mxu0 %v63
    %158 = vmatprep.subr.mxu0 0.0
    %159 = vmatpush1.msra.mxu0 0.0
    %160 = vmatprep.subr.mxu0 0.0
    %161 = vmatpush1.msra.mxu0 0.0
    %162 = vmatprep.subr.mxu0 0.0
    %163 = vmatpush1.msra.mxu0 0.0
    %164 = vmatprep.subr.mxu0 0.0
    %165 = vmatpush1.msra.mxu0 0.0
    %166 = vmatprep.subr.mxu0 0.0
    %167 = vmatpush1.msra.mxu0 0.0
    %168 = vmatprep.subr.mxu0 0.0
    %169 = vmatpush1.msra.mxu0 0.0
    %170 = vmatprep.subr.mxu0 0.0
    %171 = vmatpush1.msra.mxu0 0.0
    %172 = vmatprep.subr.mxu0 0.0
    %173 = vmatpush1.msra.mxu0 0.0
    %174 = vmatprep.subr.mxu0 0.0
    %175 = vmatpush1.msra.mxu0 0.0
    %176 = vmatprep.subr.mxu0 0.0
    %177 = vmatpush1.msra.mxu0 0.0
    %178 = vmatprep.subr.mxu0 0.0
    %179 = vmatpush1.msra.mxu0 0.0
    %180 = vmatprep.subr.mxu0 0.0
    %181 = vmatpush1.msra.mxu0 0.0
    %182 = vmatprep.subr.mxu0 0.0
    %183 = vmatpush1.msra.mxu0 0.0
    %184 = vmatprep.subr.mxu0 0.0
    %185 = vmatpush1.msra.mxu0 0.0
    %186 = vmatprep.subr.mxu0 0.0
    %187 = vmatpush1.msra.mxu0 0.0
    %188 = vmatprep.subr.mxu0 0.0
    %189 = vmatpush1.msra.mxu0 0.0
    %190 = vmatprep.subr.mxu0 0.0
    %191 = vmatpush1.msra.mxu0 0.0
    %192 = vmatprep.subr.mxu0 0.0
    %193 = vmatpush1.msra.mxu0 0.0
    %194 = vmatprep.subr.mxu0 0.0
    %195 = vmatpush1.msra.mxu0 0.0
    %196 = vmatprep.subr.mxu0 0.0
    %197 = vmatpush1.msra.mxu0 0.0
    %198 = vmatprep.subr.mxu0 0.0
    %199 = vmatpush1.msra.mxu0 0.0
    %200 = vmatprep.subr.mxu0 0.0
    %201 = vmatpush1.msra.mxu0 0.0
    %202 = vmatprep.subr.mxu0 0.0
    %203 = vmatpush1.msra.mxu0 0.0
    %204 = vmatprep.subr.mxu0 0.0
    %205 = vmatpush1.msra.mxu0 0.0
    %206 = vmatprep.subr.mxu0 0.0
    %207 = vmatpush1.msra.mxu0 0.0
    %208 = vmatprep.subr.mxu0 0.0
    %209 = vmatpush1.msra.mxu0 0.0
    %210 = vmatprep.subr.mxu0 0.0
    %211 = vmatpush1.msra.mxu0 0.0
    %212 = vmatprep.subr.mxu0 0.0
    %213 = vmatpush1.msra.mxu0 0.0
    %214 = vmatprep.subr.mxu0 0.0
    %215 = vmatpush1.msra.mxu0 0.0
    %216 = vmatprep.subr.mxu0 0.0
    %217 = vmatpush1.msra.mxu0 0.0
    %218 = vmatprep.subr.mxu0 0.0
    %219 = vmatpush1.msra.mxu0 0.0
    %220 = vmatprep.mubr.f32.mxu0 0.0
    %221 = vmatmul.mubr.f32.gmra.mrb[0].mxu0 %v151
    %v222 = vpop.f32.mrb[0].mxu0
    %v223 = vadd.f32 %v142, %v222
    %v224 = vpop.f32.mrb[0].mxu0
    %225 = vmatprep.mubr.f32.mxu0 0.0
    %226 = vmatmul.mubr.f32.gmra.mrb[0].mxu0 %v154
    %v227 = vpop.f32.mrb[0].mxu0
    %v228 = vadd.f32 %v147, %v227
    %v229 = vpop.f32.mrb[0].mxu0
    %230 = vdwg.mxu0
    %v231 = vld [vmem:[%s0 + $0x2] sm:$0xff]
    %v232 = vld [vmem:[%s0 + $0x12] sm:$0xff]
    %s233 = scalar_lea.vmem [#allocation2], 16
    %v234 = vld [vmem:[%s233] sm:$0xff]
    %v236 = vsel %vm68, %v231, 0
    %v239 = vsel %vm68, %v232, 0
    %241 = vmatprep.subr.mxu0 0.0
    %242 = vmatpush1.msra.mxu0 %v234
    %243 = vmatprep.subr.mxu0 0.0
    %244 = vmatpush1.msra.mxu0 0.0
    %245 = vmatprep.subr.mxu0 0.0
    %246 = vmatpush1.msra.mxu0 0.0
    %247 = vmatprep.subr.mxu0 0.0
    %248 = vmatpush1.msra.mxu0 0.0
    %249 = vmatprep.subr.mxu0 0.0
    %250 = vmatpush1.msra.mxu0 0.0
    %251 = vmatprep.subr.mxu0 0.0
    %252 = vmatpush1.msra.mxu0 0.0
    %253 = vmatprep.subr.mxu0 0.0
    %254 = vmatpush1.msra.mxu0 0.0
    %255 = vmatprep.subr.mxu0 0.0
    %256 = vmatpush1.msra.mxu0 0.0
    %257 = vmatprep.subr.mxu0 0.0
    %258 = vmatpush1.msra.mxu0 0.0
    %259 = vmatprep.subr.mxu0 0.0
    %260 = vmatpush1.msra.mxu0 0.0
    %261 = vmatprep.subr.mxu0 0.0
    %262 = vmatpush1.msra.mxu0 0.0
    %263 = vmatprep.subr.mxu0 0.0
    %264 = vmatpush1.msra.mxu0 0.0
    %265 = vmatprep.subr.mxu0 0.0
    %266 = vmatpush1.msra.mxu0 0.0
    %267 = vmatprep.subr.mxu0 0.0
    %268 = vmatpush1.msra.mxu0 0.0
    %269 = vmatprep.subr.mxu0 0.0
    %270 = vmatpush1.msra.mxu0 0.0
    %271 = vmatprep.subr.mxu0 0.0
    %272 = vmatpush1.msra.mxu0 0.0
    %273 = vmatprep.subr.mxu0 0.0
    %274 = vmatpush1.msra.mxu0 0.0
    %275 = vmatprep.subr.mxu0 0.0
    %276 = vmatpush1.msra.mxu0 0.0
    %277 = vmatprep.subr.mxu0 0.0
    %278 = vmatpush1.msra.mxu0 0.0
    %279 = vmatprep.subr.mxu0 0.0
    %280 = vmatpush1.msra.mxu0 0.0
    %281 = vmatprep.subr.mxu0 0.0
    %282 = vmatpush1.msra.mxu0 0.0
    %283 = vmatprep.subr.mxu0 0.0
    %284 = vmatpush1.msra.mxu0 0.0
    %285 = vmatprep.subr.mxu0 0.0
    %286 = vmatpush1.msra.mxu0 0.0
    %287 = vmatprep.subr.mxu0 0.0
    %288 = vmatpush1.msra.mxu0 0.0
    %289 = vmatprep.subr.mxu0 0.0
    %290 = vmatpush1.msra.mxu0 0.0
    %291 = vmatprep.subr.mxu0 0.0
    %292 = vmatpush1.msra.mxu0 0.0
    %293 = vmatprep.subr.mxu0 0.0
    %294 = vmatpush1.msra.mxu0 0.0
    %295 = vmatprep.subr.mxu0 0.0
    %296 = vmatpush1.msra.mxu0 0.0
    %297 = vmatprep.subr.mxu0 0.0
    %298 = vmatpush1.msra.mxu0 0.0
    %299 = vmatprep.subr.mxu0 0.0
    %300 = vmatpush1.msra.mxu0 0.0
    %301 = vmatprep.subr.mxu0 0.0
    %302 = vmatpush1.msra.mxu0 0.0
    %303 = vmatprep.subr.mxu0 0.0
    %304 = vmatpush1.msra.mxu0 0.0
    %305 = vmatprep.mubr.f32.mxu0 0.0
    %306 = vmatmul.mubr.f32.gmra.mrb[0].mxu0 %v236
    %v307 = vpop.f32.mrb[0].mxu0
    %v308 = vadd.f32 0.0, %v307
    %v309 = vpop.f32.mrb[0].mxu0
    %310 = vmatprep.mubr.f32.mxu0 0.0
    %311 = vmatmul.mubr.f32.gmra.mrb[0].mxu0 %v239
    %v312 = vpop.f32.mrb[0].mxu0
    %v313 = vadd.f32 0.0, %v312
    %v314 = vpop.f32.mrb[0].mxu0
    %315 = vdwg.mxu0
    %v316 = vadd.f32 %v223, %v308
    %v317 = vadd.f32 %v228, %v313
    %v318 = vld [vmem:[%s2] sm:$0x1]
    %v320 = vlaneseq
    %v321 = vshrl.u32 %v320, 7
    %v322 = vsub.s32 0, %v321
    %v323 = vrot.slane %v318, %v322
    %v325 = vadd.f32 %v316, %v323
    %v326 = vadd.f32 %v317, %v323
    %v327 = vmax.f32 %v325, 0.0
    %v328 = vmax.f32 %v326, 0.0
    %v329 = vld [vmem:[#allocation5] sm:$0xff]
    %v330 = vld [vmem:[#allocation5 + $0x8] sm:$0xff]
    %v331 = vld [vmem:[%s4] sm:$0x1]
    %v333 = vlaneseq
    %v334 = vshrl.u32 %v333, 7
    %v335 = vsub.s32 0, %v334
    %v336 = vrot.slane %v331, %v335
    %vm338 = vcmask 130048
    %v340 = vsel %vm338, %v327, 0
    %v343 = vsel %vm338, %v328, 0
    %345 = vmatprep.subr.mxu0 0.0
    %346 = vmatpush1.msra.mxu0 %v329
    %347 = vmatprep.subr.mxu0 0.0
    %348 = vmatpush1.msra.mxu0 %v330
    %349 = vmatprep.subr.mxu0 0.0
    %350 = vmatpush1.msra.mxu0 0.0
    %351 = vmatprep.subr.mxu0 0.0
    %352 = vmatpush1.msra.mxu0 0.0
    %353 = vmatprep.subr.mxu0 0.0
    %354 = vmatpush1.msra.mxu0 0.0
    %355 = vmatprep.subr.mxu0 0.0
    %356 = vmatpush1.msra.mxu0 0.0
    %357 = vmatprep.subr.mxu0 0.0
    %358 = vmatpush1.msra.mxu0 0.0
    %359 = vmatprep.subr.mxu0 0.0
    %360 = vmatpush1.msra.mxu0 0.0
    %361 = vmatprep.subr.mxu0 0.0
    %362 = vmatpush1.msra.mxu0 0.0
    %363 = vmatprep.subr.mxu0 0.0
    %364 = vmatpush1.msra.mxu0 0.0
    %365 = vmatprep.subr.mxu0 0.0
    %366 = vmatpush1.msra.mxu0 0.0
    %367 = vmatprep.subr.mxu0 0.0
    %368 = vmatpush1.msra.mxu0 0.0
    %369 = vmatprep.subr.mxu0 0.0
    %370 = vmatpush1.msra.mxu0 0.0
    %371 = vmatprep.subr.mxu0 0.0
    %372 = vmatpush1.msra.mxu0 0.0
    %373 = vmatprep.subr.mxu0 0.0
    %374 = vmatpush1.msra.mxu0 0.0
    %375 = vmatprep.subr.mxu0 0.0
    %376 = vmatpush1.msra.mxu0 0.0
    %377 = vmatprep.subr.mxu0 0.0
    %378 = vmatpush1.msra.mxu0 0.0
    %379 = vmatprep.subr.mxu0 0.0
    %380 = vmatpush1.msra.mxu0 0.0
    %381 = vmatprep.subr.mxu0 0.0
    %382 = vmatpush1.msra.mxu0 0.0
    %383 = vmatprep.subr.mxu0 0.0
    %384 = vmatpush1.msra.mxu0 0.0
    %385 = vmatprep.subr.mxu0 0.0
    %386 = vmatpush1.msra.mxu0 0.0
    %387 = vmatprep.subr.mxu0 0.0
    %388 = vmatpush1.msra.mxu0 0.0
    %389 = vmatprep.subr.mxu0 0.0
    %390 = vmatpush1.msra.mxu0 0.0
    %391 = vmatprep.subr.mxu0 0.0
    %392 = vmatpush1.msra.mxu0 0.0
    %393 = vmatprep.subr.mxu0 0.0
    %394 = vmatpush1.msra.mxu0 0.0
    %395 = vmatprep.subr.mxu0 0.0
    %396 = vmatpush1.msra.mxu0 0.0
    %397 = vmatprep.subr.mxu0 0.0
    %398 = vmatpush1.msra.mxu0 0.0
    %399 = vmatprep.subr.mxu0 0.0
    %400 = vmatpush1.msra.mxu0 0.0
    %401 = vmatprep.subr.mxu0 0.0
    %402 = vmatpush1.msra.mxu0 0.0
    %403 = vmatprep.subr.mxu0 0.0
    %404 = vmatpush1.msra.mxu0 0.0
    %405 = vmatprep.subr.mxu0 0.0
    %406 = vmatpush1.msra.mxu0 0.0
    %407 = vmatprep.subr.mxu0 0.0
    %408 = vmatpush1.msra.mxu0 0.0
    %409 = vmatprep.mubr.f32.mxu0 0.0
    %410 = vmatmul.mubr.f32.gmra.mrb[0].mxu0 %v340
    %v411 = vpop.f32.mrb[0].mxu0
    %v412 = vadd.f32 %v336, %v411
    %v413 = vpop.f32.mrb[0].mxu0
    %414 = vmatprep.mubr.f32.mxu0 0.0
    %415 = vmatmul.mubr.f32.gmra.mrb[0].mxu0 %v343
    %v416 = vpop.f32.mrb[0].mxu0
    %v417 = vadd.f32 %v336, %v416
    %v418 = vpop.f32.mrb[0].mxu0
    %419 = vdwg.mxu0
    %s420 = scalar_lea.vmem [#allocation5], 16
    %v421 = vld [vmem:[%s420] sm:$0xff]
    %v422 = vld [vmem:[%s420 + $0x8] sm:$0xff]
    %s423 = scalar_lea.vmem %s4, 1
    %v424 = vld [vmem:[%s423] sm:$0x1]
    %v426 = vlaneseq
    %v427 = vshrl.u32 %v426, 7
    %v428 = vsub.s32 0, %v427
    %v429 = vrot.slane %v424, %v428
    %431 = vmatprep.subr.mxu0 0.0
    %432 = vmatpush1.msra.mxu0 %v421
    %433 = vmatprep.subr.mxu0 0.0
    %434 = vmatpush1.msra.mxu0 %v422
    %435 = vmatprep.subr.mxu0 0.0
    %436 = vmatpush1.msra.mxu0 0.0
    %437 = vmatprep.subr.mxu0 0.0
    %438 = vmatpush1.msra.mxu0 0.0
    %439 = vmatprep.subr.mxu0 0.0
    %440 = vmatpush1.msra.mxu0 0.0
    %441 = vmatprep.subr.mxu0 0.0
    %442 = vmatpush1.msra.mxu0 0.0
    %443 = vmatprep.subr.mxu0 0.0
    %444 = vmatpush1.msra.mxu0 0.0
    %445 = vmatprep.subr.mxu0 0.0
    %446 = vmatpush1.msra.mxu0 0.0
    %447 = vmatprep.subr.mxu0 0.0
    %448 = vmatpush1.msra.mxu0 0.0
    %449 = vmatprep.subr.mxu0 0.0
    %450 = vmatpush1.msra.mxu0 0.0
    %451 = vmatprep.subr.mxu0 0.0
    %452 = vmatpush1.msra.mxu0 0.0
    %453 = vmatprep.subr.mxu0 0.0
    %454 = vmatpush1.msra.mxu0 0.0
    %455 = vmatprep.subr.mxu0 0.0
    %456 = vmatpush1.msra.mxu0 0.0
    %457 = vmatprep.subr.mxu0 0.0
    %458 = vmatpush1.msra.mxu0 0.0
    %459 = vmatprep.subr.mxu0 0.0
    %460 = vmatpush1.msra.mxu0 0.0
    %461 = vmatprep.subr.mxu0 0.0
    %462 = vmatpush1.msra.mxu0 0.0
    %463 = vmatprep.subr.mxu0 0.0
    %464 = vmatpush1.msra.mxu0 0.0
    %465 = vmatprep.subr.mxu0 0.0
    %466 = vmatpush1.msra.mxu0 0.0
    %467 = vmatprep.subr.mxu0 0.0
    %468 = vmatpush1.msra.mxu0 0.0
    %469 = vmatprep.subr.mxu0 0.0
    %470 = vmatpush1.msra.mxu0 0.0
    %471 = vmatprep.subr.mxu0 0.0
    %472 = vmatpush1.msra.mxu0 0.0
    %473 = vmatprep.subr.mxu0 0.0
    %474 = vmatpush1.msra.mxu0 0.0
    %475 = vmatprep.subr.mxu0 0.0
    %476 = vmatpush1.msra.mxu0 0.0
    %477 = vmatprep.subr.mxu0 0.0
    %478 = vmatpush1.msra.mxu0 0.0
    %479 = vmatprep.subr.mxu0 0.0
    %480 = vmatpush1.msra.mxu0 0.0
    %481 = vmatprep.subr.mxu0 0.0
    %482 = vmatpush1.msra.mxu0 0.0
    %483 = vmatprep.subr.mxu0 0.0
    %484 = vmatpush1.msra.mxu0 0.0
    %485 = vmatprep.subr.mxu0 0.0
    %486 = vmatpush1.msra.mxu0 0.0
    %487 = vmatprep.subr.mxu0 0.0
    %488 = vmatpush1.msra.mxu0 0.0
    %489 = vmatprep.subr.mxu0 0.0
    %490 = vmatpush1.msra.mxu0 0.0
    %491 = vmatprep.subr.mxu0 0.0
    %492 = vmatpush1.msra.mxu0 0.0
    %493 = vmatprep.subr.mxu0 0.0
    %494 = vmatpush1.msra.mxu0 0.0
    %495 = vmatprep.mubr.f32.mxu0 0.0
    %496 = vmatmul.mubr.f32.gmra.mrb[0].mxu0 %v340
    %v497 = vpop.f32.mrb[0].mxu0
    %v498 = vadd.f32 %v429, %v497
    %v499 = vpop.f32.mrb[0].mxu0
    %500 = vmatprep.mubr.f32.mxu0 0.0
    %501 = vmatmul.mubr.f32.gmra.mrb[0].mxu0 %v343
    %v502 = vpop.f32.mrb[0].mxu0
    %v503 = vadd.f32 %v429, %v502
    %v504 = vpop.f32.mrb[0].mxu0
    %505 = vdwg.mxu0
    %s506 = scalar_lea.vmem [#allocation5], 32
    %v507 = vld [vmem:[%s506] sm:$0xff]
    %v508 = vld [vmem:[%s506 + $0x8] sm:$0xff]
    %s509 = scalar_lea.vmem %s4, 2
    %v510 = vld [vmem:[%s509] sm:$0x1]
    %v512 = vlaneseq
    %v513 = vshrl.u32 %v512, 7
    %v514 = vsub.s32 0, %v513
    %v515 = vrot.slane %v510, %v514
    %517 = vmatprep.subr.mxu0 0.0
    %518 = vmatpush1.msra.mxu0 %v507
    %519 = vmatprep.subr.mxu0 0.0
    %520 = vmatpush1.msra.mxu0 %v508
    %521 = vmatprep.subr.mxu0 0.0
    %522 = vmatpush1.msra.mxu0 0.0
    %523 = vmatprep.subr.mxu0 0.0
    %524 = vmatpush1.msra.mxu0 0.0
    %525 = vmatprep.subr.mxu0 0.0
    %526 = vmatpush1.msra.mxu0 0.0
    %527 = vmatprep.subr.mxu0 0.0
    %528 = vmatpush1.msra.mxu0 0.0
    %529 = vmatprep.subr.mxu0 0.0
    %530 = vmatpush1.msra.mxu0 0.0
    %531 = vmatprep.subr.mxu0 0.0
    %532 = vmatpush1.msra.mxu0 0.0
    %533 = vmatprep.subr.mxu0 0.0
    %534 = vmatpush1.msra.mxu0 0.0
    %535 = vmatprep.subr.mxu0 0.0
    %536 = vmatpush1.msra.mxu0 0.0
    %537 = vmatprep.subr.mxu0 0.0
    %538 = vmatpush1.msra.mxu0 0.0
    %539 = vmatprep.subr.mxu0 0.0
    %540 = vmatpush1.msra.mxu0 0.0
    %541 = vmatprep.subr.mxu0 0.0
    %542 = vmatpush1.msra.mxu0 0.0
    %543 = vmatprep.subr.mxu0 0.0
    %544 = vmatpush1.msra.mxu0 0.0
    %545 = vmatprep.subr.mxu0 0.0
    %546 = vmatpush1.msra.mxu0 0.0
    %547 = vmatprep.subr.mxu0 0.0
    %548 = vmatpush1.msra.mxu0 0.0
    %549 = vmatprep.subr.mxu0 0.0
    %550 = vmatpush1.msra.mxu0 0.0
    %551 = vmatprep.subr.mxu0 0.0
    %552 = vmatpush1.msra.mxu0 0.0
    %553 = vmatprep.subr.mxu0 0.0
    %554 = vmatpush1.msra.mxu0 0.0
    %555 = vmatprep.subr.mxu0 0.0
    %556 = vmatpush1.msra.mxu0 0.0
    %557 = vmatprep.subr.mxu0 0.0
    %558 = vmatpush1.msra.mxu0 0.0
    %559 = vmatprep.subr.mxu0 0.0
    %560 = vmatpush1.msra.mxu0 0.0
    %561 = vmatprep.subr.mxu0 0.0
    %562 = vmatpush1.msra.mxu0 0.0
    %563 = vmatprep.subr.mxu0 0.0
    %564 = vmatpush1.msra.mxu0 0.0
    %565 = vmatprep.subr.mxu0 0.0
    %566 = vmatpush1.msra.mxu0 0.0
    %567 = vmatprep.subr.mxu0 0.0
    %568 = vmatpush1.msra.mxu0 0.0
    %569 = vmatprep.subr.mxu0 0.0
    %570 = vmatpush1.msra.mxu0 0.0
    %571 = vmatprep.subr.mxu0 0.0
    %572 = vmatpush1.msra.mxu0 0.0
    %573 = vmatprep.subr.mxu0 0.0
    %574 = vmatpush1.msra.mxu0 0.0
    %575 = vmatprep.subr.mxu0 0.0
    %576 = vmatpush1.msra.mxu0 0.0
    %577 = vmatprep.subr.mxu0 0.0
    %578 = vmatpush1.msra.mxu0 0.0
    %579 = vmatprep.subr.mxu0 0.0
    %580 = vmatpush1.msra.mxu0 0.0
    %581 = vmatprep.mubr.f32.mxu0 0.0
    %582 = vmatmul.mubr.f32.gmra.mrb[0].mxu0 %v340
    %v583 = vpop.f32.mrb[0].mxu0
    %v584 = vadd.f32 %v515, %v583
    %v585 = vpop.f32.mrb[0].mxu0
    %586 = vmatprep.mubr.f32.mxu0 0.0
    %587 = vmatmul.mubr.f32.gmra.mrb[0].mxu0 %v343
    %v588 = vpop.f32.mrb[0].mxu0
    %v589 = vadd.f32 %v515, %v588
    %v590 = vpop.f32.mrb[0].mxu0
    %591 = vdwg.mxu0
    %v592 = vld [vmem:[%s5] sm:$0xff]
    %v593 = vld [vmem:[%s5 + $0x8] sm:$0xff]
    %v594 = vld [vmem:[%s5 + $0x10] sm:$0xff]
    %v595 = vld [vmem:[%s5 + $0x18] sm:$0xff]
    %s596 = scalar_lea.vmem %s5, 32
    %v597 = vld [vmem:[%s596] sm:$0xff]
    %v598 = vld [vmem:[%s596 + $0x8] sm:$0xff]
    %v599 = vld [vmem:[%s596 + $0x10] sm:$0xff]
    %v600 = vld [vmem:[%s596 + $0x18] sm:$0xff]
    %s601 = scalar_lea.vmem %s5, 64
    %v602 = vld [vmem:[%s601] sm:$0xff]
    %v603 = vld [vmem:[%s601 + $0x8] sm:$0xff]
    %v604 = vld [vmem:[%s601 + $0x10] sm:$0xff]
    %v605 = vld [vmem:[%s601 + $0x18] sm:$0xff]
    %v606 = vld [vmem:[%s6] sm:$0x1]
    %vm607 = vcmask 261120
    %v609 = vsel %vm607, 0.0, 0
    %611 = vmatprep.subr.mxu0 0.0
    %612 = vmatpush1.msra.mxu0 %v592
    %613 = vmatprep.subr.mxu0 0.0
    %614 = vmatpush1.msra.mxu0 %v593
    %615 = vmatprep.subr.mxu0 0.0
    %616 = vmatpush1.msra.mxu0 %v594
    %617 = vmatprep.subr.mxu0 0.0
    %618 = vmatpush1.msra.mxu0 %v595
    %619 = vmatprep.subr.mxu0 0.0
    %620 = vmatpush1.msra.mxu0 0.0
    %621 = vmatprep.subr.mxu0 0.0
    %622 = vmatpush1.msra.mxu0 0.0
    %623 = vmatprep.subr.mxu0 0.0
    %624 = vmatpush1.msra.mxu0 0.0
    %625 = vmatprep.subr.mxu0 0.0
    %626 = vmatpush1.msra.mxu0 0.0
    %627 = vmatprep.subr.mxu0 0.0
    %628 = vmatpush1.msra.mxu0 0.0
    %629 = vmatprep.subr.mxu0 0.0
    %630 = vmatpush1.msra.mxu0 0.0
    %631 = vmatprep.subr.mxu0 0.0
    %632 = vmatpush1.msra.mxu0 0.0
    %633 = vmatprep.subr.mxu0 0.0
    %634 = vmatpush1.msra.mxu0 0.0
    %635 = vmatprep.subr.mxu0 0.0
    %636 = vmatpush1.msra.mxu0 0.0
    %637 = vmatprep.subr.mxu0 0.0
    %638 = vmatpush1.msra.mxu0 0.0
    %639 = vmatprep.subr.mxu0 0.0
    %640 = vmatpush1.msra.mxu0 0.0
    %641 = vmatprep.subr.mxu0 0.0
    %642 = vmatpush1.msra.mxu0 0.0
    %643 = vmatprep.subr.mxu0 0.0
    %644 = vmatpush1.msra.mxu0 0.0
    %645 = vmatprep.subr.mxu0 0.0
    %646 = vmatpush1.msra.mxu0 0.0
    %647 = vmatprep.subr.mxu0 0.0
    %648 = vmatpush1.msra.mxu0 0.0
    %649 = vmatprep.subr.mxu0 0.0
    %650 = vmatpush1.msra.mxu0 0.0
    %651 = vmatprep.subr.mxu0 0.0
    %652 = vmatpush1.msra.mxu0 0.0
    %653 = vmatprep.subr.mxu0 0.0
    %654 = vmatpush1.msra.mxu0 0.0
    %655 = vmatprep.subr.mxu0 0.0
    %656 = vmatpush1.msra.mxu0 0.0
    %657 = vmatprep.subr.mxu0 0.0
    %658 = vmatpush1.msra.mxu0 0.0
    %659 = vmatprep.subr.mxu0 0.0
    %660 = vmatpush1.msra.mxu0 0.0
    %661 = vmatprep.subr.mxu0 0.0
    %662 = vmatpush1.msra.mxu0 0.0
    %663 = vmatprep.subr.mxu0 0.0
    %664 = vmatpush1.msra.mxu0 0.0
    %665 = vmatprep.subr.mxu0 0.0
    %666 = vmatpush1.msra.mxu0 0.0
    %667 = vmatprep.subr.mxu0 0.0
    %668 = vmatpush1.msra.mxu0 0.0
    %669 = vmatprep.subr.mxu0 0.0
    %670 = vmatpush1.msra.mxu0 0.0
    %671 = vmatprep.subr.mxu0 0.0
    %672 = vmatpush1.msra.mxu0 0.0
    %673 = vmatprep.subr.mxu0 0.0
    %674 = vmatpush1.msra.mxu0 0.0
    %675 = vmatprep.mubr.f32.mxu0 0.0
    %676 = vmatmul.mubr.f32.gmra.mrb[0].mxu0 %v609
    %v677 = vpop.f32.mrb[0].mxu0
    %v678 = vadd.f32 0.0, %v677
    %v679 = vpop.f32.mrb[0].mxu0
    %680 = vdwg.mxu0
    %681 = vmatprep.subr.mxu0 0.0
    %682 = vmatpush1.msra.mxu0 %v597
    %683 = vmatprep.subr.mxu0 0.0
    %684 = vmatpush1.msra.mxu0 %v598
    %685 = vmatprep.subr.mxu0 0.0
    %686 = vmatpush1.msra.mxu0 %v599
    %687 = vmatprep.subr.mxu0 0.0
    %688 = vmatpush1.msra.mxu0 %v600
    %689 = vmatprep.subr.mxu0 0.0
    %690 = vmatpush1.msra.mxu0 0.0
    %691 = vmatprep.subr.mxu0 0.0
    %692 = vmatpush1.msra.mxu0 0.0
    %693 = vmatprep.subr.mxu0 0.0
    %694 = vmatpush1.msra.mxu0 0.0
    %695 = vmatprep.subr.mxu0 0.0
    %696 = vmatpush1.msra.mxu0 0.0
    %697 = vmatprep.subr.mxu0 0.0
    %698 = vmatpush1.msra.mxu0 0.0
    %699 = vmatprep.subr.mxu0 0.0
    %700 = vmatpush1.msra.mxu0 0.0
    %701 = vmatprep.subr.mxu0 0.0
    %702 = vmatpush1.msra.mxu0 0.0
    %703 = vmatprep.subr.mxu0 0.0
    %704 = vmatpush1.msra.mxu0 0.0
    %705 = vmatprep.subr.mxu0 0.0
    %706 = vmatpush1.msra.mxu0 0.0
    %707 = vmatprep.subr.mxu0 0.0
    %708 = vmatpush1.msra.mxu0 0.0
    %709 = vmatprep.subr.mxu0 0.0
    %710 = vmatpush1.msra.mxu0 0.0
    %711 = vmatprep.subr.mxu0 0.0
    %712 = vmatpush1.msra.mxu0 0.0
    %713 = vmatprep.subr.mxu0 0.0
    %714 = vmatpush1.msra.mxu0 0.0
    %715 = vmatprep.subr.mxu0 0.0
    %716 = vmatpush1.msra.mxu0 0.0
    %717 = vmatprep.subr.mxu0 0.0
    %718 = vmatpush1.msra.mxu0 0.0
    %719 = vmatprep.subr.mxu0 0.0
    %720 = vmatpush1.msra.mxu0 0.0
    %721 = vmatprep.subr.mxu0 0.0
    %722 = vmatpush1.msra.mxu0 0.0
    %723 = vmatprep.subr.mxu0 0.0
    %724 = vmatpush1.msra.mxu0 0.0
    %725 = vmatprep.subr.mxu0 0.0
    %726 = vmatpush1.msra.mxu0 0.0
    %727 = vmatprep.subr.mxu0 0.0
    %728 = vmatpush1.msra.mxu0 0.0
    %729 = vmatprep.subr.mxu0 0.0
    %730 = vmatpush1.msra.mxu0 0.0
    %731 = vmatprep.subr.mxu0 0.0
    %732 = vmatpush1.msra.mxu0 0.0
    %733 = vmatprep.subr.mxu0 0.0
    %734 = vmatpush1.msra.mxu0 0.0
    %735 = vmatprep.subr.mxu0 0.0
    %736 = vmatpush1.msra.mxu0 0.0
    %737 = vmatprep.subr.mxu0 0.0
    %738 = vmatpush1.msra.mxu0 0.0
    %739 = vmatprep.subr.mxu0 0.0
    %740 = vmatpush1.msra.mxu0 0.0
    %741 = vmatprep.subr.mxu0 0.0
    %742 = vmatpush1.msra.mxu0 0.0
    %743 = vmatprep.subr.mxu0 0.0
    %744 = vmatpush1.msra.mxu0 0.0
    %745 = vmatprep.mubr.f32.mxu0 0.0
    %746 = vmatmul.mubr.f32.gmra.mrb[0].mxu0 %v609
    %v747 = vpop.f32.mrb[0].mxu0
    %v748 = vadd.f32 0.0, %v747
    %v749 = vpop.f32.mrb[0].mxu0
    %750 = vdwg.mxu0
    %v752 = vlaneseq
    %v753 = vshrl.u32 %v752, 7
    %v754 = vsub.s32 0, %v753
    %v755 = vrot.slane %v606, %v754
    %757 = vmatprep.subr.mxu0 0.0
    %758 = vmatpush1.msra.mxu0 %v602
    %759 = vmatprep.subr.mxu0 0.0
    %760 = vmatpush1.msra.mxu0 %v603
    %761 = vmatprep.subr.mxu0 0.0
    %762 = vmatpush1.msra.mxu0 %v604
    %763 = vmatprep.subr.mxu0 0.0
    %764 = vmatpush1.msra.mxu0 %v605
    %765 = vmatprep.subr.mxu0 0.0
    %766 = vmatpush1.msra.mxu0 0.0
    %767 = vmatprep.subr.mxu0 0.0
    %768 = vmatpush1.msra.mxu0 0.0
    %769 = vmatprep.subr.mxu0 0.0
    %770 = vmatpush1.msra.mxu0 0.0
    %771 = vmatprep.subr.mxu0 0.0
    %772 = vmatpush1.msra.mxu0 0.0
    %773 = vmatprep.subr.mxu0 0.0
    %774 = vmatpush1.msra.mxu0 0.0
    %775 = vmatprep.subr.mxu0 0.0
    %776 = vmatpush1.msra.mxu0 0.0
    %777 = vmatprep.subr.mxu0 0.0
    %778 = vmatpush1.msra.mxu0 0.0
    %779 = vmatprep.subr.mxu0 0.0
    %780 = vmatpush1.msra.mxu0 0.0
    %781 = vmatprep.subr.mxu0 0.0
    %782 = vmatpush1.msra.mxu0 0.0
    %783 = vmatprep.subr.mxu0 0.0
    %784 = vmatpush1.msra.mxu0 0.0
    %785 = vmatprep.subr.mxu0 0.0
    %786 = vmatpush1.msra.mxu0 0.0
    %787 = vmatprep.subr.mxu0 0.0
    %788 = vmatpush1.msra.mxu0 0.0
    %789 = vmatprep.subr.mxu0 0.0
    %790 = vmatpush1.msra.mxu0 0.0
    %791 = vmatprep.subr.mxu0 0.0
    %792 = vmatpush1.msra.mxu0 0.0
    %793 = vmatprep.subr.mxu0 0.0
    %794 = vmatpush1.msra.mxu0 0.0
    %795 = vmatprep.subr.mxu0 0.0
    %796 = vmatpush1.msra.mxu0 0.0
    %797 = vmatprep.subr.mxu0 0.0
    %798 = vmatpush1.msra.mxu0 0.0
    %799 = vmatprep.subr.mxu0 0.0
    %800 = vmatpush1.msra.mxu0 0.0
    %801 = vmatprep.subr.mxu0 0.0
    %802 = vmatpush1.msra.mxu0 0.0
    %803 = vmatprep.subr.mxu0 0.0
    %804 = vmatpush1.msra.mxu0 0.0
    %805 = vmatprep.subr.mxu0 0.0
    %806 = vmatpush1.msra.mxu0 0.0
    %807 = vmatprep.subr.mxu0 0.0
    %808 = vmatpush1.msra.mxu0 0.0
    %809 = vmatprep.subr.mxu0 0.0
    %810 = vmatpush1.msra.mxu0 0.0
    %811 = vmatprep.subr.mxu0 0.0
    %812 = vmatpush1.msra.mxu0 0.0
    %813 = vmatprep.subr.mxu0 0.0
    %814 = vmatpush1.msra.mxu0 0.0
    %815 = vmatprep.subr.mxu0 0.0
    %816 = vmatpush1.msra.mxu0 0.0
    %817 = vmatprep.subr.mxu0 0.0
    %818 = vmatpush1.msra.mxu0 0.0
    %819 = vmatprep.subr.mxu0 0.0
    %820 = vmatpush1.msra.mxu0 0.0
    %821 = vmatprep.mubr.f32.mxu0 0.0
    %822 = vmatmul.mubr.f32.gmra.mrb[0].mxu0 %v609
    %v823 = vpop.f32.mrb[0].mxu0
    %v824 = vadd.f32 %v755, %v823
    %v825 = vpop.f32.mrb[0].mxu0
    %826 = vdwg.mxu0
    %v828 = vrot.slane %v678, 1
    %v831 = vadd.f32 %v412, %v678
    %v832 = vadd.f32 %v417, %v828
    %v833 = vxor.u32 %v831, 2147483648
    %v834 = vxor.u32 %v832, 2147483648
    %v835 = vmul.f32 %v833, 1.442695
    %v836 = vpow.pop %v835
    %v837 = vmul.f32 %v834, 1.442695
    %v838 = vpow.pop %v837
    %v839 = vadd.f32 %v836, 1.0
    %v840 = vadd.f32 %v838, 1.0
    %v841 = vrcp.pop %v839
    %v842 = vmul.f32 1.0, %v841
    %v843 = vrcp.pop %v840
    %v844 = vmul.f32 1.0, %v843
    %v846 = vrot.slane %v748, 1
    %v849 = vadd.f32 %v498, %v748
    %v850 = vadd.f32 %v503, %v846
    %v851 = vxor.u32 %v849, 2147483648
    %v852 = vxor.u32 %v850, 2147483648
    %v853 = vmul.f32 %v851, 1.442695
    %v854 = vpow.pop %v853
    %v855 = vmul.f32 %v852, 1.442695
    %v856 = vpow.pop %v855
    %v857 = vadd.f32 %v854, 1.0
    %v858 = vadd.f32 %v856, 1.0
    %v859 = vrcp.pop %v857
    %v860 = vmul.f32 1.0, %v859
    %v861 = vrcp.pop %v858
    %v862 = vmul.f32 1.0, %v861
    %v864 = vrot.slane %v824, 1
    %v867 = vmul.f32 %v842, %v824
    %v868 = vmul.f32 %v844, %v864
    %v869 = vadd.f32 %v584, %v867
    %v870 = vadd.f32 %v589, %v868
    %v871 = vtanh.pop %v869
    %v872 = vtanh.pop %v870
    %v873 = vsub.f32 0.0, %v871
    %v874 = vsub.f32 0.0, %v872
    %v875 = vmul.f32 %v860, %v873
    %v876 = vmul.f32 %v862, %v874
    %v877 = vadd.f32 %v871, %v875
    %v878 = vadd.f32 %v872, %v876
    %v881 = vrot.slane %v878, 7
    %vm882 = vcmask 1041409
    %v883 = vsel %vm882, %v881, %v877
    %v884 = vsel %vm607, %v883, 0
    %886 = vmatprep.subr.mxu0 0.0
    %887 = vmatpush1.msra.mxu0 %v592
    %888 = vmatprep.subr.mxu0 0.0
    %889 = vmatpush1.msra.mxu0 %v593
    %890 = vmatprep.subr.mxu0 0.0
    %891 = vmatpush1.msra.mxu0 %v594
    %892 = vmatprep.subr.mxu0 0.0
    %893 = vmatpush1.msra.mxu0 %v595
    %894 = vmatprep.subr.mxu0 0.0
    %895 = vmatpush1.msra.mxu0 0.0
    %896 = vmatprep.subr.mxu0 0.0
    %897 = vmatpush1.msra.mxu0 0.0
    %898 = vmatprep.subr.mxu0 0.0
    %899 = vmatpush1.msra.mxu0 0.0
    %900 = vmatprep.subr.mxu0 0.0
    %901 = vmatpush1.msra.mxu0 0.0
    %902 = vmatprep.subr.mxu0 0.0
    %903 = vmatpush1.msra.mxu0 0.0
    %904 = vmatprep.subr.mxu0 0.0
    %905 = vmatpush1.msra.mxu0 0.0
    %906 = vmatprep.subr.mxu0 0.0
    %907 = vmatpush1.msra.mxu0 0.0
    %908 = vmatprep.subr.mxu0 0.0
    %909 = vmatpush1.msra.mxu0 0.0
    %910 = vmatprep.subr.mxu0 0.0
    %911 = vmatpush1.msra.mxu0 0.0
    %912 = vmatprep.subr.mxu0 0.0
    %913 = vmatpush1.msra.mxu0 0.0
    %914 = vmatprep.subr.mxu0 0.0
    %915 = vmatpush1.msra.mxu0 0.0
    %916 = vmatprep.subr.mxu0 0.0
    %917 = vmatpush1.msra.mxu0 0.0
    %918 = vmatprep.subr.mxu0 0.0
    %919 = vmatpush1.msra.mxu0 0.0
    %920 = vmatprep.subr.mxu0 0.0
    %921 = vmatpush1.msra.mxu0 0.0
    %922 = vmatprep.subr.mxu0 0.0
    %923 = vmatpush1.msra.mxu0 0.0
    %924 = vmatprep.subr.mxu0 0.0
    %925 = vmatpush1.msra.mxu0 0.0
    %926 = vmatprep.subr.mxu0 0.0
    %927 = vmatpush1.msra.mxu0 0.0
    %928 = vmatprep.subr.mxu0 0.0
    %929 = vmatpush1.msra.mxu0 0.0
    %930 = vmatprep.subr.mxu0 0.0
    %931 = vmatpush1.msra.mxu0 0.0
    %932 = vmatprep.subr.mxu0 0.0
    %933 = vmatpush1.msra.mxu0 0.0
    %934 = vmatprep.subr.mxu0 0.0
    %935 = vmatpush1.msra.mxu0 0.0
    %936 = vmatprep.subr.mxu0 0.0
    %937 = vmatpush1.msra.mxu0 0.0
    %938 = vmatprep.subr.mxu0 0.0
    %939 = vmatpush1.msra.mxu0 0.0
    %940 = vmatprep.subr.mxu0 0.0
    %941 = vmatpush1.msra.mxu0 0.0
    %942 = vmatprep.subr.mxu0 0.0
    %943 = vmatpush1.msra.mxu0 0.0
    %944 = vmatprep.subr.mxu0 0.0
    %945 = vmatpush1.msra.mxu0 0.0
    %946 = vmatprep.subr.mxu0 0.0
    %947 = vmatpush1.msra.mxu0 0.0
    %948 = vmatprep.subr.mxu0 0.0
    %949 = vmatpush1.msra.mxu0 0.0
    %950 = vmatprep.mubr.f32.mxu0 0.0
    %951 = vmatmul.mubr.f32.gmra.mrb[0].mxu0 %v884
    %v952 = vpop.f32.mrb[0].mxu0
    %v953 = vadd.f32 0.0, %v952
    %v954 = vpop.f32.mrb[0].mxu0
    %955 = vdwg.mxu0
    %956 = vmatprep.subr.mxu0 0.0
    %957 = vmatpush1.msra.mxu0 %v597
    %958 = vmatprep.subr.mxu0 0.0
    %959 = vmatpush1.msra.mxu0 %v598
    %960 = vmatprep.subr.mxu0 0.0
    %961 = vmatpush1.msra.mxu0 %v599
    %962 = vmatprep.subr.mxu0 0.0
    %963 = vmatpush1.msra.mxu0 %v600
    %964 = vmatprep.subr.mxu0 0.0
    %965 = vmatpush1.msra.mxu0 0.0
    %966 = vmatprep.subr.mxu0 0.0
    %967 = vmatpush1.msra.mxu0 0.0
    %968 = vmatprep.subr.mxu0 0.0
    %969 = vmatpush1.msra.mxu0 0.0
    %970 = vmatprep.subr.mxu0 0.0
    %971 = vmatpush1.msra.mxu0 0.0
    %972 = vmatprep.subr.mxu0 0.0
    %973 = vmatpush1.msra.mxu0 0.0
    %974 = vmatprep.subr.mxu0 0.0
    %975 = vmatpush1.msra.mxu0 0.0
    %976 = vmatprep.subr.mxu0 0.0
    %977 = vmatpush1.msra.mxu0 0.0
    %978 = vmatprep.subr.mxu0 0.0
    %979 = vmatpush1.msra.mxu0 0.0
    %980 = vmatprep.subr.mxu0 0.0
    %981 = vmatpush1.msra.mxu0 0.0
    %982 = vmatprep.subr.mxu0 0.0
    %983 = vmatpush1.msra.mxu0 0.0
    %984 = vmatprep.subr.mxu0 0.0
    %985 = vmatpush1.msra.mxu0 0.0
    %986 = vmatprep.subr.mxu0 0.0
    %987 = vmatpush1.msra.mxu0 0.0
    %988 = vmatprep.subr.mxu0 0.0
    %989 = vmatpush1.msra.mxu0 0.0
    %990 = vmatprep.subr.mxu0 0.0
    %991 = vmatpush1.msra.mxu0 0.0
    %992 = vmatprep.subr.mxu0 0.0
    %993 = vmatpush1.msra.mxu0 0.0
    %994 = vmatprep.subr.mxu0 0.0
    %995 = vmatpush1.msra.mxu0 0.0
    %996 = vmatprep.subr.mxu0 0.0
    %997 = vmatpush1.msra.mxu0 0.0
    %998 = vmatprep.subr.mxu0 0.0
    %999 = vmatpush1.msra.mxu0 0.0
    %1000 = vmatprep.subr.mxu0 0.0
    %1001 = vmatpush1.msra.mxu0 0.0
    %1002 = vmatprep.subr.mxu0 0.0
    %1003 = vmatpush1.msra.mxu0 0.0
    %1004 = vmatprep.subr.mxu0 0.0
    %1005 = vmatpush1.msra.mxu0 0.0
    %1006 = vmatprep.subr.mxu0 0.0
    %1007 = vmatpush1.msra.mxu0 0.0
    %1008 = vmatprep.subr.mxu0 0.0
    %1009 = vmatpush1.msra.mxu0 0.0
    %1010 = vmatprep.subr.mxu0 0.0
    %1011 = vmatpush1.msra.mxu0 0.0
    %1012 = vmatprep.subr.mxu0 0.0
    %1013 = vmatpush1.msra.mxu0 0.0
    %1014 = vmatprep.subr.mxu0 0.0
    %1015 = vmatpush1.msra.mxu0 0.0
    %1016 = vmatprep.subr.mxu0 0.0
    %1017 = vmatpush1.msra.mxu0 0.0
    %1018 = vmatprep.subr.mxu0 0.0
    %1019 = vmatpush1.msra.mxu0 0.0
    %1020 = vmatprep.mubr.f32.mxu0 0.0
    %1021 = vmatmul.mubr.f32.gmra.mrb[0].mxu0 %v884
    %v1022 = vpop.f32.mrb[0].mxu0
    %v1023 = vadd.f32 0.0, %v1022
    %v1024 = vpop.f32.mrb[0].mxu0
    %1025 = vdwg.mxu0
    %1026 = vmatprep.subr.mxu0 0.0
    %1027 = vmatpush1.msra.mxu0 %v602
    %1028 = vmatprep.subr.mxu0 0.0
    %1029 = vmatpush1.msra.mxu0 %v603
    %1030 = vmatprep.subr.mxu0 0.0
    %1031 = vmatpush1.msra.mxu0 %v604
    %1032 = vmatprep.subr.mxu0 0.0
    %1033 = vmatpush1.msra.mxu0 %v605
    %1034 = vmatprep.subr.mxu0 0.0
    %1035 = vmatpush1.msra.mxu0 0.0
    %1036 = vmatprep.subr.mxu0 0.0
    %1037 = vmatpush1.msra.mxu0 0.0
    %1038 = vmatprep.subr.mxu0 0.0
    %1039 = vmatpush1.msra.mxu0 0.0
    %1040 = vmatprep.subr.mxu0 0.0
    %1041 = vmatpush1.msra.mxu0 0.0
    %1042 = vmatprep.subr.mxu0 0.0
    %1043 = vmatpush1.msra.mxu0 0.0
    %1044 = vmatprep.subr.mxu0 0.0
    %1045 = vmatpush1.msra.mxu0 0.0
    %1046 = vmatprep.subr.mxu0 0.0
    %1047 = vmatpush1.msra.mxu0 0.0
    %1048 = vmatprep.subr.mxu0 0.0
    %1049 = vmatpush1.msra.mxu0 0.0
    %1050 = vmatprep.subr.mxu0 0.0
    %1051 = vmatpush1.msra.mxu0 0.0
    %1052 = vmatprep.subr.mxu0 0.0
    %1053 = vmatpush1.msra.mxu0 0.0
    %1054 = vmatprep.subr.mxu0 0.0
    %1055 = vmatpush1.msra.mxu0 0.0
    %1056 = vmatprep.subr.mxu0 0.0
    %1057 = vmatpush1.msra.mxu0 0.0
    %1058 = vmatprep.subr.mxu0 0.0
    %1059 = vmatpush1.msra.mxu0 0.0
    %1060 = vmatprep.subr.mxu0 0.0
    %1061 = vmatpush1.msra.mxu0 0.0
    %1062 = vmatprep.subr.mxu0 0.0
    %1063 = vmatpush1.msra.mxu0 0.0
    %1064 = vmatprep.subr.mxu0 0.0
    %1065 = vmatpush1.msra.mxu0 0.0
    %1066 = vmatprep.subr.mxu0 0.0
    %1067 = vmatpush1.msra.mxu0 0.0
    %1068 = vmatprep.subr.mxu0 0.0
    %1069 = vmatpush1.msra.mxu0 0.0
    %1070 = vmatprep.subr.mxu0 0.0
    %1071 = vmatpush1.msra.mxu0 0.0
    %1072 = vmatprep.subr.mxu0 0.0
    %1073 = vmatpush1.msra.mxu0 0.0
    %1074 = vmatprep.subr.mxu0 0.0
    %1075 = vmatpush1.msra.mxu0 0.0
    %1076 = vmatprep.subr.mxu0 0.0
    %1077 = vmatpush1.msra.mxu0 0.0
    %1078 = vmatprep.subr.mxu0 0.0
    %1079 = vmatpush1.msra.mxu0 0.0
    %1080 = vmatprep.subr.mxu0 0.0
    %1081 = vmatpush1.msra.mxu0 0.0
    %1082 = vmatprep.subr.mxu0 0.0
    %1083 = vmatpush1.msra.mxu0 0.0
    %1084 = vmatprep.subr.mxu0 0.0
    %1085 = vmatpush1.msra.mxu0 0.0
    %1086 = vmatprep.subr.mxu0 0.0
    %1087 = vmatpush1.msra.mxu0 0.0
    %1088 = vmatprep.subr.mxu0 0.0
    %1089 = vmatpush1.msra.mxu0 0.0
    %1090 = vmatprep.mubr.f32.mxu0 0.0
    %1091 = vmatmul.mubr.f32.gmra.mrb[0].mxu0 %v884
    %v1092 = vpop.f32.mrb[0].mxu0
    %v1093 = vadd.f32 %v755, %v1092
    %v1094 = vpop.f32.mrb[0].mxu0
    %1095 = vdwg.mxu0
    %v1097 = vrot.slane %v953, 7
    %v1100 = vadd.f32 %v412, %v1097
    %v1101 = vadd.f32 %v417, %v953
    %v1102 = vxor.u32 %v1100, 2147483648
    %v1103 = vxor.u32 %v1101, 2147483648
    %v1104 = vmul.f32 %v1102, 1.442695
    %v1105 = vpow.pop %v1104
    %v1106 = vmul.f32 %v1103, 1.442695
    %v1107 = vpow.pop %v1106
    %v1108 = vadd.f32 %v1105, 1.0
    %v1109 = vadd.f32 %v1107, 1.0
    %v1110 = vrcp.pop %v1108
    %v1111 = vmul.f32 1.0, %v1110
    %v1112 = vrcp.pop %v1109
    %v1113 = vmul.f32 1.0, %v1112
    %v1115 = vrot.slane %v1023, 7
    %v1118 = vadd.f32 %v498, %v1115
    %v1119 = vadd.f32 %v503, %v1023
    %v1120 = vxor.u32 %v1118, 2147483648
    %v1121 = vxor.u32 %v1119, 2147483648
    %v1122 = vmul.f32 %v1120, 1.442695
    %v1123 = vpow.pop %v1122
    %v1124 = vmul.f32 %v1121, 1.442695
    %v1125 = vpow.pop %v1124
    %v1126 = vadd.f32 %v1123, 1.0
    %v1127 = vadd.f32 %v1125, 1.0
    %v1128 = vrcp.pop %v1126
    %v1129 = vmul.f32 1.0, %v1128
    %v1130 = vrcp.pop %v1127
    %v1131 = vmul.f32 1.0, %v1130
    %v1133 = vrot.slane %v1093, 7
    %v1136 = vmul.f32 %v1111, %v1133
    %v1137 = vmul.f32 %v1113, %v1093
    %v1138 = vadd.f32 %v584, %v1136
    %v1139 = vadd.f32 %v589, %v1137
    %v1140 = vtanh.pop %v1138
    %v1141 = vtanh.pop %v1139
    %v1144 = vrot.slane %v1140, 1
    %v1145 = vrot.slane %v1141, 1
    %v1148 = vsub.f32 %v877, %v1144
    %v1149 = vsub.f32 %v878, %v1145
    %v1152 = vrot.slane %v1148, 7
    %v1153 = vrot.slane %v1149, 7
    %v1156 = vmul.f32 %v1129, %v1152
    %v1157 = vmul.f32 %v1131, %v1153
    %v1158 = vadd.f32 %v1140, %v1156
    %v1159 = vadd.f32 %v1141, %v1157
    %v1162 = vrot.slane %v1158, 1
    %v1163 = vsel %vm882, %v1159, %v1162
    %v1164 = vsel %vm607, %v1163, 0
    %1166 = vmatprep.subr.mxu0 0.0
    %1167 = vmatpush1.msra.mxu0 %v592
    %1168 = vmatprep.subr.mxu0 0.0
    %1169 = vmatpush1.msra.mxu0 %v593
    %1170 = vmatprep.subr.mxu0 0.0
    %1171 = vmatpush1.msra.mxu0 %v594
    %1172 = vmatprep.subr.mxu0 0.0
    %1173 = vmatpush1.msra.mxu0 %v595
    %1174 = vmatprep.subr.mxu0 0.0
    %1175 = vmatpush1.msra.mxu0 0.0
    %1176 = vmatprep.subr.mxu0 0.0
    %1177 = vmatpush1.msra.mxu0 0.0
    %1178 = vmatprep.subr.mxu0 0.0
    %1179 = vmatpush1.msra.mxu0 0.0
    %1180 = vmatprep.subr.mxu0 0.0
    %1181 = vmatpush1.msra.mxu0 0.0
    %1182 = vmatprep.subr.mxu0 0.0
    %1183 = vmatpush1.msra.mxu0 0.0
    %1184 = vmatprep.subr.mxu0 0.0
    %1185 = vmatpush1.msra.mxu0 0.0
    %1186 = vmatprep.subr.mxu0 0.0
    %1187 = vmatpush1.msra.mxu0 0.0
    %1188 = vmatprep.subr.mxu0 0.0
    %1189 = vmatpush1.msra.mxu0 0.0
    %1190 = vmatprep.subr.mxu0 0.0
    %1191 = vmatpush1.msra.mxu0 0.0
    %1192 = vmatprep.subr.mxu0 0.0
    %1193 = vmatpush1.msra.mxu0 0.0
    %1194 = vmatprep.subr.mxu0 0.0
    %1195 = vmatpush1.msra.mxu0 0.0
    %1196 = vmatprep.subr.mxu0 0.0
    %1197 = vmatpush1.msra.mxu0 0.0
    %1198 = vmatprep.subr.mxu0 0.0
    %1199 = vmatpush1.msra.mxu0 0.0
    %1200 = vmatprep.subr.mxu0 0.0
    %1201 = vmatpush1.msra.mxu0 0.0
    %1202 = vmatprep.subr.mxu0 0.0
    %1203 = vmatpush1.msra.mxu0 0.0
    %1204 = vmatprep.subr.mxu0 0.0
    %1205 = vmatpush1.msra.mxu0 0.0
    %1206 = vmatprep.subr.mxu0 0.0
    %1207 = vmatpush1.msra.mxu0 0.0
    %1208 = vmatprep.subr.mxu0 0.0
    %1209 = vmatpush1.msra.mxu0 0.0
    %1210 = vmatprep.subr.mxu0 0.0
    %1211 = vmatpush1.msra.mxu0 0.0
    %1212 = vmatprep.subr.mxu0 0.0
    %1213 = vmatpush1.msra.mxu0 0.0
    %1214 = vmatprep.subr.mxu0 0.0
    %1215 = vmatpush1.msra.mxu0 0.0
    %1216 = vmatprep.subr.mxu0 0.0
    %1217 = vmatpush1.msra.mxu0 0.0
    %1218 = vmatprep.subr.mxu0 0.0
    %1219 = vmatpush1.msra.mxu0 0.0
    %1220 = vmatprep.subr.mxu0 0.0
    %1221 = vmatpush1.msra.mxu0 0.0
    %1222 = vmatprep.subr.mxu0 0.0
    %1223 = vmatpush1.msra.mxu0 0.0
    %1224 = vmatprep.subr.mxu0 0.0
    %1225 = vmatpush1.msra.mxu0 0.0
    %1226 = vmatprep.subr.mxu0 0.0
    %1227 = vmatpush1.msra.mxu0 0.0
    %1228 = vmatprep.subr.mxu0 0.0
    %1229 = vmatpush1.msra.mxu0 0.0
    %1230 = vmatprep.mubr.f32.mxu0 0.0
    %1231 = vmatmul.mubr.f32.gmra.mrb[0].mxu0 %v1164
    %v1232 = vpop.f32.mrb[0].mxu0
    %v1233 = vadd.f32 0.0, %v1232
    %v1234 = vpop.f32.mrb[0].mxu0
    %1235 = vdwg.mxu0
    %1236 = vmatprep.subr.mxu0 0.0
    %1237 = vmatpush1.msra.mxu0 %v597
    %1238 = vmatprep.subr.mxu0 0.0
    %1239 = vmatpush1.msra.mxu0 %v598
    %1240 = vmatprep.subr.mxu0 0.0
    %1241 = vmatpush1.msra.mxu0 %v599
    %1242 = vmatprep.subr.mxu0 0.0
    %1243 = vmatpush1.msra.mxu0 %v600
    %1244 = vmatprep.subr.mxu0 0.0
    %1245 = vmatpush1.msra.mxu0 0.0
    %1246 = vmatprep.subr.mxu0 0.0
    %1247 = vmatpush1.msra.mxu0 0.0
    %1248 = vmatprep.subr.mxu0 0.0
    %1249 = vmatpush1.msra.mxu0 0.0
    %1250 = vmatprep.subr.mxu0 0.0
    %1251 = vmatpush1.msra.mxu0 0.0
    %1252 = vmatprep.subr.mxu0 0.0
    %1253 = vmatpush1.msra.mxu0 0.0
    %1254 = vmatprep.subr.mxu0 0.0
    %1255 = vmatpush1.msra.mxu0 0.0
    %1256 = vmatprep.subr.mxu0 0.0
    %1257 = vmatpush1.msra.mxu0 0.0
    %1258 = vmatprep.subr.mxu0 0.0
    %1259 = vmatpush1.msra.mxu0 0.0
    %1260 = vmatprep.subr.mxu0 0.0
    %1261 = vmatpush1.msra.mxu0 0.0
    %1262 = vmatprep.subr.mxu0 0.0
    %1263 = vmatpush1.msra.mxu0 0.0
    %1264 = vmatprep.subr.mxu0 0.0
    %1265 = vmatpush1.msra.mxu0 0.0
    %1266 = vmatprep.subr.mxu0 0.0
    %1267 = vmatpush1.msra.mxu0 0.0
    %1268 = vmatprep.subr.mxu0 0.0
    %1269 = vmatpush1.msra.mxu0 0.0
    %1270 = vmatprep.subr.mxu0 0.0
    %1271 = vmatpush1.msra.mxu0 0.0
    %1272 = vmatprep.subr.mxu0 0.0
    %1273 = vmatpush1.msra.mxu0 0.0
    %1274 = vmatprep.subr.mxu0 0.0
    %1275 = vmatpush1.msra.mxu0 0.0
    %1276 = vmatprep.subr.mxu0 0.0
    %1277 = vmatpush1.msra.mxu0 0.0
    %1278 = vmatprep.subr.mxu0 0.0
    %1279 = vmatpush1.msra.mxu0 0.0
    %1280 = vmatprep.subr.mxu0 0.0
    %1281 = vmatpush1.msra.mxu0 0.0
    %1282 = vmatprep.subr.mxu0 0.0
    %1283 = vmatpush1.msra.mxu0 0.0
    %1284 = vmatprep.subr.mxu0 0.0
    %1285 = vmatpush1.msra.mxu0 0.0
    %1286 = vmatprep.subr.mxu0 0.0
    %1287 = vmatpush1.msra.mxu0 0.0
    %1288 = vmatprep.subr.mxu0 0.0
    %1289 = vmatpush1.msra.mxu0 0.0
    %1290 = vmatprep.subr.mxu0 0.0
    %1291 = vmatpush1.msra.mxu0 0.0
    %1292 = vmatprep.subr.mxu0 0.0
    %1293 = vmatpush1.msra.mxu0 0.0
    %1294 = vmatprep.subr.mxu0 0.0
    %1295 = vmatpush1.msra.mxu0 0.0
    %1296 = vmatprep.subr.mxu0 0.0
    %1297 = vmatpush1.msra.mxu0 0.0
    %1298 = vmatprep.subr.mxu0 0.0
    %1299 = vmatpush1.msra.mxu0 0.0
    %1300 = vmatprep.mubr.f32.mxu0 0.0
    %1301 = vmatmul.mubr.f32.gmra.mrb[0].mxu0 %v1164
    %v1302 = vpop.f32.mrb[0].mxu0
    %v1303 = vadd.f32 0.0, %v1302
    %v1304 = vpop.f32.mrb[0].mxu0
    %1305 = vdwg.mxu0
    %1306 = vmatprep.subr.mxu0 0.0
    %1307 = vmatpush1.msra.mxu0 %v602
    %1308 = vmatprep.subr.mxu0 0.0
    %1309 = vmatpush1.msra.mxu0 %v603
    %1310 = vmatprep.subr.mxu0 0.0
    %1311 = vmatpush1.msra.mxu0 %v604
    %1312 = vmatprep.subr.mxu0 0.0
    %1313 = vmatpush1.msra.mxu0 %v605
    %1314 = vmatprep.subr.mxu0 0.0
    %1315 = vmatpush1.msra.mxu0 0.0
    %1316 = vmatprep.subr.mxu0 0.0
    %1317 = vmatpush1.msra.mxu0 0.0
    %1318 = vmatprep.subr.mxu0 0.0
    %1319 = vmatpush1.msra.mxu0 0.0
    %1320 = vmatprep.subr.mxu0 0.0
    %1321 = vmatpush1.msra.mxu0 0.0
    %1322 = vmatprep.subr.mxu0 0.0
    %1323 = vmatpush1.msra.mxu0 0.0
    %1324 = vmatprep.subr.mxu0 0.0
    %1325 = vmatpush1.msra.mxu0 0.0
    %1326 = vmatprep.subr.mxu0 0.0
    %1327 = vmatpush1.msra.mxu0 0.0
    %1328 = vmatprep.subr.mxu0 0.0
    %1329 = vmatpush1.msra.mxu0 0.0
    %1330 = vmatprep.subr.mxu0 0.0
    %1331 = vmatpush1.msra.mxu0 0.0
    %1332 = vmatprep.subr.mxu0 0.0
    %1333 = vmatpush1.msra.mxu0 0.0
    %1334 = vmatprep.subr.mxu0 0.0
    %1335 = vmatpush1.msra.mxu0 0.0
    %1336 = vmatprep.subr.mxu0 0.0
    %1337 = vmatpush1.msra.mxu0 0.0
    %1338 = vmatprep.subr.mxu0 0.0
    %1339 = vmatpush1.msra.mxu0 0.0
    %1340 = vmatprep.subr.mxu0 0.0
    %1341 = vmatpush1.msra.mxu0 0.0
    %1342 = vmatprep.subr.mxu0 0.0
    %1343 = vmatpush1.msra.mxu0 0.0
    %1344 = vmatprep.subr.mxu0 0.0
    %1345 = vmatpush1.msra.mxu0 0.0
    %1346 = vmatprep.subr.mxu0 0.0
    %1347 = vmatpush1.msra.mxu0 0.0
    %1348 = vmatprep.subr.mxu0 0.0
    %1349 = vmatpush1.msra.mxu0 0.0
    %1350 = vmatprep.subr.mxu0 0.0
    %1351 = vmatpush1.msra.mxu0 0.0
    %1352 = vmatprep.subr.mxu0 0.0
    %1353 = vmatpush1.msra.mxu0 0.0
    %1354 = vmatprep.subr.mxu0 0.0
    %1355 = vmatpush1.msra.mxu0 0.0
    %1356 = vmatprep.subr.mxu0 0.0
    %1357 = vmatpush1.msra.mxu0 0.0
    %1358 = vmatprep.subr.mxu0 0.0
    %1359 = vmatpush1.msra.mxu0 0.0
    %1360 = vmatprep.subr.mxu0 0.0
    %1361 = vmatpush1.msra.mxu0 0.0
    %1362 = vmatprep.subr.mxu0 0.0
    %1363 = vmatpush1.msra.mxu0 0.0
    %1364 = vmatprep.subr.mxu0 0.0
    %1365 = vmatpush1.msra.mxu0 0.0
    %1366 = vmatprep.subr.mxu0 0.0
    %1367 = vmatpush1.msra.mxu0 0.0
    %1368 = vmatprep.subr.mxu0 0.0
    %1369 = vmatpush1.msra.mxu0 0.0
    %1370 = vmatprep.mubr.f32.mxu0 0.0
    %1371 = vmatmul.mubr.f32.gmra.mrb[0].mxu0 %v1164
    %v1372 = vpop.f32.mrb[0].mxu0
    %v1373 = vadd.f32 %v755, %v1372
    %v1374 = vpop.f32.mrb[0].mxu0
    %1375 = vdwg.mxu0
    %v1377 = vrot.slane %v1233, 6
    %v1378 = vrot.slane %v1233, 7
    %v1381 = vadd.f32 %v412, %v1377
    %v1382 = vadd.f32 %v417, %v1378
    %v1383 = vxor.u32 %v1381, 2147483648
    %v1384 = vxor.u32 %v1382, 2147483648
    %v1385 = vmul.f32 %v1383, 1.442695
    %v1386 = vpow.pop %v1385
    %v1387 = vmul.f32 %v1384, 1.442695
    %v1388 = vpow.pop %v1387
    %v1389 = vadd.f32 %v1386, 1.0
    %v1390 = vadd.f32 %v1388, 1.0
    %v1391 = vrcp.pop %v1389
    %v1392 = vmul.f32 1.0, %v1391
    %v1393 = vrcp.pop %v1390
    %v1394 = vmul.f32 1.0, %v1393
    %v1396 = vrot.slane %v1303, 6
    %v1397 = vrot.slane %v1303, 7
    %v1400 = vadd.f32 %v498, %v1396
    %v1401 = vadd.f32 %v503, %v1397
    %v1402 = vxor.u32 %v1400, 2147483648
    %v1403 = vxor.u32 %v1401, 2147483648
    %v1404 = vmul.f32 %v1402, 1.442695
    %v1405 = vpow.pop %v1404
    %v1406 = vmul.f32 %v1403, 1.442695
    %v1407 = vpow.pop %v1406
    %v1408 = vadd.f32 %v1405, 1.0
    %v1409 = vadd.f32 %v1407, 1.0
    %v1410 = vrcp.pop %v1408
    %v1411 = vmul.f32 1.0, %v1410
    %v1412 = vrcp.pop %v1409
    %v1413 = vmul.f32 1.0, %v1412
    %v1415 = vrot.slane %v1373, 6
    %v1416 = vrot.slane %v1373, 7
    %v1419 = vmul.f32 %v1392, %v1415
    %v1420 = vmul.f32 %v1394, %v1416
    %v1421 = vadd.f32 %v584, %v1419
    %v1422 = vadd.f32 %v589, %v1420
    %v1423 = vtanh.pop %v1421
    %v1424 = vtanh.pop %v1422
    %v1427 = vrot.slane %v1423, 1
    %v1428 = vrot.slane %v1424, 1
    %v1431 = vsub.f32 %v1158, %v1427
    %v1432 = vsub.f32 %v1159, %v1428
    %v1435 = vrot.slane %v1431, 7
    %v1436 = vrot.slane %v1432, 7
    %v1439 = vmul.f32 %v1411, %v1435
    %v1440 = vmul.f32 %v1413, %v1436
    %v1441 = vadd.f32 %v1423, %v1439
    %v1442 = vadd.f32 %v1424, %v1440
    %v1445 = vrot.slane %v1441, 2
    %v1446 = vrot.slane %v1442, 1
    %v1447 = vsel %vm882, %v1446, %v1445
    %v1448 = vsel %vm607, %v1447, 0
    %1450 = vmatprep.subr.mxu0 0.0
    %1451 = vmatpush1.msra.mxu0 %v592
    %1452 = vmatprep.subr.mxu0 0.0
    %1453 = vmatpush1.msra.mxu0 %v593
    %1454 = vmatprep.subr.mxu0 0.0
    %1455 = vmatpush1.msra.mxu0 %v594
    %1456 = vmatprep.subr.mxu0 0.0
    %1457 = vmatpush1.msra.mxu0 %v595
    %1458 = vmatprep.subr.mxu0 0.0
    %1459 = vmatpush1.msra.mxu0 0.0
    %1460 = vmatprep.subr.mxu0 0.0
    %1461 = vmatpush1.msra.mxu0 0.0
    %1462 = vmatprep.subr.mxu0 0.0
    %1463 = vmatpush1.msra.mxu0 0.0
    %1464 = vmatprep.subr.mxu0 0.0
    %1465 = vmatpush1.msra.mxu0 0.0
    %1466 = vmatprep.subr.mxu0 0.0
    %1467 = vmatpush1.msra.mxu0 0.0
    %1468 = vmatprep.subr.mxu0 0.0
    %1469 = vmatpush1.msra.mxu0 0.0
    %1470 = vmatprep.subr.mxu0 0.0
    %1471 = vmatpush1.msra.mxu0 0.0
    %1472 = vmatprep.subr.mxu0 0.0
    %1473 = vmatpush1.msra.mxu0 0.0
    %1474 = vmatprep.subr.mxu0 0.0
    %1475 = vmatpush1.msra.mxu0 0.0
    %1476 = vmatprep.subr.mxu0 0.0
    %1477 = vmatpush1.msra.mxu0 0.0
    %1478 = vmatprep.subr.mxu0 0.0
    %1479 = vmatpush1.msra.mxu0 0.0
    %1480 = vmatprep.subr.mxu0 0.0
    %1481 = vmatpush1.msra.mxu0 0.0
    %1482 = vmatprep.subr.mxu0 0.0
    %1483 = vmatpush1.msra.mxu0 0.0
    %1484 = vmatprep.subr.mxu0 0.0
    %1485 = vmatpush1.msra.mxu0 0.0
    %1486 = vmatprep.subr.mxu0 0.0
    %1487 = vmatpush1.msra.mxu0 0.0
    %1488 = vmatprep.subr.mxu0 0.0
    %1489 = vmatpush1.msra.mxu0 0.0
    %1490 = vmatprep.subr.mxu0 0.0
    %1491 = vmatpush1.msra.mxu0 0.0
    %1492 = vmatprep.subr.mxu0 0.0
    %1493 = vmatpush1.msra.mxu0 0.0
    %1494 = vmatprep.subr.mxu0 0.0
    %1495 = vmatpush1.msra.mxu0 0.0
    %1496 = vmatprep.subr.mxu0 0.0
    %1497 = vmatpush1.msra.mxu0 0.0
    %1498 = vmatprep.subr.mxu0 0.0
    %1499 = vmatpush1.msra.mxu0 0.0
    %1500 = vmatprep.subr.mxu0 0.0
    %1501 = vmatpush1.msra.mxu0 0.0
    %1502 = vmatprep.subr.mxu0 0.0
    %1503 = vmatpush1.msra.mxu0 0.0
    %1504 = vmatprep.subr.mxu0 0.0
    %1505 = vmatpush1.msra.mxu0 0.0
    %1506 = vmatprep.subr.mxu0 0.0
    %1507 = vmatpush1.msra.mxu0 0.0
    %1508 = vmatprep.subr.mxu0 0.0
    %1509 = vmatpush1.msra.mxu0 0.0
    %1510 = vmatprep.subr.mxu0 0.0
    %1511 = vmatpush1.msra.mxu0 0.0
    %1512 = vmatprep.subr.mxu0 0.0
    %1513 = vmatpush1.msra.mxu0 0.0
    %1514 = vmatprep.mubr.f32.mxu0 0.0
    %1515 = vmatmul.mubr.f32.gmra.mrb[0].mxu0 %v1448
    %v1516 = vpop.f32.mrb[0].mxu0
    %v1517 = vadd.f32 0.0, %v1516
    %v1518 = vpop.f32.mrb[0].mxu0
    %1519 = vdwg.mxu0
    %1520 = vmatprep.subr.mxu0 0.0
    %1521 = vmatpush1.msra.mxu0 %v597
    %1522 = vmatprep.subr.mxu0 0.0
    %1523 = vmatpush1.msra.mxu0 %v598
    %1524 = vmatprep.subr.mxu0 0.0
    %1525 = vmatpush1.msra.mxu0 %v599
    %1526 = vmatprep.subr.mxu0 0.0
    %1527 = vmatpush1.msra.mxu0 %v600
    %1528 = vmatprep.subr.mxu0 0.0
    %1529 = vmatpush1.msra.mxu0 0.0
    %1530 = vmatprep.subr.mxu0 0.0
    %1531 = vmatpush1.msra.mxu0 0.0
    %1532 = vmatprep.subr.mxu0 0.0
    %1533 = vmatpush1.msra.mxu0 0.0
    %1534 = vmatprep.subr.mxu0 0.0
    %1535 = vmatpush1.msra.mxu0 0.0
    %1536 = vmatprep.subr.mxu0 0.0
    %1537 = vmatpush1.msra.mxu0 0.0
    %1538 = vmatprep.subr.mxu0 0.0
    %1539 = vmatpush1.msra.mxu0 0.0
    %1540 = vmatprep.subr.mxu0 0.0
    %1541 = vmatpush1.msra.mxu0 0.0
    %1542 = vmatprep.subr.mxu0 0.0
    %1543 = vmatpush1.msra.mxu0 0.0
    %1544 = vmatprep.subr.mxu0 0.0
    %1545 = vmatpush1.msra.mxu0 0.0
    %1546 = vmatprep.subr.mxu0 0.0
    %1547 = vmatpush1.msra.mxu0 0.0
    %1548 = vmatprep.subr.mxu0 0.0
    %1549 = vmatpush1.msra.mxu0 0.0
    %1550 = vmatprep.subr.mxu0 0.0
    %1551 = vmatpush1.msra.mxu0 0.0
    %1552 = vmatprep.subr.mxu0 0.0
    %1553 = vmatpush1.msra.mxu0 0.0
    %1554 = vmatprep.subr.mxu0 0.0
    %1555 = vmatpush1.msra.mxu0 0.0
    %1556 = vmatprep.subr.mxu0 0.0
    %1557 = vmatpush1.msra.mxu0 0.0
    %1558 = vmatprep.subr.mxu0 0.0
    %1559 = vmatpush1.msra.mxu0 0.0
    %1560 = vmatprep.subr.mxu0 0.0
    %1561 = vmatpush1.msra.mxu0 0.0
    %1562 = vmatprep.subr.mxu0 0.0
    %1563 = vmatpush1.msra.mxu0 0.0
    %1564 = vmatprep.subr.mxu0 0.0
    %1565 = vmatpush1.msra.mxu0 0.0
    %1566 = vmatprep.subr.mxu0 0.0
    %1567 = vmatpush1.msra.mxu0 0.0
    %1568 = vmatprep.subr.mxu0 0.0
    %1569 = vmatpush1.msra.mxu0 0.0
    %1570 = vmatprep.subr.mxu0 0.0
    %1571 = vmatpush1.msra.mxu0 0.0
    %1572 = vmatprep.subr.mxu0 0.0
    %1573 = vmatpush1.msra.mxu0 0.0
    %1574 = vmatprep.subr.mxu0 0.0
    %1575 = vmatpush1.msra.mxu0 0.0
    %1576 = vmatprep.subr.mxu0 0.0
    %1577 = vmatpush1.msra.mxu0 0.0
    %1578 = vmatprep.subr.mxu0 0.0
    %1579 = vmatpush1.msra.mxu0 0.0
    %1580 = vmatprep.subr.mxu0 0.0
    %1581 = vmatpush1.msra.mxu0 0.0
    %1582 = vmatprep.subr.mxu0 0.0
    %1583 = vmatpush1.msra.mxu0 0.0
    %1584 = vmatprep.mubr.f32.mxu0 0.0
    %1585 = vmatmul.mubr.f32.gmra.mrb[0].mxu0 %v1448
    %v1586 = vpop.f32.mrb[0].mxu0
    %v1587 = vadd.f32 0.0, %v1586
    %v1588 = vpop.f32.mrb[0].mxu0
    %1589 = vdwg.mxu0
    %1590 = vmatprep.subr.mxu0 0.0
    %1591 = vmatpush1.msra.mxu0 %v602
    %1592 = vmatprep.subr.mxu0 0.0
    %1593 = vmatpush1.msra.mxu0 %v603
    %1594 = vmatprep.subr.mxu0 0.0
    %1595 = vmatpush1.msra.mxu0 %v604
    %1596 = vmatprep.subr.mxu0 0.0
    %1597 = vmatpush1.msra.mxu0 %v605
    %1598 = vmatprep.subr.mxu0 0.0
    %1599 = vmatpush1.msra.mxu0 0.0
    %1600 = vmatprep.subr.mxu0 0.0
    %1601 = vmatpush1.msra.mxu0 0.0
    %1602 = vmatprep.subr.mxu0 0.0
    %1603 = vmatpush1.msra.mxu0 0.0
    %1604 = vmatprep.subr.mxu0 0.0
    %1605 = vmatpush1.msra.mxu0 0.0
    %1606 = vmatprep.subr.mxu0 0.0
    %1607 = vmatpush1.msra.mxu0 0.0
    %1608 = vmatprep.subr.mxu0 0.0
    %1609 = vmatpush1.msra.mxu0 0.0
    %1610 = vmatprep.subr.mxu0 0.0
    %1611 = vmatpush1.msra.mxu0 0.0
    %1612 = vmatprep.subr.mxu0 0.0
    %1613 = vmatpush1.msra.mxu0 0.0
    %1614 = vmatprep.subr.mxu0 0.0
    %1615 = vmatpush1.msra.mxu0 0.0
    %1616 = vmatprep.subr.mxu0 0.0
    %1617 = vmatpush1.msra.mxu0 0.0
    %1618 = vmatprep.subr.mxu0 0.0
    %1619 = vmatpush1.msra.mxu0 0.0
    %1620 = vmatprep.subr.mxu0 0.0
    %1621 = vmatpush1.msra.mxu0 0.0
    %1622 = vmatprep.subr.mxu0 0.0
    %1623 = vmatpush1.msra.mxu0 0.0
    %1624 = vmatprep.subr.mxu0 0.0
    %1625 = vmatpush1.msra.mxu0 0.0
    %1626 = vmatprep.subr.mxu0 0.0
    %1627 = vmatpush1.msra.mxu0 0.0
    %1628 = vmatprep.subr.mxu0 0.0
    %1629 = vmatpush1.msra.mxu0 0.0
    %1630 = vmatprep.subr.mxu0 0.0
    %1631 = vmatpush1.msra.mxu0 0.0
    %1632 = vmatprep.subr.mxu0 0.0
    %1633 = vmatpush1.msra.mxu0 0.0
    %1634 = vmatprep.subr.mxu0 0.0
    %1635 = vmatpush1.msra.mxu0 0.0
    %1636 = vmatprep.subr.mxu0 0.0
    %1637 = vmatpush1.msra.mxu0 0.0
    %1638 = vmatprep.subr.mxu0 0.0
    %1639 = vmatpush1.msra.mxu0 0.0
    %1640 = vmatprep.subr.mxu0 0.0
    %1641 = vmatpush1.msra.mxu0 0.0
    %1642 = vmatprep.subr.mxu0 0.0
    %1643 = vmatpush1.msra.mxu0 0.0
    %1644 = vmatprep.subr.mxu0 0.0
    %1645 = vmatpush1.msra.mxu0 0.0
    %1646 = vmatprep.subr.mxu0 0.0
    %1647 = vmatpush1.msra.mxu0 0.0
    %1648 = vmatprep.subr.mxu0 0.0
    %1649 = vmatpush1.msra.mxu0 0.0
    %1650 = vmatprep.subr.mxu0 0.0
    %1651 = vmatpush1.msra.mxu0 0.0
    %1652 = vmatprep.subr.mxu0 0.0
    %1653 = vmatpush1.msra.mxu0 0.0
    %1654 = vmatprep.mubr.f32.mxu0 0.0
    %1655 = vmatmul.mubr.f32.gmra.mrb[0].mxu0 %v1448
    %v1656 = vpop.f32.mrb[0].mxu0
    %v1657 = vadd.f32 %v755, %v1656
    %v1658 = vpop.f32.mrb[0].mxu0
    %1659 = vdwg.mxu0
    %v1661 = vrot.slane %v1517, 5
    %v1662 = vrot.slane %v1517, 6
    %v1665 = vadd.f32 %v412, %v1661
    %v1666 = vadd.f32 %v417, %v1662
    %v1667 = vxor.u32 %v1665, 2147483648
    %v1668 = vxor.u32 %v1666, 2147483648
    %v1669 = vmul.f32 %v1667, 1.442695
    %v1670 = vpow.pop %v1669
    %v1671 = vmul.f32 %v1668, 1.442695
    %v1672 = vpow.pop %v1671
    %v1673 = vadd.f32 %v1670, 1.0
    %v1674 = vadd.f32 %v1672, 1.0
    %v1675 = vrcp.pop %v1673
    %v1676 = vmul.f32 1.0, %v1675
    %v1677 = vrcp.pop %v1674
    %v1678 = vmul.f32 1.0, %v1677
    %v1680 = vrot.slane %v1587, 5
    %v1681 = vrot.slane %v1587, 6
    %v1684 = vadd.f32 %v498, %v1680
    %v1685 = vadd.f32 %v503, %v1681
    %v1686 = vxor.u32 %v1684, 2147483648
    %v1687 = vxor.u32 %v1685, 2147483648
    %v1688 = vmul.f32 %v1686, 1.442695
    %v1689 = vpow.pop %v1688
    %v1690 = vmul.f32 %v1687, 1.442695
    %v1691 = vpow.pop %v1690
    %v1692 = vadd.f32 %v1689, 1.0
    %v1693 = vadd.f32 %v1691, 1.0
    %v1694 = vrcp.pop %v1692
    %v1695 = vmul.f32 1.0, %v1694
    %v1696 = vrcp.pop %v1693
    %v1697 = vmul.f32 1.0, %v1696
    %v1699 = vrot.slane %v1657, 5
    %v1700 = vrot.slane %v1657, 6
    %v1703 = vmul.f32 %v1676, %v1699
    %v1704 = vmul.f32 %v1678, %v1700
    %v1705 = vadd.f32 %v584, %v1703
    %v1706 = vadd.f32 %v589, %v1704
    %v1707 = vtanh.pop %v1705
    %v1708 = vtanh.pop %v1706
    %v1711 = vrot.slane %v1707, 1
    %v1712 = vrot.slane %v1708, 1
    %v1715 = vsub.f32 %v1441, %v1711
    %v1716 = vsub.f32 %v1442, %v1712
    %v1719 = vrot.slane %v1715, 7
    %v1720 = vrot.slane %v1716, 7
    %v1723 = vmul.f32 %v1695, %v1719
    %v1724 = vmul.f32 %v1697, %v1720
    %v1725 = vadd.f32 %v1707, %v1723
    %v1726 = vadd.f32 %v1708, %v1724
    %v1729 = vrot.slane %v1725, 3
    %v1730 = vrot.slane %v1726, 2
    %v1731 = vsel %vm882, %v1730, %v1729
    %v1732 = vsel %vm607, %v1731, 0
    %1734 = vmatprep.subr.mxu0 0.0
    %1735 = vmatpush1.msra.mxu0 %v592
    %1736 = vmatprep.subr.mxu0 0.0
    %1737 = vmatpush1.msra.mxu0 %v593
    %1738 = vmatprep.subr.mxu0 0.0
    %1739 = vmatpush1.msra.mxu0 %v594
    %1740 = vmatprep.subr.mxu0 0.0
    %1741 = vmatpush1.msra.mxu0 %v595
    %1742 = vmatprep.subr.mxu0 0.0
    %1743 = vmatpush1.msra.mxu0 0.0
    %1744 = vmatprep.subr.mxu0 0.0
    %1745 = vmatpush1.msra.mxu0 0.0
    %1746 = vmatprep.subr.mxu0 0.0
    %1747 = vmatpush1.msra.mxu0 0.0
    %1748 = vmatprep.subr.mxu0 0.0
    %1749 = vmatpush1.msra.mxu0 0.0
    %1750 = vmatprep.subr.mxu0 0.0
    %1751 = vmatpush1.msra.mxu0 0.0
    %1752 = vmatprep.subr.mxu0 0.0
    %1753 = vmatpush1.msra.mxu0 0.0
    %1754 = vmatprep.subr.mxu0 0.0
    %1755 = vmatpush1.msra.mxu0 0.0
    %1756 = vmatprep.subr.mxu0 0.0
    %1757 = vmatpush1.msra.mxu0 0.0
    %1758 = vmatprep.subr.mxu0 0.0
    %1759 = vmatpush1.msra.mxu0 0.0
    %1760 = vmatprep.subr.mxu0 0.0
    %1761 = vmatpush1.msra.mxu0 0.0
    %1762 = vmatprep.subr.mxu0 0.0
    %1763 = vmatpush1.msra.mxu0 0.0
    %1764 = vmatprep.subr.mxu0 0.0
    %1765 = vmatpush1.msra.mxu0 0.0
    %1766 = vmatprep.subr.mxu0 0.0
    %1767 = vmatpush1.msra.mxu0 0.0
    %1768 = vmatprep.subr.mxu0 0.0
    %1769 = vmatpush1.msra.mxu0 0.0
    %1770 = vmatprep.subr.mxu0 0.0
    %1771 = vmatpush1.msra.mxu0 0.0
    %1772 = vmatprep.subr.mxu0 0.0
    %1773 = vmatpush1.msra.mxu0 0.0
    %1774 = vmatprep.subr.mxu0 0.0
    %1775 = vmatpush1.msra.mxu0 0.0
    %1776 = vmatprep.subr.mxu0 0.0
    %1777 = vmatpush1.msra.mxu0 0.0
    %1778 = vmatprep.subr.mxu0 0.0
    %1779 = vmatpush1.msra.mxu0 0.0
    %1780 = vmatprep.subr.mxu0 0.0
    %1781 = vmatpush1.msra.mxu0 0.0
    %1782 = vmatprep.subr.mxu0 0.0
    %1783 = vmatpush1.msra.mxu0 0.0
    %1784 = vmatprep.subr.mxu0 0.0
    %1785 = vmatpush1.msra.mxu0 0.0
    %1786 = vmatprep.subr.mxu0 0.0
    %1787 = vmatpush1.msra.mxu0 0.0
    %1788 = vmatprep.subr.mxu0 0.0
    %1789 = vmatpush1.msra.mxu0 0.0
    %1790 = vmatprep.subr.mxu0 0.0
    %1791 = vmatpush1.msra.mxu0 0.0
    %1792 = vmatprep.subr.mxu0 0.0
    %1793 = vmatpush1.msra.mxu0 0.0
    %1794 = vmatprep.subr.mxu0 0.0
    %1795 = vmatpush1.msra.mxu0 0.0
    %1796 = vmatprep.subr.mxu0 0.0
    %1797 = vmatpush1.msra.mxu0 0.0
    %1798 = vmatprep.mubr.f32.mxu0 0.0
    %1799 = vmatmul.mubr.f32.gmra.mrb[0].mxu0 %v1732
    %v1800 = vpop.f32.mrb[0].mxu0
    %v1801 = vadd.f32 0.0, %v1800
    %v1802 = vpop.f32.mrb[0].mxu0
    %1803 = vdwg.mxu0
    %1804 = vmatprep.subr.mxu0 0.0
    %1805 = vmatpush1.msra.mxu0 %v597
    %1806 = vmatprep.subr.mxu0 0.0
    %1807 = vmatpush1.msra.mxu0 %v598
    %1808 = vmatprep.subr.mxu0 0.0
    %1809 = vmatpush1.msra.mxu0 %v599
    %1810 = vmatprep.subr.mxu0 0.0
    %1811 = vmatpush1.msra.mxu0 %v600
    %1812 = vmatprep.subr.mxu0 0.0
    %1813 = vmatpush1.msra.mxu0 0.0
    %1814 = vmatprep.subr.mxu0 0.0
    %1815 = vmatpush1.msra.mxu0 0.0
    %1816 = vmatprep.subr.mxu0 0.0
    %1817 = vmatpush1.msra.mxu0 0.0
    %1818 = vmatprep.subr.mxu0 0.0
    %1819 = vmatpush1.msra.mxu0 0.0
    %1820 = vmatprep.subr.mxu0 0.0
    %1821 = vmatpush1.msra.mxu0 0.0
    %1822 = vmatprep.subr.mxu0 0.0
    %1823 = vmatpush1.msra.mxu0 0.0
    %1824 = vmatprep.subr.mxu0 0.0
    %1825 = vmatpush1.msra.mxu0 0.0
    %1826 = vmatprep.subr.mxu0 0.0
    %1827 = vmatpush1.msra.mxu0 0.0
    %1828 = vmatprep.subr.mxu0 0.0
    %1829 = vmatpush1.msra.mxu0 0.0
    %1830 = vmatprep.subr.mxu0 0.0
    %1831 = vmatpush1.msra.mxu0 0.0
    %1832 = vmatprep.subr.mxu0 0.0
    %1833 = vmatpush1.msra.mxu0 0.0
    %1834 = vmatprep.subr.mxu0 0.0
    %1835 = vmatpush1.msra.mxu0 0.0
    %1836 = vmatprep.subr.mxu0 0.0
    %1837 = vmatpush1.msra.mxu0 0.0
    %1838 = vmatprep.subr.mxu0 0.0
    %1839 = vmatpush1.msra.mxu0 0.0
    %1840 = vmatprep.subr.mxu0 0.0
    %1841 = vmatpush1.msra.mxu0 0.0
    %1842 = vmatprep.subr.mxu0 0.0
    %1843 = vmatpush1.msra.mxu0 0.0
    %1844 = vmatprep.subr.mxu0 0.0
    %1845 = vmatpush1.msra.mxu0 0.0
    %1846 = vmatprep.subr.mxu0 0.0
    %1847 = vmatpush1.msra.mxu0 0.0
    %1848 = vmatprep.subr.mxu0 0.0
    %1849 = vmatpush1.msra.mxu0 0.0
    %1850 = vmatprep.subr.mxu0 0.0
    %1851 = vmatpush1.msra.mxu0 0.0
    %1852 = vmatprep.subr.mxu0 0.0
    %1853 = vmatpush1.msra.mxu0 0.0
    %1854 = vmatprep.subr.mxu0 0.0
    %1855 = vmatpush1.msra.mxu0 0.0
    %1856 = vmatprep.subr.mxu0 0.0
    %1857 = vmatpush1.msra.mxu0 0.0
    %1858 = vmatprep.subr.mxu0 0.0
    %1859 = vmatpush1.msra.mxu0 0.0
    %1860 = vmatprep.subr.mxu0 0.0
    %1861 = vmatpush1.msra.mxu0 0.0
    %1862 = vmatprep.subr.mxu0 0.0
    %1863 = vmatpush1.msra.mxu0 0.0
    %1864 = vmatprep.subr.mxu0 0.0
    %1865 = vmatpush1.msra.mxu0 0.0
    %1866 = vmatprep.subr.mxu0 0.0
    %1867 = vmatpush1.msra.mxu0 0.0
    %1868 = vmatprep.mubr.f32.mxu0 0.0
    %1869 = vmatmul.mubr.f32.gmra.mrb[0].mxu0 %v1732
    %v1870 = vpop.f32.mrb[0].mxu0
    %v1871 = vadd.f32 0.0, %v1870
    %v1872 = vpop.f32.mrb[0].mxu0
    %1873 = vdwg.mxu0
    %1874 = vmatprep.subr.mxu0 0.0
    %1875 = vmatpush1.msra.mxu0 %v602
    %1876 = vmatprep.subr.mxu0 0.0
    %1877 = vmatpush1.msra.mxu0 %v603
    %1878 = vmatprep.subr.mxu0 0.0
    %1879 = vmatpush1.msra.mxu0 %v604
    %1880 = vmatprep.subr.mxu0 0.0
    %1881 = vmatpush1.msra.mxu0 %v605
    %1882 = vmatprep.subr.mxu0 0.0
    %1883 = vmatpush1.msra.mxu0 0.0
    %1884 = vmatprep.subr.mxu0 0.0
    %1885 = vmatpush1.msra.mxu0 0.0
    %1886 = vmatprep.subr.mxu0 0.0
    %1887 = vmatpush1.msra.mxu0 0.0
    %1888 = vmatprep.subr.mxu0 0.0
    %1889 = vmatpush1.msra.mxu0 0.0
    %1890 = vmatprep.subr.mxu0 0.0
    %1891 = vmatpush1.msra.mxu0 0.0
    %1892 = vmatprep.subr.mxu0 0.0
    %1893 = vmatpush1.msra.mxu0 0.0
    %1894 = vmatprep.subr.mxu0 0.0
    %1895 = vmatpush1.msra.mxu0 0.0
    %1896 = vmatprep.subr.mxu0 0.0
    %1897 = vmatpush1.msra.mxu0 0.0
    %1898 = vmatprep.subr.mxu0 0.0
    %1899 = vmatpush1.msra.mxu0 0.0
    %1900 = vmatprep.subr.mxu0 0.0
    %1901 = vmatpush1.msra.mxu0 0.0
    %1902 = vmatprep.subr.mxu0 0.0
    %1903 = vmatpush1.msra.mxu0 0.0
    %1904 = vmatprep.subr.mxu0 0.0
    %1905 = vmatpush1.msra.mxu0 0.0
    %1906 = vmatprep.subr.mxu0 0.0
    %1907 = vmatpush1.msra.mxu0 0.0
    %1908 = vmatprep.subr.mxu0 0.0
    %1909 = vmatpush1.msra.mxu0 0.0
    %1910 = vmatprep.subr.mxu0 0.0
    %1911 = vmatpush1.msra.mxu0 0.0
    %1912 = vmatprep.subr.mxu0 0.0
    %1913 = vmatpush1.msra.mxu0 0.0
    %1914 = vmatprep.subr.mxu0 0.0
    %1915 = vmatpush1.msra.mxu0 0.0
    %1916 = vmatprep.subr.mxu0 0.0
    %1917 = vmatpush1.msra.mxu0 0.0
    %1918 = vmatprep.subr.mxu0 0.0
    %1919 = vmatpush1.msra.mxu0 0.0
    %1920 = vmatprep.subr.mxu0 0.0
    %1921 = vmatpush1.msra.mxu0 0.0
    %1922 = vmatprep.subr.mxu0 0.0
    %1923 = vmatpush1.msra.mxu0 0.0
    %1924 = vmatprep.subr.mxu0 0.0
    %1925 = vmatpush1.msra.mxu0 0.0
    %1926 = vmatprep.subr.mxu0 0.0
    %1927 = vmatpush1.msra.mxu0 0.0
    %1928 = vmatprep.subr.mxu0 0.0
    %1929 = vmatpush1.msra.mxu0 0.0
    %1930 = vmatprep.subr.mxu0 0.0
    %1931 = vmatpush1.msra.mxu0 0.0
    %1932 = vmatprep.subr.mxu0 0.0
    %1933 = vmatpush1.msra.mxu0 0.0
    %1934 = vmatprep.subr.mxu0 0.0
    %1935 = vmatpush1.msra.mxu0 0.0
    %1936 = vmatprep.subr.mxu0 0.0
    %1937 = vmatpush1.msra.mxu0 0.0
    %1938 = vmatprep.mubr.f32.mxu0 0.0
    %1939 = vmatmul.mubr.f32.gmra.mrb[0].mxu0 %v1732
    %v1940 = vpop.f32.mrb[0].mxu0
    %v1941 = vadd.f32 %v755, %v1940
    %v1942 = vpop.f32.mrb[0].mxu0
    %1943 = vdwg.mxu0
    %v1945 = vrot.slane %v1801, 4
    %v1946 = vrot.slane %v1801, 5
    %v1949 = vadd.f32 %v412, %v1945
    %v1950 = vadd.f32 %v417, %v1946
    %v1951 = vxor.u32 %v1949, 2147483648
    %v1952 = vxor.u32 %v1950, 2147483648
    %v1953 = vmul.f32 %v1951, 1.442695
    %v1954 = vpow.pop %v1953
    %v1955 = vmul.f32 %v1952, 1.442695
    %v1956 = vpow.pop %v1955
    %v1957 = vadd.f32 %v1954, 1.0
    %v1958 = vadd.f32 %v1956, 1.0
    %v1959 = vrcp.pop %v1957
    %v1960 = vmul.f32 1.0, %v1959
    %v1961 = vrcp.pop %v1958
    %v1962 = vmul.f32 1.0, %v1961
    %v1964 = vrot.slane %v1871, 4
    %v1965 = vrot.slane %v1871, 5
    %v1968 = vadd.f32 %v498, %v1964
    %v1969 = vadd.f32 %v503, %v1965
    %v1970 = vxor.u32 %v1968, 2147483648
    %v1971 = vxor.u32 %v1969, 2147483648
    %v1972 = vmul.f32 %v1970, 1.442695
    %v1973 = vpow.pop %v1972
    %v1974 = vmul.f32 %v1971, 1.442695
    %v1975 = vpow.pop %v1974
    %v1976 = vadd.f32 %v1973, 1.0
    %v1977 = vadd.f32 %v1975, 1.0
    %v1978 = vrcp.pop %v1976
    %v1979 = vmul.f32 1.0, %v1978
    %v1980 = vrcp.pop %v1977
    %v1981 = vmul.f32 1.0, %v1980
    %v1983 = vrot.slane %v1941, 4
    %v1984 = vrot.slane %v1941, 5
    %v1987 = vmul.f32 %v1960, %v1983
    %v1988 = vmul.f32 %v1962, %v1984
    %v1989 = vadd.f32 %v584, %v1987
    %v1990 = vadd.f32 %v589, %v1988
    %v1991 = vtanh.pop %v1989
    %v1992 = vtanh.pop %v1990
    %v1995 = vrot.slane %v1991, 1
    %v1996 = vrot.slane %v1992, 1
    %v1999 = vsub.f32 %v1725, %v1995
    %v2000 = vsub.f32 %v1726, %v1996
    %v2003 = vrot.slane %v1999, 7
    %v2004 = vrot.slane %v2000, 7
    %v2007 = vmul.f32 %v1979, %v2003
    %v2008 = vmul.f32 %v1981, %v2004
    %v2009 = vadd.f32 %v1991, %v2007
    %v2010 = vadd.f32 %v1992, %v2008
    %v2013 = vrot.slane %v2009, 4
    %v2014 = vrot.slane %v2010, 3
    %v2015 = vsel %vm882, %v2014, %v2013
    %v2016 = vsel %vm607, %v2015, 0
    %2018 = vmatprep.subr.mxu0 0.0
    %2019 = vmatpush1.msra.mxu0 %v592
    %2020 = vmatprep.subr.mxu0 0.0
    %2021 = vmatpush1.msra.mxu0 %v593
    %2022 = vmatprep.subr.mxu0 0.0
    %2023 = vmatpush1.msra.mxu0 %v594
    %2024 = vmatprep.subr.mxu0 0.0
    %2025 = vmatpush1.msra.mxu0 %v595
    %2026 = vmatprep.subr.mxu0 0.0
    %2027 = vmatpush1.msra.mxu0 0.0
    %2028 = vmatprep.subr.mxu0 0.0
    %2029 = vmatpush1.msra.mxu0 0.0
    %2030 = vmatprep.subr.mxu0 0.0
    %2031 = vmatpush1.msra.mxu0 0.0
    %2032 = vmatprep.subr.mxu0 0.0
    %2033 = vmatpush1.msra.mxu0 0.0
    %2034 = vmatprep.subr.mxu0 0.0
    %2035 = vmatpush1.msra.mxu0 0.0
    %2036 = vmatprep.subr.mxu0 0.0
    %2037 = vmatpush1.msra.mxu0 0.0
    %2038 = vmatprep.subr.mxu0 0.0
    %2039 = vmatpush1.msra.mxu0 0.0
    %2040 = vmatprep.subr.mxu0 0.0
    %2041 = vmatpush1.msra.mxu0 0.0
    %2042 = vmatprep.subr.mxu0 0.0
    %2043 = vmatpush1.msra.mxu0 0.0
    %2044 = vmatprep.subr.mxu0 0.0
    %2045 = vmatpush1.msra.mxu0 0.0
    %2046 = vmatprep.subr.mxu0 0.0
    %2047 = vmatpush1.msra.mxu0 0.0
    %2048 = vmatprep.subr.mxu0 0.0
    %2049 = vmatpush1.msra.mxu0 0.0
    %2050 = vmatprep.subr.mxu0 0.0
    %2051 = vmatpush1.msra.mxu0 0.0
    %2052 = vmatprep.subr.mxu0 0.0
    %2053 = vmatpush1.msra.mxu0 0.0
    %2054 = vmatprep.subr.mxu0 0.0
    %2055 = vmatpush1.msra.mxu0 0.0
    %2056 = vmatprep.subr.mxu0 0.0
    %2057 = vmatpush1.msra.mxu0 0.0
    %2058 = vmatprep.subr.mxu0 0.0
    %2059 = vmatpush1.msra.mxu0 0.0
    %2060 = vmatprep.subr.mxu0 0.0
    %2061 = vmatpush1.msra.mxu0 0.0
    %2062 = vmatprep.subr.mxu0 0.0
    %2063 = vmatpush1.msra.mxu0 0.0
    %2064 = vmatprep.subr.mxu0 0.0
    %2065 = vmatpush1.msra.mxu0 0.0
    %2066 = vmatprep.subr.mxu0 0.0
    %2067 = vmatpush1.msra.mxu0 0.0
    %2068 = vmatprep.subr.mxu0 0.0
    %2069 = vmatpush1.msra.mxu0 0.0
    %2070 = vmatprep.subr.mxu0 0.0
    %2071 = vmatpush1.msra.mxu0 0.0
    %2072 = vmatprep.subr.mxu0 0.0
    %2073 = vmatpush1.msra.mxu0 0.0
    %2074 = vmatprep.subr.mxu0 0.0
    %2075 = vmatpush1.msra.mxu0 0.0
    %2076 = vmatprep.subr.mxu0 0.0
    %2077 = vmatpush1.msra.mxu0 0.0
    %2078 = vmatprep.subr.mxu0 0.0
    %2079 = vmatpush1.msra.mxu0 0.0
    %2080 = vmatprep.subr.mxu0 0.0
    %2081 = vmatpush1.msra.mxu0 0.0
    %2082 = vmatprep.mubr.f32.mxu0 0.0
    %2083 = vmatmul.mubr.f32.gmra.mrb[0].mxu0 %v2016
    %v2084 = vpop.f32.mrb[0].mxu0
    %v2085 = vadd.f32 0.0, %v2084
    %v2086 = vpop.f32.mrb[0].mxu0
    %2087 = vdwg.mxu0
    %2088 = vmatprep.subr.mxu0 0.0
    %2089 = vmatpush1.msra.mxu0 %v597
    %2090 = vmatprep.subr.mxu0 0.0
    %2091 = vmatpush1.msra.mxu0 %v598
    %2092 = vmatprep.subr.mxu0 0.0
    %2093 = vmatpush1.msra.mxu0 %v599
    %2094 = vmatprep.subr.mxu0 0.0
    %2095 = vmatpush1.msra.mxu0 %v600
    %2096 = vmatprep.subr.mxu0 0.0
    %2097 = vmatpush1.msra.mxu0 0.0
    %2098 = vmatprep.subr.mxu0 0.0
    %2099 = vmatpush1.msra.mxu0 0.0
    %2100 = vmatprep.subr.mxu0 0.0
    %2101 = vmatpush1.msra.mxu0 0.0
    %2102 = vmatprep.subr.mxu0 0.0
    %2103 = vmatpush1.msra.mxu0 0.0
    %2104 = vmatprep.subr.mxu0 0.0
    %2105 = vmatpush1.msra.mxu0 0.0
    %2106 = vmatprep.subr.mxu0 0.0
    %2107 = vmatpush1.msra.mxu0 0.0
    %2108 = vmatprep.subr.mxu0 0.0
    %2109 = vmatpush1.msra.mxu0 0.0
    %2110 = vmatprep.subr.mxu0 0.0
    %2111 = vmatpush1.msra.mxu0 0.0
    %2112 = vmatprep.subr.mxu0 0.0
    %2113 = vmatpush1.msra.mxu0 0.0
    %2114 = vmatprep.subr.mxu0 0.0
    %2115 = vmatpush1.msra.mxu0 0.0
    %2116 = vmatprep.subr.mxu0 0.0
    %2117 = vmatpush1.msra.mxu0 0.0
    %2118 = vmatprep.subr.mxu0 0.0
    %2119 = vmatpush1.msra.mxu0 0.0
    %2120 = vmatprep.subr.mxu0 0.0
    %2121 = vmatpush1.msra.mxu0 0.0
    %2122 = vmatprep.subr.mxu0 0.0
    %2123 = vmatpush1.msra.mxu0 0.0
    %2124 = vmatprep.subr.mxu0 0.0
    %2125 = vmatpush1.msra.mxu0 0.0
    %2126 = vmatprep.subr.mxu0 0.0
    %2127 = vmatpush1.msra.mxu0 0.0
    %2128 = vmatprep.subr.mxu0 0.0
    %2129 = vmatpush1.msra.mxu0 0.0
    %2130 = vmatprep.subr.mxu0 0.0
    %2131 = vmatpush1.msra.mxu0 0.0
    %2132 = vmatprep.subr.mxu0 0.0
    %2133 = vmatpush1.msra.mxu0 0.0
    %2134 = vmatprep.subr.mxu0 0.0
    %2135 = vmatpush1.msra.mxu0 0.0
    %2136 = vmatprep.subr.mxu0 0.0
    %2137 = vmatpush1.msra.mxu0 0.0
    %2138 = vmatprep.subr.mxu0 0.0
    %2139 = vmatpush1.msra.mxu0 0.0
    %2140 = vmatprep.subr.mxu0 0.0
    %2141 = vmatpush1.msra.mxu0 0.0
    %2142 = vmatprep.subr.mxu0 0.0
    %2143 = vmatpush1.msra.mxu0 0.0
    %2144 = vmatprep.subr.mxu0 0.0
    %2145 = vmatpush1.msra.mxu0 0.0
    %2146 = vmatprep.subr.mxu0 0.0
    %2147 = vmatpush1.msra.mxu0 0.0
    %2148 = vmatprep.subr.mxu0 0.0
    %2149 = vmatpush1.msra.mxu0 0.0
    %2150 = vmatprep.subr.mxu0 0.0
    %2151 = vmatpush1.msra.mxu0 0.0
    %2152 = vmatprep.mubr.f32.mxu0 0.0
    %2153 = vmatmul.mubr.f32.gmra.mrb[0].mxu0 %v2016
    %v2154 = vpop.f32.mrb[0].mxu0
    %v2155 = vadd.f32 0.0, %v2154
    %v2156 = vpop.f32.mrb[0].mxu0
    %2157 = vdwg.mxu0
    %2158 = vmatprep.subr.mxu0 0.0
    %2159 = vmatpush1.msra.mxu0 %v602
    %2160 = vmatprep.subr.mxu0 0.0
    %2161 = vmatpush1.msra.mxu0 %v603
    %2162 = vmatprep.subr.mxu0 0.0
    %2163 = vmatpush1.msra.mxu0 %v604
    %2164 = vmatprep.subr.mxu0 0.0
    %2165 = vmatpush1.msra.mxu0 %v605
    %2166 = vmatprep.subr.mxu0 0.0
    %2167 = vmatpush1.msra.mxu0 0.0
    %2168 = vmatprep.subr.mxu0 0.0
    %2169 = vmatpush1.msra.mxu0 0.0
    %2170 = vmatprep.subr.mxu0 0.0
    %2171 = vmatpush1.msra.mxu0 0.0
    %2172 = vmatprep.subr.mxu0 0.0
    %2173 = vmatpush1.msra.mxu0 0.0
    %2174 = vmatprep.subr.mxu0 0.0
    %2175 = vmatpush1.msra.mxu0 0.0
    %2176 = vmatprep.subr.mxu0 0.0
    %2177 = vmatpush1.msra.mxu0 0.0
    %2178 = vmatprep.subr.mxu0 0.0
    %2179 = vmatpush1.msra.mxu0 0.0
    %2180 = vmatprep.subr.mxu0 0.0
    %2181 = vmatpush1.msra.mxu0 0.0
    %2182 = vmatprep.subr.mxu0 0.0
    %2183 = vmatpush1.msra.mxu0 0.0
    %2184 = vmatprep.subr.mxu0 0.0
    %2185 = vmatpush1.msra.mxu0 0.0
    %2186 = vmatprep.subr.mxu0 0.0
    %2187 = vmatpush1.msra.mxu0 0.0
    %2188 = vmatprep.subr.mxu0 0.0
    %2189 = vmatpush1.msra.mxu0 0.0
    %2190 = vmatprep.subr.mxu0 0.0
    %2191 = vmatpush1.msra.mxu0 0.0
    %2192 = vmatprep.subr.mxu0 0.0
    %2193 = vmatpush1.msra.mxu0 0.0
    %2194 = vmatprep.subr.mxu0 0.0
    %2195 = vmatpush1.msra.mxu0 0.0
    %2196 = vmatprep.subr.mxu0 0.0
    %2197 = vmatpush1.msra.mxu0 0.0
    %2198 = vmatprep.subr.mxu0 0.0
    %2199 = vmatpush1.msra.mxu0 0.0
    %2200 = vmatprep.subr.mxu0 0.0
    %2201 = vmatpush1.msra.mxu0 0.0
    %2202 = vmatprep.subr.mxu0 0.0
    %2203 = vmatpush1.msra.mxu0 0.0
    %2204 = vmatprep.subr.mxu0 0.0
    %2205 = vmatpush1.msra.mxu0 0.0
    %2206 = vmatprep.subr.mxu0 0.0
    %2207 = vmatpush1.msra.mxu0 0.0
    %2208 = vmatprep.subr.mxu0 0.0
    %2209 = vmatpush1.msra.mxu0 0.0
    %2210 = vmatprep.subr.mxu0 0.0
    %2211 = vmatpush1.msra.mxu0 0.0
    %2212 = vmatprep.subr.mxu0 0.0
    %2213 = vmatpush1.msra.mxu0 0.0
    %2214 = vmatprep.subr.mxu0 0.0
    %2215 = vmatpush1.msra.mxu0 0.0
    %2216 = vmatprep.subr.mxu0 0.0
    %2217 = vmatpush1.msra.mxu0 0.0
    %2218 = vmatprep.subr.mxu0 0.0
    %2219 = vmatpush1.msra.mxu0 0.0
    %2220 = vmatprep.subr.mxu0 0.0
    %2221 = vmatpush1.msra.mxu0 0.0
    %2222 = vmatprep.mubr.f32.mxu0 0.0
    %2223 = vmatmul.mubr.f32.gmra.mrb[0].mxu0 %v2016
    %v2224 = vpop.f32.mrb[0].mxu0
    %v2225 = vadd.f32 %v755, %v2224
    %v2226 = vpop.f32.mrb[0].mxu0
    %2227 = vdwg.mxu0
    %v2229 = vrot.slane %v2085, 3
    %v2230 = vrot.slane %v2085, 4
    %v2233 = vadd.f32 %v412, %v2229
    %v2234 = vadd.f32 %v417, %v2230
    %v2235 = vxor.u32 %v2233, 2147483648
    %v2236 = vxor.u32 %v2234, 2147483648
    %v2237 = vmul.f32 %v2235, 1.442695
    %v2238 = vpow.pop %v2237
    %v2239 = vmul.f32 %v2236, 1.442695
    %v2240 = vpow.pop %v2239
    %v2241 = vadd.f32 %v2238, 1.0
    %v2242 = vadd.f32 %v2240, 1.0
    %v2243 = vrcp.pop %v2241
    %v2244 = vmul.f32 1.0, %v2243
    %v2245 = vrcp.pop %v2242
    %v2246 = vmul.f32 1.0, %v2245
    %v2248 = vrot.slane %v2155, 3
    %v2249 = vrot.slane %v2155, 4
    %v2252 = vadd.f32 %v498, %v2248
    %v2253 = vadd.f32 %v503, %v2249
    %v2254 = vxor.u32 %v2252, 2147483648
    %v2255 = vxor.u32 %v2253, 2147483648
    %v2256 = vmul.f32 %v2254, 1.442695
    %v2257 = vpow.pop %v2256
    %v2258 = vmul.f32 %v2255, 1.442695
    %v2259 = vpow.pop %v2258
    %v2260 = vadd.f32 %v2257, 1.0
    %v2261 = vadd.f32 %v2259, 1.0
    %v2262 = vrcp.pop %v2260
    %v2263 = vmul.f32 1.0, %v2262
    %v2264 = vrcp.pop %v2261
    %v2265 = vmul.f32 1.0, %v2264
    %v2267 = vrot.slane %v2225, 3
    %v2268 = vrot.slane %v2225, 4
    %v2271 = vmul.f32 %v2244, %v2267
    %v2272 = vmul.f32 %v2246, %v2268
    %v2273 = vadd.f32 %v584, %v2271
    %v2274 = vadd.f32 %v589, %v2272
    %v2275 = vtanh.pop %v2273
    %v2276 = vtanh.pop %v2274
    %v2279 = vrot.slane %v2275, 1
    %v2280 = vrot.slane %v2276, 1
    %v2283 = vsub.f32 %v2009, %v2279
    %v2284 = vsub.f32 %v2010, %v2280
    %v2287 = vrot.slane %v2283, 7
    %v2288 = vrot.slane %v2284, 7
    %v2291 = vmul.f32 %v2263, %v2287
    %v2292 = vmul.f32 %v2265, %v2288
    %v2293 = vadd.f32 %v2275, %v2291
    %v2294 = vadd.f32 %v2276, %v2292
    %v2297 = vrot.slane %v2293, 5
    %v2298 = vrot.slane %v2294, 4
    %v2299 = vsel %vm882, %v2298, %v2297
    %v2300 = vsel %vm607, %v2299, 0
    %2302 = vmatprep.subr.mxu0 0.0
    %2303 = vmatpush1.msra.mxu0 %v592
    %2304 = vmatprep.subr.mxu0 0.0
    %2305 = vmatpush1.msra.mxu0 %v593
    %2306 = vmatprep.subr.mxu0 0.0
    %2307 = vmatpush1.msra.mxu0 %v594
    %2308 = vmatprep.subr.mxu0 0.0
    %2309 = vmatpush1.msra.mxu0 %v595
    %2310 = vmatprep.subr.mxu0 0.0
    %2311 = vmatpush1.msra.mxu0 0.0
    %2312 = vmatprep.subr.mxu0 0.0
    %2313 = vmatpush1.msra.mxu0 0.0
    %2314 = vmatprep.subr.mxu0 0.0
    %2315 = vmatpush1.msra.mxu0 0.0
    %2316 = vmatprep.subr.mxu0 0.0
    %2317 = vmatpush1.msra.mxu0 0.0
    %2318 = vmatprep.subr.mxu0 0.0
    %2319 = vmatpush1.msra.mxu0 0.0
    %2320 = vmatprep.subr.mxu0 0.0
    %2321 = vmatpush1.msra.mxu0 0.0
    %2322 = vmatprep.subr.mxu0 0.0
    %2323 = vmatpush1.msra.mxu0 0.0
    %2324 = vmatprep.subr.mxu0 0.0
    %2325 = vmatpush1.msra.mxu0 0.0
    %2326 = vmatprep.subr.mxu0 0.0
    %2327 = vmatpush1.msra.mxu0 0.0
    %2328 = vmatprep.subr.mxu0 0.0
    %2329 = vmatpush1.msra.mxu0 0.0
    %2330 = vmatprep.subr.mxu0 0.0
    %2331 = vmatpush1.msra.mxu0 0.0
    %2332 = vmatprep.subr.mxu0 0.0
    %2333 = vmatpush1.msra.mxu0 0.0
    %2334 = vmatprep.subr.mxu0 0.0
    %2335 = vmatpush1.msra.mxu0 0.0
    %2336 = vmatprep.subr.mxu0 0.0
    %2337 = vmatpush1.msra.mxu0 0.0
    %2338 = vmatprep.subr.mxu0 0.0
    %2339 = vmatpush1.msra.mxu0 0.0
    %2340 = vmatprep.subr.mxu0 0.0
    %2341 = vmatpush1.msra.mxu0 0.0
    %2342 = vmatprep.subr.mxu0 0.0
    %2343 = vmatpush1.msra.mxu0 0.0
    %2344 = vmatprep.subr.mxu0 0.0
    %2345 = vmatpush1.msra.mxu0 0.0
    %2346 = vmatprep.subr.mxu0 0.0
    %2347 = vmatpush1.msra.mxu0 0.0
    %2348 = vmatprep.subr.mxu0 0.0
    %2349 = vmatpush1.msra.mxu0 0.0
    %2350 = vmatprep.subr.mxu0 0.0
    %2351 = vmatpush1.msra.mxu0 0.0
    %2352 = vmatprep.subr.mxu0 0.0
    %2353 = vmatpush1.msra.mxu0 0.0
    %2354 = vmatprep.subr.mxu0 0.0
    %2355 = vmatpush1.msra.mxu0 0.0
    %2356 = vmatprep.subr.mxu0 0.0
    %2357 = vmatpush1.msra.mxu0 0.0
    %2358 = vmatprep.subr.mxu0 0.0
    %2359 = vmatpush1.msra.mxu0 0.0
    %2360 = vmatprep.subr.mxu0 0.0
    %2361 = vmatpush1.msra.mxu0 0.0
    %2362 = vmatprep.subr.mxu0 0.0
    %2363 = vmatpush1.msra.mxu0 0.0
    %2364 = vmatprep.subr.mxu0 0.0
    %2365 = vmatpush1.msra.mxu0 0.0
    %2366 = vmatprep.mubr.f32.mxu0 0.0
    %2367 = vmatmul.mubr.f32.gmra.mrb[0].mxu0 %v2300
    %v2368 = vpop.f32.mrb[0].mxu0
    %v2369 = vadd.f32 0.0, %v2368
    %v2370 = vpop.f32.mrb[0].mxu0
    %2371 = vdwg.mxu0
    %2372 = vmatprep.subr.mxu0 0.0
    %2373 = vmatpush1.msra.mxu0 %v597
    %2374 = vmatprep.subr.mxu0 0.0
    %2375 = vmatpush1.msra.mxu0 %v598
    %2376 = vmatprep.subr.mxu0 0.0
    %2377 = vmatpush1.msra.mxu0 %v599
    %2378 = vmatprep.subr.mxu0 0.0
    %2379 = vmatpush1.msra.mxu0 %v600
    %2380 = vmatprep.subr.mxu0 0.0
    %2381 = vmatpush1.msra.mxu0 0.0
    %2382 = vmatprep.subr.mxu0 0.0
    %2383 = vmatpush1.msra.mxu0 0.0
    %2384 = vmatprep.subr.mxu0 0.0
    %2385 = vmatpush1.msra.mxu0 0.0
    %2386 = vmatprep.subr.mxu0 0.0
    %2387 = vmatpush1.msra.mxu0 0.0
    %2388 = vmatprep.subr.mxu0 0.0
    %2389 = vmatpush1.msra.mxu0 0.0
    %2390 = vmatprep.subr.mxu0 0.0
    %2391 = vmatpush1.msra.mxu0 0.0
    %2392 = vmatprep.subr.mxu0 0.0
    %2393 = vmatpush1.msra.mxu0 0.0
    %2394 = vmatprep.subr.mxu0 0.0
    %2395 = vmatpush1.msra.mxu0 0.0
    %2396 = vmatprep.subr.mxu0 0.0
    %2397 = vmatpush1.msra.mxu0 0.0
    %2398 = vmatprep.subr.mxu0 0.0
    %2399 = vmatpush1.msra.mxu0 0.0
    %2400 = vmatprep.subr.mxu0 0.0
    %2401 = vmatpush1.msra.mxu0 0.0
    %2402 = vmatprep.subr.mxu0 0.0
    %2403 = vmatpush1.msra.mxu0 0.0
    %2404 = vmatprep.subr.mxu0 0.0
    %2405 = vmatpush1.msra.mxu0 0.0
    %2406 = vmatprep.subr.mxu0 0.0
    %2407 = vmatpush1.msra.mxu0 0.0
    %2408 = vmatprep.subr.mxu0 0.0
    %2409 = vmatpush1.msra.mxu0 0.0
    %2410 = vmatprep.subr.mxu0 0.0
    %2411 = vmatpush1.msra.mxu0 0.0
    %2412 = vmatprep.subr.mxu0 0.0
    %2413 = vmatpush1.msra.mxu0 0.0
    %2414 = vmatprep.subr.mxu0 0.0
    %2415 = vmatpush1.msra.mxu0 0.0
    %2416 = vmatprep.subr.mxu0 0.0
    %2417 = vmatpush1.msra.mxu0 0.0
    %2418 = vmatprep.subr.mxu0 0.0
    %2419 = vmatpush1.msra.mxu0 0.0
    %2420 = vmatprep.subr.mxu0 0.0
    %2421 = vmatpush1.msra.mxu0 0.0
    %2422 = vmatprep.subr.mxu0 0.0
    %2423 = vmatpush1.msra.mxu0 0.0
    %2424 = vmatprep.subr.mxu0 0.0
    %2425 = vmatpush1.msra.mxu0 0.0
    %2426 = vmatprep.subr.mxu0 0.0
    %2427 = vmatpush1.msra.mxu0 0.0
    %2428 = vmatprep.subr.mxu0 0.0
    %2429 = vmatpush1.msra.mxu0 0.0
    %2430 = vmatprep.subr.mxu0 0.0
    %2431 = vmatpush1.msra.mxu0 0.0
    %2432 = vmatprep.subr.mxu0 0.0
    %2433 = vmatpush1.msra.mxu0 0.0
    %2434 = vmatprep.subr.mxu0 0.0
    %2435 = vmatpush1.msra.mxu0 0.0
    %2436 = vmatprep.mubr.f32.mxu0 0.0
    %2437 = vmatmul.mubr.f32.gmra.mrb[0].mxu0 %v2300
    %v2438 = vpop.f32.mrb[0].mxu0
    %v2439 = vadd.f32 0.0, %v2438
    %v2440 = vpop.f32.mrb[0].mxu0
    %2441 = vdwg.mxu0
    %2442 = vmatprep.subr.mxu0 0.0
    %2443 = vmatpush1.msra.mxu0 %v602
    %2444 = vmatprep.subr.mxu0 0.0
    %2445 = vmatpush1.msra.mxu0 %v603
    %2446 = vmatprep.subr.mxu0 0.0
    %2447 = vmatpush1.msra.mxu0 %v604
    %2448 = vmatprep.subr.mxu0 0.0
    %2449 = vmatpush1.msra.mxu0 %v605
    %2450 = vmatprep.subr.mxu0 0.0
    %2451 = vmatpush1.msra.mxu0 0.0
    %2452 = vmatprep.subr.mxu0 0.0
    %2453 = vmatpush1.msra.mxu0 0.0
    %2454 = vmatprep.subr.mxu0 0.0
    %2455 = vmatpush1.msra.mxu0 0.0
    %2456 = vmatprep.subr.mxu0 0.0
    %2457 = vmatpush1.msra.mxu0 0.0
    %2458 = vmatprep.subr.mxu0 0.0
    %2459 = vmatpush1.msra.mxu0 0.0
    %2460 = vmatprep.subr.mxu0 0.0
    %2461 = vmatpush1.msra.mxu0 0.0
    %2462 = vmatprep.subr.mxu0 0.0
    %2463 = vmatpush1.msra.mxu0 0.0
    %2464 = vmatprep.subr.mxu0 0.0
    %2465 = vmatpush1.msra.mxu0 0.0
    %2466 = vmatprep.subr.mxu0 0.0
    %2467 = vmatpush1.msra.mxu0 0.0
    %2468 = vmatprep.subr.mxu0 0.0
    %2469 = vmatpush1.msra.mxu0 0.0
    %2470 = vmatprep.subr.mxu0 0.0
    %2471 = vmatpush1.msra.mxu0 0.0
    %2472 = vmatprep.subr.mxu0 0.0
    %2473 = vmatpush1.msra.mxu0 0.0
    %2474 = vmatprep.subr.mxu0 0.0
    %2475 = vmatpush1.msra.mxu0 0.0
    %2476 = vmatprep.subr.mxu0 0.0
    %2477 = vmatpush1.msra.mxu0 0.0
    %2478 = vmatprep.subr.mxu0 0.0
    %2479 = vmatpush1.msra.mxu0 0.0
    %2480 = vmatprep.subr.mxu0 0.0
    %2481 = vmatpush1.msra.mxu0 0.0
    %2482 = vmatprep.subr.mxu0 0.0
    %2483 = vmatpush1.msra.mxu0 0.0
    %2484 = vmatprep.subr.mxu0 0.0
    %2485 = vmatpush1.msra.mxu0 0.0
    %2486 = vmatprep.subr.mxu0 0.0
    %2487 = vmatpush1.msra.mxu0 0.0
    %2488 = vmatprep.subr.mxu0 0.0
    %2489 = vmatpush1.msra.mxu0 0.0
    %2490 = vmatprep.subr.mxu0 0.0
    %2491 = vmatpush1.msra.mxu0 0.0
    %2492 = vmatprep.subr.mxu0 0.0
    %2493 = vmatpush1.msra.mxu0 0.0
    %2494 = vmatprep.subr.mxu0 0.0
    %2495 = vmatpush1.msra.mxu0 0.0
    %2496 = vmatprep.subr.mxu0 0.0
    %2497 = vmatpush1.msra.mxu0 0.0
    %2498 = vmatprep.subr.mxu0 0.0
    %2499 = vmatpush1.msra.mxu0 0.0
    %2500 = vmatprep.subr.mxu0 0.0
    %2501 = vmatpush1.msra.mxu0 0.0
    %2502 = vmatprep.subr.mxu0 0.0
    %2503 = vmatpush1.msra.mxu0 0.0
    %2504 = vmatprep.subr.mxu0 0.0
    %2505 = vmatpush1.msra.mxu0 0.0
    %2506 = vmatprep.mubr.f32.mxu0 0.0
    %2507 = vmatmul.mubr.f32.gmra.mrb[0].mxu0 %v2300
    %v2508 = vpop.f32.mrb[0].mxu0
    %v2509 = vadd.f32 %v755, %v2508
    %v2510 = vpop.f32.mrb[0].mxu0
    %2511 = vdwg.mxu0
    %v2513 = vrot.slane %v2369, 2
    %v2514 = vrot.slane %v2369, 3
    %v2517 = vadd.f32 %v412, %v2513
    %v2518 = vadd.f32 %v417, %v2514
    %v2519 = vxor.u32 %v2517, 2147483648
    %v2520 = vxor.u32 %v2518, 2147483648
    %v2521 = vmul.f32 %v2519, 1.442695
    %v2522 = vpow.pop %v2521
    %v2523 = vmul.f32 %v2520, 1.442695
    %v2524 = vpow.pop %v2523
    %v2525 = vadd.f32 %v2522, 1.0
    %v2526 = vadd.f32 %v2524, 1.0
    %v2527 = vrcp.pop %v2525
    %v2528 = vmul.f32 1.0, %v2527
    %v2529 = vrcp.pop %v2526
    %v2530 = vmul.f32 1.0, %v2529
    %v2532 = vrot.slane %v2439, 2
    %v2533 = vrot.slane %v2439, 3
    %v2536 = vadd.f32 %v498, %v2532
    %v2537 = vadd.f32 %v503, %v2533
    %v2538 = vxor.u32 %v2536, 2147483648
    %v2539 = vxor.u32 %v2537, 2147483648
    %v2540 = vmul.f32 %v2538, 1.442695
    %v2541 = vpow.pop %v2540
    %v2542 = vmul.f32 %v2539, 1.442695
    %v2543 = vpow.pop %v2542
    %v2544 = vadd.f32 %v2541, 1.0
    %v2545 = vadd.f32 %v2543, 1.0
    %v2546 = vrcp.pop %v2544
    %v2547 = vmul.f32 1.0, %v2546
    %v2548 = vrcp.pop %v2545
    %v2549 = vmul.f32 1.0, %v2548
    %v2551 = vrot.slane %v2509, 2
    %v2552 = vrot.slane %v2509, 3
    %v2555 = vmul.f32 %v2528, %v2551
    %v2556 = vmul.f32 %v2530, %v2552
    %v2557 = vadd.f32 %v584, %v2555
    %v2558 = vadd.f32 %v589, %v2556
    %v2559 = vtanh.pop %v2557
    %v2560 = vtanh.pop %v2558
    %v2563 = vrot.slane %v2559, 1
    %v2564 = vrot.slane %v2560, 1
    %v2567 = vsub.f32 %v2293, %v2563
    %v2568 = vsub.f32 %v2294, %v2564
    %v2571 = vrot.slane %v2567, 7
    %v2572 = vrot.slane %v2568, 7
    %v2575 = vmul.f32 %v2547, %v2571
    %v2576 = vmul.f32 %v2549, %v2572
    %v2577 = vadd.f32 %v2559, %v2575
    %v2578 = vadd.f32 %v2560, %v2576
    %v2581 = vrot.slane %v2577, 6
    %v2582 = vrot.slane %v2578, 5
    %v2583 = vsel %vm882, %v2582, %v2581
    %v2584 = vsel %vm607, %v2583, 0
    %2586 = vmatprep.subr.mxu0 0.0
    %2587 = vmatpush1.msra.mxu0 %v592
    %2588 = vmatprep.subr.mxu0 0.0
    %2589 = vmatpush1.msra.mxu0 %v593
    %2590 = vmatprep.subr.mxu0 0.0
    %2591 = vmatpush1.msra.mxu0 %v594
    %2592 = vmatprep.subr.mxu0 0.0
    %2593 = vmatpush1.msra.mxu0 %v595
    %2594 = vmatprep.subr.mxu0 0.0
    %2595 = vmatpush1.msra.mxu0 0.0
    %2596 = vmatprep.subr.mxu0 0.0
    %2597 = vmatpush1.msra.mxu0 0.0
    %2598 = vmatprep.subr.mxu0 0.0
    %2599 = vmatpush1.msra.mxu0 0.0
    %2600 = vmatprep.subr.mxu0 0.0
    %2601 = vmatpush1.msra.mxu0 0.0
    %2602 = vmatprep.subr.mxu0 0.0
    %2603 = vmatpush1.msra.mxu0 0.0
    %2604 = vmatprep.subr.mxu0 0.0
    %2605 = vmatpush1.msra.mxu0 0.0
    %2606 = vmatprep.subr.mxu0 0.0
    %2607 = vmatpush1.msra.mxu0 0.0
    %2608 = vmatprep.subr.mxu0 0.0
    %2609 = vmatpush1.msra.mxu0 0.0
    %2610 = vmatprep.subr.mxu0 0.0
    %2611 = vmatpush1.msra.mxu0 0.0
    %2612 = vmatprep.subr.mxu0 0.0
    %2613 = vmatpush1.msra.mxu0 0.0
    %2614 = vmatprep.subr.mxu0 0.0
    %2615 = vmatpush1.msra.mxu0 0.0
    %2616 = vmatprep.subr.mxu0 0.0
    %2617 = vmatpush1.msra.mxu0 0.0
    %2618 = vmatprep.subr.mxu0 0.0
    %2619 = vmatpush1.msra.mxu0 0.0
    %2620 = vmatprep.subr.mxu0 0.0
    %2621 = vmatpush1.msra.mxu0 0.0
    %2622 = vmatprep.subr.mxu0 0.0
    %2623 = vmatpush1.msra.mxu0 0.0
    %2624 = vmatprep.subr.mxu0 0.0
    %2625 = vmatpush1.msra.mxu0 0.0
    %2626 = vmatprep.subr.mxu0 0.0
    %2627 = vmatpush1.msra.mxu0 0.0
    %2628 = vmatprep.subr.mxu0 0.0
    %2629 = vmatpush1.msra.mxu0 0.0
    %2630 = vmatprep.subr.mxu0 0.0
    %2631 = vmatpush1.msra.mxu0 0.0
    %2632 = vmatprep.subr.mxu0 0.0
    %2633 = vmatpush1.msra.mxu0 0.0
    %2634 = vmatprep.subr.mxu0 0.0
    %2635 = vmatpush1.msra.mxu0 0.0
    %2636 = vmatprep.subr.mxu0 0.0
    %2637 = vmatpush1.msra.mxu0 0.0
    %2638 = vmatprep.subr.mxu0 0.0
    %2639 = vmatpush1.msra.mxu0 0.0
    %2640 = vmatprep.subr.mxu0 0.0
    %2641 = vmatpush1.msra.mxu0 0.0
    %2642 = vmatprep.subr.mxu0 0.0
    %2643 = vmatpush1.msra.mxu0 0.0
    %2644 = vmatprep.subr.mxu0 0.0
    %2645 = vmatpush1.msra.mxu0 0.0
    %2646 = vmatprep.subr.mxu0 0.0
    %2647 = vmatpush1.msra.mxu0 0.0
    %2648 = vmatprep.subr.mxu0 0.0
    %2649 = vmatpush1.msra.mxu0 0.0
    %2650 = vmatprep.mubr.f32.mxu0 0.0
    %2651 = vmatmul.mubr.f32.gmra.mrb[0].mxu0 %v2584
    %v2652 = vpop.f32.mrb[0].mxu0
    %v2653 = vadd.f32 0.0, %v2652
    %v2654 = vpop.f32.mrb[0].mxu0
    %2655 = vdwg.mxu0
    %2656 = vmatprep.subr.mxu0 0.0
    %2657 = vmatpush1.msra.mxu0 %v597
    %2658 = vmatprep.subr.mxu0 0.0
    %2659 = vmatpush1.msra.mxu0 %v598
    %2660 = vmatprep.subr.mxu0 0.0
    %2661 = vmatpush1.msra.mxu0 %v599
    %2662 = vmatprep.subr.mxu0 0.0
    %2663 = vmatpush1.msra.mxu0 %v600
    %2664 = vmatprep.subr.mxu0 0.0
    %2665 = vmatpush1.msra.mxu0 0.0
    %2666 = vmatprep.subr.mxu0 0.0
    %2667 = vmatpush1.msra.mxu0 0.0
    %2668 = vmatprep.subr.mxu0 0.0
    %2669 = vmatpush1.msra.mxu0 0.0
    %2670 = vmatprep.subr.mxu0 0.0
    %2671 = vmatpush1.msra.mxu0 0.0
    %2672 = vmatprep.subr.mxu0 0.0
    %2673 = vmatpush1.msra.mxu0 0.0
    %2674 = vmatprep.subr.mxu0 0.0
    %2675 = vmatpush1.msra.mxu0 0.0
    %2676 = vmatprep.subr.mxu0 0.0
    %2677 = vmatpush1.msra.mxu0 0.0
    %2678 = vmatprep.subr.mxu0 0.0
    %2679 = vmatpush1.msra.mxu0 0.0
    %2680 = vmatprep.subr.mxu0 0.0
    %2681 = vmatpush1.msra.mxu0 0.0
    %2682 = vmatprep.subr.mxu0 0.0
    %2683 = vmatpush1.msra.mxu0 0.0
    %2684 = vmatprep.subr.mxu0 0.0
    %2685 = vmatpush1.msra.mxu0 0.0
    %2686 = vmatprep.subr.mxu0 0.0
    %2687 = vmatpush1.msra.mxu0 0.0
    %2688 = vmatprep.subr.mxu0 0.0
    %2689 = vmatpush1.msra.mxu0 0.0
    %2690 = vmatprep.subr.mxu0 0.0
    %2691 = vmatpush1.msra.mxu0 0.0
    %2692 = vmatprep.subr.mxu0 0.0
    %2693 = vmatpush1.msra.mxu0 0.0
    %2694 = vmatprep.subr.mxu0 0.0
    %2695 = vmatpush1.msra.mxu0 0.0
    %2696 = vmatprep.subr.mxu0 0.0
    %2697 = vmatpush1.msra.mxu0 0.0
    %2698 = vmatprep.subr.mxu0 0.0
    %2699 = vmatpush1.msra.mxu0 0.0
    %2700 = vmatprep.subr.mxu0 0.0
    %2701 = vmatpush1.msra.mxu0 0.0
    %2702 = vmatprep.subr.mxu0 0.0
    %2703 = vmatpush1.msra.mxu0 0.0
    %2704 = vmatprep.subr.mxu0 0.0
    %2705 = vmatpush1.msra.mxu0 0.0
    %2706 = vmatprep.subr.mxu0 0.0
    %2707 = vmatpush1.msra.mxu0 0.0
    %2708 = vmatprep.subr.mxu0 0.0
    %2709 = vmatpush1.msra.mxu0 0.0
    %2710 = vmatprep.subr.mxu0 0.0
    %2711 = vmatpush1.msra.mxu0 0.0
    %2712 = vmatprep.subr.mxu0 0.0
    %2713 = vmatpush1.msra.mxu0 0.0
    %2714 = vmatprep.subr.mxu0 0.0
    %2715 = vmatpush1.msra.mxu0 0.0
    %2716 = vmatprep.subr.mxu0 0.0
    %2717 = vmatpush1.msra.mxu0 0.0
    %2718 = vmatprep.subr.mxu0 0.0
    %2719 = vmatpush1.msra.mxu0 0.0
    %2720 = vmatprep.mubr.f32.mxu0 0.0
    %2721 = vmatmul.mubr.f32.gmra.mrb[0].mxu0 %v2584
    %v2722 = vpop.f32.mrb[0].mxu0
    %v2723 = vadd.f32 0.0, %v2722
    %v2724 = vpop.f32.mrb[0].mxu0
    %2725 = vdwg.mxu0
    %2726 = vmatprep.subr.mxu0 0.0
    %2727 = vmatpush1.msra.mxu0 %v602
    %2728 = vmatprep.subr.mxu0 0.0
    %2729 = vmatpush1.msra.mxu0 %v603
    %2730 = vmatprep.subr.mxu0 0.0
    %2731 = vmatpush1.msra.mxu0 %v604
    %2732 = vmatprep.subr.mxu0 0.0
    %2733 = vmatpush1.msra.mxu0 %v605
    %2734 = vmatprep.subr.mxu0 0.0
    %2735 = vmatpush1.msra.mxu0 0.0
    %2736 = vmatprep.subr.mxu0 0.0
    %2737 = vmatpush1.msra.mxu0 0.0
    %2738 = vmatprep.subr.mxu0 0.0
    %2739 = vmatpush1.msra.mxu0 0.0
    %2740 = vmatprep.subr.mxu0 0.0
    %2741 = vmatpush1.msra.mxu0 0.0
    %2742 = vmatprep.subr.mxu0 0.0
    %2743 = vmatpush1.msra.mxu0 0.0
    %2744 = vmatprep.subr.mxu0 0.0
    %2745 = vmatpush1.msra.mxu0 0.0
    %2746 = vmatprep.subr.mxu0 0.0
    %2747 = vmatpush1.msra.mxu0 0.0
    %2748 = vmatprep.subr.mxu0 0.0
    %2749 = vmatpush1.msra.mxu0 0.0
    %2750 = vmatprep.subr.mxu0 0.0
    %2751 = vmatpush1.msra.mxu0 0.0
    %2752 = vmatprep.subr.mxu0 0.0
    %2753 = vmatpush1.msra.mxu0 0.0
    %2754 = vmatprep.subr.mxu0 0.0
    %2755 = vmatpush1.msra.mxu0 0.0
    %2756 = vmatprep.subr.mxu0 0.0
    %2757 = vmatpush1.msra.mxu0 0.0
    %2758 = vmatprep.subr.mxu0 0.0
    %2759 = vmatpush1.msra.mxu0 0.0
    %2760 = vmatprep.subr.mxu0 0.0
    %2761 = vmatpush1.msra.mxu0 0.0
    %2762 = vmatprep.subr.mxu0 0.0
    %2763 = vmatpush1.msra.mxu0 0.0
    %2764 = vmatprep.subr.mxu0 0.0
    %2765 = vmatpush1.msra.mxu0 0.0
    %2766 = vmatprep.subr.mxu0 0.0
    %2767 = vmatpush1.msra.mxu0 0.0
    %2768 = vmatprep.subr.mxu0 0.0
    %2769 = vmatpush1.msra.mxu0 0.0
    %2770 = vmatprep.subr.mxu0 0.0
    %2771 = vmatpush1.msra.mxu0 0.0
    %2772 = vmatprep.subr.mxu0 0.0
    %2773 = vmatpush1.msra.mxu0 0.0
    %2774 = vmatprep.subr.mxu0 0.0
    %2775 = vmatpush1.msra.mxu0 0.0
    %2776 = vmatprep.subr.mxu0 0.0
    %2777 = vmatpush1.msra.mxu0 0.0
    %2778 = vmatprep.subr.mxu0 0.0
    %2779 = vmatpush1.msra.mxu0 0.0
    %2780 = vmatprep.subr.mxu0 0.0
    %2781 = vmatpush1.msra.mxu0 0.0
    %2782 = vmatprep.subr.mxu0 0.0
    %2783 = vmatpush1.msra.mxu0 0.0
    %2784 = vmatprep.subr.mxu0 0.0
    %2785 = vmatpush1.msra.mxu0 0.0
    %2786 = vmatprep.subr.mxu0 0.0
    %2787 = vmatpush1.msra.mxu0 0.0
    %2788 = vmatprep.subr.mxu0 0.0
    %2789 = vmatpush1.msra.mxu0 0.0
    %2790 = vmatprep.mubr.f32.mxu0 0.0
    %2791 = vmatmul.mubr.f32.gmra.mrb[0].mxu0 %v2584
    %v2792 = vpop.f32.mrb[0].mxu0
    %v2793 = vadd.f32 %v755, %v2792
    %v2794 = vpop.f32.mrb[0].mxu0
    %2795 = vdwg.mxu0
    %v2797 = vrot.slane %v2653, 1
    %v2798 = vrot.slane %v2653, 2
    %v2801 = vadd.f32 %v412, %v2797
    %v2802 = vadd.f32 %v417, %v2798
    %v2803 = vxor.u32 %v2801, 2147483648
    %v2804 = vxor.u32 %v2802, 2147483648
    %v2805 = vmul.f32 %v2803, 1.442695
    %v2806 = vpow.pop %v2805
    %v2807 = vmul.f32 %v2804, 1.442695
    %v2808 = vpow.pop %v2807
    %v2809 = vadd.f32 %v2806, 1.0
    %v2810 = vadd.f32 %v2808, 1.0
    %v2811 = vrcp.pop %v2809
    %v2812 = vmul.f32 1.0, %v2811
    %v2813 = vrcp.pop %v2810
    %v2814 = vmul.f32 1.0, %v2813
    %v2816 = vrot.slane %v2723, 1
    %v2817 = vrot.slane %v2723, 2
    %v2820 = vadd.f32 %v498, %v2816
    %v2821 = vadd.f32 %v503, %v2817
    %v2822 = vxor.u32 %v2820, 2147483648
    %v2823 = vxor.u32 %v2821, 2147483648
    %v2824 = vmul.f32 %v2822, 1.442695
    %v2825 = vpow.pop %v2824
    %v2826 = vmul.f32 %v2823, 1.442695
    %v2827 = vpow.pop %v2826
    %v2828 = vadd.f32 %v2825, 1.0
    %v2829 = vadd.f32 %v2827, 1.0
    %v2830 = vrcp.pop %v2828
    %v2831 = vmul.f32 1.0, %v2830
    %v2832 = vrcp.pop %v2829
    %v2833 = vmul.f32 1.0, %v2832
    %v2835 = vrot.slane %v2793, 1
    %v2836 = vrot.slane %v2793, 2
    %v2839 = vmul.f32 %v2812, %v2835
    %v2840 = vmul.f32 %v2814, %v2836
    %v2841 = vadd.f32 %v584, %v2839
    %v2842 = vadd.f32 %v589, %v2840
    %v2843 = vtanh.pop %v2841
    %v2844 = vtanh.pop %v2842
    %v2847 = vrot.slane %v2843, 1
    %v2848 = vrot.slane %v2844, 1
    %v2851 = vsub.f32 %v2577, %v2847
    %v2852 = vsub.f32 %v2578, %v2848
    %v2855 = vrot.slane %v2851, 7
    %v2856 = vrot.slane %v2852, 7
    %v2859 = vmul.f32 %v2831, %v2855
    %v2860 = vmul.f32 %v2833, %v2856
    %v2861 = vadd.f32 %v2843, %v2859
    %v2862 = vadd.f32 %v2844, %v2860
    %v2863 = vld [vmem:[%s7] sm:$0xff]
    %v2864 = vld [vmem:[%s7 + $0x8] sm:$0xff]
    %v2865 = vld [vmem:[%s7 + $0x10] sm:$0xff]
    %v2866 = vld [vmem:[%s7 + $0x18] sm:$0xff]
    %v2867 = vld [vmem:[%s8] sm:$0x1]
    %v2869 = vlaneseq
    %v2870 = vshrl.u32 %v2869, 7
    %v2871 = vsub.s32 0, %v2870
    %v2872 = vrot.slane %v2867, %v2871
    %v2876 = vrot.slane %v2861, 7
    %v2877 = vrot.slane %v2862, 6
    %v2878 = vsel %vm882, %v2877, %v2876
    %v2879 = vsel %vm607, %v2878, 0
    %2881 = vmatprep.subr.mxu0 0.0
    %2882 = vmatpush1.msra.mxu0 %v2863
    %2883 = vmatprep.subr.mxu0 0.0
    %2884 = vmatpush1.msra.mxu0 %v2864
    %2885 = vmatprep.subr.mxu0 0.0
    %2886 = vmatpush1.msra.mxu0 %v2865
    %2887 = vmatprep.subr.mxu0 0.0
    %2888 = vmatpush1.msra.mxu0 %v2866
    %2889 = vmatprep.subr.mxu0 0.0
    %2890 = vmatpush1.msra.mxu0 0.0
    %2891 = vmatprep.subr.mxu0 0.0
    %2892 = vmatpush1.msra.mxu0 0.0
    %2893 = vmatprep.subr.mxu0 0.0
    %2894 = vmatpush1.msra.mxu0 0.0
    %2895 = vmatprep.subr.mxu0 0.0
    %2896 = vmatpush1.msra.mxu0 0.0
    %2897 = vmatprep.subr.mxu0 0.0
    %2898 = vmatpush1.msra.mxu0 0.0
    %2899 = vmatprep.subr.mxu0 0.0
    %2900 = vmatpush1.msra.mxu0 0.0
    %2901 = vmatprep.subr.mxu0 0.0
    %2902 = vmatpush1.msra.mxu0 0.0
    %2903 = vmatprep.subr.mxu0 0.0
    %2904 = vmatpush1.msra.mxu0 0.0
    %2905 = vmatprep.subr.mxu0 0.0
    %2906 = vmatpush1.msra.mxu0 0.0
    %2907 = vmatprep.subr.mxu0 0.0
    %2908 = vmatpush1.msra.mxu0 0.0
    %2909 = vmatprep.subr.mxu0 0.0
    %2910 = vmatpush1.msra.mxu0 0.0
    %2911 = vmatprep.subr.mxu0 0.0
    %2912 = vmatpush1.msra.mxu0 0.0
    %2913 = vmatprep.subr.mxu0 0.0
    %2914 = vmatpush1.msra.mxu0 0.0
    %2915 = vmatprep.subr.mxu0 0.0
    %2916 = vmatpush1.msra.mxu0 0.0
    %2917 = vmatprep.subr.mxu0 0.0
    %2918 = vmatpush1.msra.mxu0 0.0
    %2919 = vmatprep.subr.mxu0 0.0
    %2920 = vmatpush1.msra.mxu0 0.0
    %2921 = vmatprep.subr.mxu0 0.0
    %2922 = vmatpush1.msra.mxu0 0.0
    %2923 = vmatprep.subr.mxu0 0.0
    %2924 = vmatpush1.msra.mxu0 0.0
    %2925 = vmatprep.subr.mxu0 0.0
    %2926 = vmatpush1.msra.mxu0 0.0
    %2927 = vmatprep.subr.mxu0 0.0
    %2928 = vmatpush1.msra.mxu0 0.0
    %2929 = vmatprep.subr.mxu0 0.0
    %2930 = vmatpush1.msra.mxu0 0.0
    %2931 = vmatprep.subr.mxu0 0.0
    %2932 = vmatpush1.msra.mxu0 0.0
    %2933 = vmatprep.subr.mxu0 0.0
    %2934 = vmatpush1.msra.mxu0 0.0
    %2935 = vmatprep.subr.mxu0 0.0
    %2936 = vmatpush1.msra.mxu0 0.0
    %2937 = vmatprep.subr.mxu0 0.0
    %2938 = vmatpush1.msra.mxu0 0.0
    %2939 = vmatprep.subr.mxu0 0.0
    %2940 = vmatpush1.msra.mxu0 0.0
    %2941 = vmatprep.subr.mxu0 0.0
    %2942 = vmatpush1.msra.mxu0 0.0
    %2943 = vmatprep.subr.mxu0 0.0
    %2944 = vmatpush1.msra.mxu0 0.0
    %2945 = vmatprep.mubr.f32.mxu0 0.0
    %2946 = vmatmul.mubr.f32.gmra.mrb[0].mxu0 %v2879
    %v2947 = vpop.f32.mrb[0].mxu0
    %v2948 = vadd.f32 %v2872, %v2947
    %v2949 = vpop.f32.mrb[0].mxu0
    %2950 = vdwg.mxu0
    %v2951 = vxor.u32 %v2948, 2147483648
    %v2952 = vmul.f32 %v2951, 1.442695
    %v2953 = vpow.pop %v2952
    %v2954 = vadd.f32 %v2953, 1.0
    %v2955 = vrcp.pop %v2954
    %v2956 = vmul.f32 1.0, %v2955
    %v2959 = vunpack.c.l.s4 1966171168
    %v2960 = vunpack.c.0.s8 %v2959
    %v2961 = vlaneseq
    %v2962 = vshrl.u32 %v2961, 7
    %v2963 = vsub.s32 %v2960, %v2962
    %v2964 = vrot.slane %v2956, %v2963
    %v2965 = vcombine.high %v2964, %v2964
    %v2967 = vunpack.c.l.s4 1966171168
    %v2968 = vunpack.c.0.s8 %v2967
    %v2969 = vlaneseq
    %v2970 = vshrl.u32 %v2969, 7
    %v2971 = vsub.s32 %v2968, %v2970
    %v2972 = vrot.slane %v2964, %v2971
    %v2974 = vunpack.c.l.s4 1966171168
    %v2975 = vunpack.c.0.s8 %v2974
    %v2976 = vlaneseq
    %v2977 = vshrl.u32 %v2976, 7
    %v2978 = vsub.s32 %v2975, %v2977
    %v2979 = vrot.slane %v2965, %v2978
    %vm2982 = vcmask 24576
    %2983 = vst.msk [vmem:[#allocation7] sm:$0x1] %vm2982, %v2972
    %2984 = vst.msk [vmem:[#allocation7 + $0x1] sm:$0x1] %vm2982, %v2979
    // Predicated region
    $region46: #{tpu_custom_call.1} parent=1 // pred_check
      _
    $region47: #{tpu_custom_call.1} parent=1 // pred_check_branch
      %2986 = sbr.rel (0) target = $region49
    $region48: #{tpu_custom_call.1} parent=1 // pred_region
      %s2988 = ssub.s32 32, 32
      %2989 = vsyncadd [#allocation4], %s2988
      %s2990 = sshll.u32 [#allocation7], 4
      %s2991 = int_to_ptr.vmem [resolvable:$true] %s2990
      %2996 = dma.vmem_to_hbm [thread:$0]  %s2991, 32, %s9, [#allocation4], 16, 16, 1
    $region49: #{tpu_custom_call.1} parent=1 // pred_fallthru
      _
    // Predicated region
    $region50: #{tpu_custom_call.1} parent=1 // pred_check
      _
    $region51: #{tpu_custom_call.1} parent=1 // pred_check_branch
      %2998 = sbr.rel (0) target = $region53
    $region52: #{tpu_custom_call.1} parent=1 // pred_region
      %2999 = dma.done [#allocation4], 32
    $region53: #{tpu_custom_call.1} parent=1 // pred_fallthru
      _
    %3000 = vsyncpa [#allocation3], 1
    %3001 = vsyncpa [#allocation6], 1
    %3002 = vsyncpa [#allocation4], 1

</llo_original>
